<compile_context>
chip_gen: v5e
topology: v5e:2x2
jax: 0.10.0
libtpu: 0.0.40
codegen_flags: <defaults>
</compile_context>

<pallas_src>
import functools

import jax
import jax.numpy as jnp
from jax.experimental import pallas as pl
from jax.experimental.pallas import tpu as pltpu


_VMEM_LIMIT = 32 << 20  # leaves headroom even on v7x's 64 MiB/TC


def _round_up(x, m):
    return (x + m - 1) // m * m


# ---------------------------------------------------------------------------
# Kernel 1: row-tiled matmul + bias + optional ReLU  (conv-as-im2col, lane-dense)
# ---------------------------------------------------------------------------
def _mm_bias_act_kernel(x_ref, w_ref, b_ref, o_ref, *, act):
    acc = jnp.dot(x_ref[...], w_ref[...], preferred_element_type=jnp.float32)
    acc = acc + b_ref[...]
    if act == "relu":
        acc = jnp.maximum(acc, 0.0)
    o_ref[...] = acc.astype(o_ref.dtype)


def matmul_bias_act(x, w, b, act="none", out_dtype=jnp.float32, block_m=2048):
    """(M,K) @ (K,N) + b [+ act], tiled over M rows ("parallel" -> 2-TC on v7x)."""
    M, K = x.shape
    K2, N = w.shape
    assert K == K2
    if M <= block_m:
        tm, Mp = M, M                       # single full block, no padding
    else:
        tm = block_m                        # multiple of 8/16 -> legal bf16 tiles
        Mp = _round_up(M, tm)
        if Mp != M:
            x = jnp.pad(x, ((0, Mp - M), (0, 0)))
    out = pl.pallas_call(
        functools.partial(_mm_bias_act_kernel, act=act),
        out_shape=jax.ShapeDtypeStruct((Mp, N), out_dtype),
        grid=(Mp // tm,),
        in_specs=[
            pl.BlockSpec((tm, K), lambda i: (i, 0)),
            pl.BlockSpec((K, N), lambda i: (0, 0)),
            pl.BlockSpec((1, N), lambda i: (0, 0)),
        ],
        out_specs=pl.BlockSpec((tm, N), lambda i: (i, 0)),
        compiler_params=pltpu.CompilerParams(
            dimension_semantics=("parallel",),
            vmem_limit_bytes=_VMEM_LIMIT),
    )(x, w, b.reshape(1, N).astype(jnp.float32))
    return out[:M] if Mp != M else out


# ---------------------------------------------------------------------------
# Kernel 2: fc1 + BN1 + ReLU, K-tiled (pipelined 800 KB weight stream)
# ---------------------------------------------------------------------------
def _fc1_bn_relu_kernel(feat_ref, w1_ref, b1_ref, g1_ref, be1_ref, o_ref, acc_ref):
    @pl.when(pl.program_id(0) == 0)
    def _():
        acc_ref[...] = jnp.zeros_like(acc_ref)

    acc_ref[...] += jnp.dot(feat_ref[...], w1_ref[...],
                            preferred_element_type=jnp.float32)

    @pl.when(pl.program_id(0) == pl.num_programs(0) - 1)
    def _():
        h = acc_ref[...] + b1_ref[...]
        # BatchNorm1d(32), training mode: biased batch variance, eps = 1e-5
        m = jnp.mean(h, axis=0, keepdims=True)
        v = jnp.mean(jnp.square(h - m), axis=0, keepdims=True)
        h = (h - m) * jax.lax.rsqrt(v + 1e-5) * g1_ref[...] + be1_ref[...]
        o_ref[...] = jnp.maximum(h, 0.0)


def fc1_bn_relu(feat, w1, b1, g1, be1, tk=1792):
    """feat: (N, 12544) bf16 (NHWC order).  Returns h: (N, 32) f32."""
    N, F = feat.shape
    H = w1.shape[1]
    assert F % tk == 0
    return pl.pallas_call(
        _fc1_bn_relu_kernel,
        out_shape=jax.ShapeDtypeStruct((N, H), jnp.float32),
        grid=(F // tk,),
        in_specs=[
            pl.BlockSpec((N, tk), lambda k: (0, k)),
            pl.BlockSpec((tk, H), lambda k: (k, 0)),
            pl.BlockSpec((1, H), lambda k: (0, 0)),
            pl.BlockSpec((1, H), lambda k: (0, 0)),
            pl.BlockSpec((1, H), lambda k: (0, 0)),
        ],
        out_specs=pl.BlockSpec((N, H), lambda k: (0, 0)),
        scratch_shapes=[pltpu.VMEM((N, H), jnp.float32)],
        compiler_params=pltpu.CompilerParams(
            dimension_semantics=("arbitrary",),   # reduction over K
            vmem_limit_bytes=_VMEM_LIMIT),
    )(feat, w1, b1.reshape(1, H), g1.reshape(1, H), be1.reshape(1, H))


# ---------------------------------------------------------------------------
# Kernel 3: fc2 + BN2 + ReLU, tiled over the 12544 output-feature axis
#           (BN2 is per-feature over the batch -> each column tile self-contained)
# ---------------------------------------------------------------------------
def _fc2_bn_relu_kernel(h_ref, w2_ref, b2_ref, g2_ref, be2_ref, o_ref):
    # f32 matmul (w2 streamed as bf16 from HBM, upcast in-VMEM; K=32 so compute
    # is trivial either way and this keeps BN2 inputs at f32 accuracy).
    h2 = jnp.dot(h_ref[...], w2_ref[...].astype(jnp.float32),
                 preferred_element_type=jnp.float32)
    h2 = h2 + b2_ref[...]
    # BatchNorm1d over the batch, stable two-pass per column tile
    m = jnp.mean(h2, axis=0, keepdims=True)
    v = jnp.mean(jnp.square(h2 - m), axis=0, keepdims=True)
    h2 = (h2 - m) * jax.lax.rsqrt(v + 1e-5) * g2_ref[...] + be2_ref[...]
    o_ref[...] = jnp.maximum(h2, 0.0).astype(o_ref.dtype)


def fc2_bn_relu(h, w2, b2, g2, be2, tn=1792):
    """h: (N, 32) f32.  Returns (N, 12544) bf16 in torch CHW feature order."""
    N, H = h.shape
    H2, F = w2.shape
    assert H == H2 and F % tn == 0
    return pl.pallas_call(
        _fc2_bn_relu_kernel,
        out_shape=jax.ShapeDtypeStruct((N, F), jnp.bfloat16),
        grid=(F // tn,),
        in_specs=[
            pl.BlockSpec((N, H), lambda j: (0, 0)),
            pl.BlockSpec((H, tn), lambda j: (0, j)),
            pl.BlockSpec((1, tn), lambda j: (0, j)),
            pl.BlockSpec((1, tn), lambda j: (0, j)),
            pl.BlockSpec((1, tn), lambda j: (0, j)),
        ],
        out_specs=pl.BlockSpec((N, tn), lambda j: (0, j)),
        compiler_params=pltpu.CompilerParams(
            dimension_semantics=("parallel",),    # megacore-shardable on v7x
            vmem_limit_bytes=_VMEM_LIMIT),
    )(h, w2, b2.reshape(1, F), g2.reshape(1, F), be2.reshape(1, F))


# ---------------------------------------------------------------------------
# Kernel 4: deconv phase matmul + bias + sigmoid (lane-dense output, col-tiled)
# ---------------------------------------------------------------------------
def _deconv_phase_kernel(w_ref, p_ref, b_ref, o_ref):
    acc = jnp.dot(w_ref[...], p_ref[...], preferred_element_type=jnp.float32)
    acc = acc + b_ref[...]                          # (4,1) broadcast over lanes
    o_ref[...] = jax.nn.sigmoid(acc).astype(o_ref.dtype)


def deconv_phase_matmul_sigmoid(w_t, patches_t, b, block_n=2048):
    """w_t: (4,256) bf16 phase weights.  patches_t: (256, L) bf16.
    Returns sigmoid(w_t @ patches_t + b) as (4, L) f32, tiled over L columns."""
    P4, K = w_t.shape
    K2, L = patches_t.shape
    assert K == K2
    if L <= block_n:
        tn, Lp = L, L
    else:
        tn = block_n
        Lp = _round_up(L, tn)
        if Lp != L:
            patches_t = jnp.pad(patches_t, ((0, 0), (0, Lp - L)))
    bias_col = jnp.broadcast_to(b.reshape(1, 1).astype(jnp.float32), (P4, 1))
    out = pl.pallas_call(
        _deconv_phase_kernel,
        out_shape=jax.ShapeDtypeStruct((P4, Lp), jnp.float32),
        grid=(Lp // tn,),
        in_specs=[
            pl.BlockSpec((P4, K), lambda i: (0, 0)),
            pl.BlockSpec((K, tn), lambda i: (0, i)),
            pl.BlockSpec((P4, 1), lambda i: (0, 0)),
        ],
        out_specs=pl.BlockSpec((P4, tn), lambda i: (0, i)),
        compiler_params=pltpu.CompilerParams(
            dimension_semantics=("parallel",),
            vmem_limit_bytes=_VMEM_LIMIT),
    )(w_t, patches_t, bias_col)
    return out[:, :L] if Lp != L else out


# ---------------------------------------------------------------------------
# Plain-JAX glue: im2col patch extraction (layout plumbing only, tiny data)
# ---------------------------------------------------------------------------
def im2col(x_nhwc, kh, kw, stride, pad):
    x = jnp.pad(x_nhwc, ((0, 0), (pad, pad), (pad, pad), (0, 0)))
    N, H, W, C = x.shape
    oh = (H - kh) // stride + 1
    ow = (W - kw) // stride + 1
    cols = []
    for i in range(kh):
        for j in range(kw):
            cols.append(x[:, i:i + stride * oh:stride, j:j + stride * ow:stride, :])
    patches = jnp.stack(cols, axis=3)               # (N, oh, ow, kh*kw, C)
    return patches.reshape(N * oh * ow, kh * kw * C), oh, ow


# ---------------------------------------------------------------------------
# Forward pass matching discriminator.forward
# ---------------------------------------------------------------------------
def discriminator_forward(x_nchw, params):
    p = params
    N = x_nchw.shape[0]

    # ---- conv: Conv2d(1, 64, 4, stride=2, pad=1) + ReLU  (28x28 -> 14x14x64) ----
    x = jnp.transpose(x_nchw, (0, 2, 3, 1))                       # NHWC
    cols, oh, ow = im2col(x, 4, 4, stride=2, pad=1)               # (N*196, 16)
    cols2 = cols.reshape(N * oh * ow // 2, 32)                    # free: 2 positions/row
    y = matmul_bias_act(cols2.astype(jnp.bfloat16), p["conv_w_blk"], p["conv_b2"],
                        act="relu", out_dtype=jnp.bfloat16)       # (N*98, 128) lane-dense
    feat = y.reshape(N, oh * ow * 64)                             # (N, 12544) bf16, HWC order

    # ---- fc1 -> BN -> ReLU (K-tiled, pipelined) ----
    h = fc1_bn_relu(feat, p["fc1_w"], p["fc1_b"], p["bn1_g"], p["bn1_b"])   # (N, 32) f32

    # ---- fc2 -> BN -> ReLU (F-column tiled, parallel); output in CHW order ----
    h2 = fc2_bn_relu(h, p["fc2_w"], p["fc2_b"], p["bn2_g"], p["bn2_b"])     # (N, 12544) bf16

    # ---- deconv: ConvTranspose2d(64, 1, 4, stride=2, pad=1) + Sigmoid ----
    # 4-phase subpixel decomposition:
    #   out[n, 2*oy-1+py, 2*ox-1+px] =
    #     sigmoid(b + sum_{dh,dw,ci} zpad[n, ci, oy+dh, ox+dw] * W[ci,0, 2+py-2*dh, 2+px-2*dw])
    z = h2.reshape(N, 64, oh, ow)                                 # free (torch CHW order)
    zt = jnp.transpose(z, (1, 0, 2, 3))                           # (64, N, 14, 14) one cheap transpose
    zp = jnp.pad(zt, ((0, 0), (0, 0), (1, 1), (1, 1)))            # (64, N, 16, 16)
    sh, sw = oh + 1, ow + 1                                       # 15 x 15 super-pixels
    slabs = [zp[:, :, dh:dh + sh, dw:dw + sw]                     # pure slices, no relayout
             for dh in range(2) for dw in range(2)]
    patches_t = jnp.stack(slabs, axis=0).reshape(4 * 64, N * sh * sw)   # (256, N*225)
    out_t = deconv_phase_matmul_sigmoid(p["deconv_w_ph"], patches_t, p["deconv_b"])
    # pixel shuffle: out_t rows are (py, px); cols are (n, oy, ox)
    out = out_t.reshape(2, 2, N, sh, sw)                          # (py, px, n, oy, ox)
    out = jnp.transpose(out, (2, 3, 0, 4, 1))                     # (n, oy, py, ox, px)
    out = out.reshape(N, 2 * sh, 2 * sw)                          # (N, 30, 30); row r = output row r-1
    out = out[:, 1:1 + 2 * oh, 1:1 + 2 * ow]                      # crop -> (N, 28, 28)
    return out[:, None, :, :]                                     # NCHW (N, 1, 28, 28)


# ---------------------------------------------------------------------------
# Deterministic synthetic parameters (PyTorch-layout) + one-time kernel prep
# ---------------------------------------------------------------------------
def init_params(key):
    F = 64 * 14 * 14  # 12544
    ks = jax.random.split(key, 11)
    return {
        "conv_w": 0.02 * jax.random.normal(ks[0], (64, 1, 4, 4), jnp.float32),
        "conv_b": 0.05 * jax.random.normal(ks[1], (64,), jnp.float32),
        "fc1_w": 0.02 * jax.random.normal(ks[2], (F, 32), jnp.float32),   # = torch W1.T
        "fc1_b": 0.05 * jax.random.normal(ks[3], (32,), jnp.float32),
        "bn1_g": 1.0 + 0.02 * jax.random.normal(ks[4], (32,), jnp.float32),
        "bn1_b": 0.05 * jax.random.normal(ks[5], (32,), jnp.float32),
        "fc2_w": 0.02 * jax.random.normal(ks[6], (32, F), jnp.float32),   # = torch W2.T
        "fc2_b": 0.05 * jax.random.normal(ks[7], (F,), jnp.float32),
        "bn2_g": 1.0 + 0.02 * jax.random.normal(ks[8], (F,), jnp.float32),
        "bn2_b": 0.05 * jax.random.normal(ks[9], (F,), jnp.float32),
        "deconv_w": 0.02 * jax.random.normal(ks[10], (64, 1, 4, 4), jnp.float32),
        "deconv_b": jnp.array([0.1], jnp.float32),
    }


def prepare_params(p, oh=14, ow=14):
    """One-time weight transforms: im2col/phase layouts, NCHW->NHWC feature
    permutations, bf16 casts for MXU operands (epilogue/BN params stay f32)."""
    hw = oh * ow
    q = {}
    # conv weight as an im2col matrix, rows ordered (kh, kw, in_ch); block-diagonal
    # duplicate so the kernel computes two spatial positions per (128-lane) row.
    wmat = jnp.transpose(p["conv_w"], (2, 3, 1, 0)).reshape(16, 64)
    wblk = jnp.zeros((32, 128), jnp.float32)
    wblk = wblk.at[:16, :64].set(wmat).at[16:, 64:].set(wmat)
    q["conv_w_blk"] = wblk.astype(jnp.bfloat16)
    q["conv_b2"] = jnp.concatenate([p["conv_b"], p["conv_b"]])
    # fc1: permute INPUT features from CHW-flatten (c*196+p) to HWC-flatten (p*64+c)
    q["fc1_w"] = (p["fc1_w"].reshape(64, hw, 32).transpose(1, 0, 2)
                  .reshape(64 * hw, 32).astype(jnp.bfloat16))
    q["fc1_b"] = p["fc1_b"]
    q["bn1_g"] = p["bn1_g"]
    q["bn1_b"] = p["bn1_b"]
    # fc2 / bn2: torch-native CHW output order (no permutation) -> free reshape for deconv
    q["fc2_w"] = p["fc2_w"].astype(jnp.bfloat16)
    q["fc2_b"] = p["fc2_b"]
    q["bn2_g"] = p["bn2_g"]
    q["bn2_b"] = p["bn2_b"]
    # deconv: phase weight WpT[py*2+px, (dh*2+dw)*64+ci] = W[ci, 0, 2+py-2*dh, 2+px-2*dw]
    wd = p["deconv_w"][:, 0]                                      # (64, 4, 4)
    dh = jnp.arange(2).reshape(2, 1, 1, 1, 1)
    dw = jnp.arange(2).reshape(1, 2, 1, 1, 1)
    ci = jnp.arange(64).reshape(1, 1, 64, 1, 1)
    py = jnp.arange(2).reshape(1, 1, 1, 2, 1)
    px = jnp.arange(2).reshape(1, 1, 1, 1, 2)
    wp = wd[ci, 2 + py - 2 * dh, 2 + px - 2 * dw]                 # (dh, dw, ci, py, px)
    q["deconv_w_ph"] = (jnp.transpose(wp, (3, 4, 0, 1, 2))
                        .reshape(4, 256).astype(jnp.bfloat16))
    q["deconv_b"] = p["deconv_b"]
    return q


# ---------------------------------------------------------------------------
# Pure-JAX reference with the SAME bf16-operand / f32-accumulate discipline as
# the kernels, so the comparison isolates layout / indexing bugs from the
# (intentional, documented) bf16 rounding of the kernel path.
# ---------------------------------------------------------------------------
def reference_forward(x_nchw, raw):
    N = x_nchw.shape[0]
    xb = x_nchw.astype(jnp.bfloat16)
    wcb = raw["conv_w"].astype(jnp.bfloat16)
    y = jax.lax.conv_general_dilated(
        xb, wcb, window_strides=(2, 2), padding=[(1, 1), (1, 1)],
        dimension_numbers=("NCHW", "OIHW", "NCHW"),
        preferred_element_type=jnp.float32)
    y = jnp.maximum(y + raw["conv_b"].reshape(1, 64, 1, 1), 0.0).astype(jnp.bfloat16)
    feat = y.reshape(N, -1)                                       # torch CHW flatten
    h = jnp.dot(feat, raw["fc1_w"].astype(jnp.bfloat16),
                preferred_element_type=jnp.float32) + raw["fc1_b"]
    m1 = jnp.mean(h, axis=0, keepdims=True)
    v1 = jnp.mean(jnp.square(h - m1), axis=0, keepdims=True)
    h = jnp.maximum((h - m1) * jax.lax.rsqrt(v1 + 1e-5) * raw["bn1_g"]
                    + raw["bn1_b"], 0.0)
    w2 = raw["fc2_w"].astype(jnp.bfloat16).astype(jnp.float32)
    h2 = jnp.dot(h, w2, preferred_element_type=jnp.float32) + raw["fc2_b"]
    m2 = jnp.mean(h2, axis=0, keepdims=True)
    v2 = jnp.mean(jnp.square(h2 - m2), axis=0, keepdims=True)
    h2 = jnp.maximum((h2 - m2) * jax.lax.rsqrt(v2 + 1e-5) * raw["bn2_g"]
                     + raw["bn2_b"], 0.0)
    z = h2.astype(jnp.bfloat16).reshape(N, 64, 14, 14)
    # ConvTranspose2d == lhs-dilated conv with the spatially-flipped, (I,O)-swapped kernel
    wdb = raw["deconv_w"].astype(jnp.bfloat16)                    # (ci, co, kh, kw)
    wflip = jnp.transpose(wdb, (1, 0, 2, 3))[:, :, ::-1, ::-1]    # (co, ci, kh, kw)
    o = jax.lax.conv_general_dilated(
        z, wflip, window_strides=(1, 1), padding=[(2, 2), (2, 2)],
        lhs_dilation=(2, 2),
        dimension_numbers=("NCHW", "OIHW", "NCHW"),
        preferred_element_type=jnp.float32)
    return jax.nn.sigmoid(o + raw["deconv_b"].reshape(1, 1, 1, 1))


if __name__ == "__main__":
    key = jax.random.PRNGKey(0)
    k_x, k_p = jax.random.split(key)
    x = jax.random.normal(k_x, (2, 1, 28, 28), jnp.float32)       # NCHW, like PyTorch
    raw = init_params(k_p)
    params = prepare_params(raw)

    fwd = jax.jit(discriminator_forward)
    out = jax.block_until_ready(fwd(x, params))

    assert out.shape == (2, 1, 28, 28), out.shape
    assert out.dtype == jnp.float32
    assert bool(jnp.all(jnp.isfinite(out)))
    assert bool(jnp.all((out >= 0.0) & (out <= 1.0)))             # sigmoid output range

    ref = jax.block_until_ready(jax.jit(reference_forward)(x, raw))
    err = float(jnp.max(jnp.abs(out - ref[:, :, :, :])))
    assert err < 1e-2, f"max abs diff vs reference = {err}"
    print("KERNEL_OK")
</pallas_src>

<mosaic_0001>
module attributes {stable_mosaic.version = 11 : i64} {
  func.func @_mm_bias_act_kernel(%arg0: i32, %arg1: memref<196x32xbf16, #tpu.memory_space<vmem>>, %arg2: memref<32x128xbf16, #tpu.memory_space<vmem>>, %arg3: memref<1x128xf32, #tpu.memory_space<vmem>>, %arg4: memref<196x128xbf16, #tpu.memory_space<vmem>>) attributes {dimension_semantics = [#tpu.dimension_semantics<parallel>], iteration_bounds = array<i64: 1>, scalar_prefetch = 0 : i64, scratch_operands = 0 : i64, tpu.core_type = #tpu.core_type<tc>, window_params = [{transform_indices = @transform_0, window_bounds = array<i64: 196, 32>}, {pipeline_mode = #tpu.pipeline_mode<synchronous>, transform_indices = @transform_1, window_bounds = array<i64: 32, 128>}, {pipeline_mode = #tpu.pipeline_mode<synchronous>, transform_indices = @transform_2, window_bounds = array<i64: 1, 128>}, {transform_indices = @transform_3, window_bounds = array<i64: 196, 128>}]} {
    %c0 = arith.constant 0 : index
    %c0_0 = arith.constant 0 : index
    %0 = vector.load %arg1[%c0, %c0_0] : memref<196x32xbf16, #tpu.memory_space<vmem>>, vector<196x32xbf16>
    %c0_1 = arith.constant 0 : index
    %c0_2 = arith.constant 0 : index
    %1 = vector.load %arg2[%c0_1, %c0_2] : memref<32x128xbf16, #tpu.memory_space<vmem>>, vector<32x128xbf16>
    %cst = arith.constant dense<0.000000e+00> : vector<196x128xf32>
    %2 = tpu.matmul %0, %1, %cst {dimension_numbers = #tpu.dot_dimension_numbers<[1], [0], [0], [1], [0, 0, 1, 1], [], []>} : vector<196x32xbf16>, vector<32x128xbf16>, vector<196x128xf32> -> vector<196x128xf32>
    %c0_3 = arith.constant 0 : index
    %c0_4 = arith.constant 0 : index
    %3 = vector.load %arg3[%c0_3, %c0_4] : memref<1x128xf32, #tpu.memory_space<vmem>>, vector<1x128xf32>
    %4 = vector.broadcast %3 : vector<1x128xf32> to vector<196x128xf32>
    %5 = arith.addf %2, %4 : vector<196x128xf32>
    %cst_5 = arith.constant 0.000000e+00 : f32
    %6 = vector.broadcast %cst_5 : f32 to vector<196x128xf32>
    %7 = arith.maximumf %5, %6 : vector<196x128xf32>
    %8 = arith.truncf %7 : vector<196x128xf32> to vector<196x128xbf16>
    %c0_6 = arith.constant 0 : index
    %c0_7 = arith.constant 0 : index
    %9 = vector.load %arg4[%c0_6, %c0_7] : memref<196x128xbf16, #tpu.memory_space<vmem>>, vector<196x128xbf16>
    tpu.vector_store %arg4[%c0_6, %c0_7], %8 {strides = array<i32>} : memref<196x128xbf16, #tpu.memory_space<vmem>>, vector<196x128xbf16>,
    return
  }
  func.func @transform_0(%arg0: i32) -> (i32, i32) {
    %c0_i32 = arith.constant 0 : i32
    %c0_i32_0 = arith.constant 0 : i32
    return %arg0, %c0_i32 : i32, i32
  }
  func.func @transform_1(%arg0: i32) -> (i32, i32) {
    %c0_i32 = arith.constant 0 : i32
    %c0_i32_0 = arith.constant 0 : i32
    %c0_i32_1 = arith.constant 0 : i32
    return %c0_i32, %c0_i32_0 : i32, i32
  }
  func.func @transform_2(%arg0: i32) -> (i32, i32) {
    %c0_i32 = arith.constant 0 : i32
    %c0_i32_0 = arith.constant 0 : i32
    %c0_i32_1 = arith.constant 0 : i32
    return %c0_i32, %c0_i32_0 : i32, i32
  }
  func.func @transform_3(%arg0: i32) -> (i32, i32) {
    %c0_i32 = arith.constant 0 : i32
    %c0_i32_0 = arith.constant 0 : i32
    return %arg0, %c0_i32 : i32, i32
  }
}

module attributes {stable_mosaic.version = 11 : i64} {
  func.func @_fc1_bn_relu_kernel(%arg0: i32, %arg1: memref<2x1792xbf16, #tpu.memory_space<vmem>>, %arg2: memref<1792x32xbf16, #tpu.memory_space<vmem>>, %arg3: memref<1x32xf32, #tpu.memory_space<vmem>>, %arg4: memref<1x32xf32, #tpu.memory_space<vmem>>, %arg5: memref<1x32xf32, #tpu.memory_space<vmem>>, %arg6: memref<2x32xf32, #tpu.memory_space<vmem>>, %arg7: memref<2x32xf32, #tpu.memory_space<vmem>>) attributes {dimension_semantics = [#tpu.dimension_semantics<arbitrary>], iteration_bounds = array<i64: 7>, scalar_prefetch = 0 : i64, scratch_operands = 1 : i64, tpu.core_type = #tpu.core_type<tc>, window_params = [{transform_indices = @transform_0, window_bounds = array<i64: 2, 1792>}, {transform_indices = @transform_1, window_bounds = array<i64: 1792, 32>}, {pipeline_mode = #tpu.pipeline_mode<synchronous>, transform_indices = @transform_2, window_bounds = array<i64: 1, 32>}, {pipeline_mode = #tpu.pipeline_mode<synchronous>, transform_indices = @transform_3, window_bounds = array<i64: 1, 32>}, {pipeline_mode = #tpu.pipeline_mode<synchronous>, transform_indices = @transform_4, window_bounds = array<i64: 1, 32>}, {pipeline_mode = #tpu.pipeline_mode<synchronous>, transform_indices = @transform_5, window_bounds = array<i64: 2, 32>}]} {
    %c0_i32 = arith.constant 0 : i32
    %0 = arith.cmpi eq, %arg0, %c0_i32 : i32
    %1 = arith.extui %0 : i1 to i32
    %c0_i32_0 = arith.constant 0 : i32
    %2 = arith.cmpi ne, %1, %c0_i32_0 : i32
    scf.if %2 {
      %cst_9 = arith.constant 0.000000e+00 : f32
      %12 = vector.broadcast %cst_9 : f32 to vector<2x32xf32>
      %c0_10 = arith.constant 0 : index
      %c0_11 = arith.constant 0 : index
      %13 = vector.load %arg7[%c0_10, %c0_11] : memref<2x32xf32, #tpu.memory_space<vmem>>, vector<2x32xf32>
      tpu.vector_store %arg7[%c0_10, %c0_11], %12 {strides = array<i32>} : memref<2x32xf32, #tpu.memory_space<vmem>>, vector<2x32xf32>,
    } else {
    }
    %c0 = arith.constant 0 : index
    %c0_1 = arith.constant 0 : index
    %3 = vector.load %arg7[%c0, %c0_1] : memref<2x32xf32, #tpu.memory_space<vmem>>, vector<2x32xf32>
    %c0_2 = arith.constant 0 : index
    %c0_3 = arith.constant 0 : index
    %4 = vector.load %arg1[%c0_2, %c0_3] : memref<2x1792xbf16, #tpu.memory_space<vmem>>, vector<2x1792xbf16>
    %c0_4 = arith.constant 0 : index
    %c0_5 = arith.constant 0 : index
    %5 = vector.load %arg2[%c0_4, %c0_5] : memref<1792x32xbf16, #tpu.memory_space<vmem>>, vector<1792x32xbf16>
    %cst = arith.constant dense<0.000000e+00> : vector<2x32xf32>
    %6 = tpu.matmul %4, %5, %cst {dimension_numbers = #tpu.dot_dimension_numbers<[1], [0], [0], [1], [0, 0, 1, 1], [], []>} : vector<2x1792xbf16>, vector<1792x32xbf16>, vector<2x32xf32> -> vector<2x32xf32>
    %7 = arith.addf %3, %6 : vector<2x32xf32>
    %c0_6 = arith.constant 0 : index
    %c0_7 = arith.constant 0 : index
    %8 = vector.load %arg7[%c0_6, %c0_7] : memref<2x32xf32, #tpu.memory_space<vmem>>, vector<2x32xf32>
    tpu.vector_store %arg7[%c0_6, %c0_7], %7 {strides = array<i32>} : memref<2x32xf32, #tpu.memory_space<vmem>>, vector<2x32xf32>,
    %c6_i32 = arith.constant 6 : i32
    %9 = arith.cmpi eq, %arg0, %c6_i32 : i32
    %10 = arith.extui %9 : i1 to i32
    %c0_i32_8 = arith.constant 0 : i32
    %11 = arith.cmpi ne, %10, %c0_i32_8 : i32
    scf.if %11 {
      %c0_9 = arith.constant 0 : index
      %c0_10 = arith.constant 0 : index
      %12 = vector.load %arg7[%c0_9, %c0_10] : memref<2x32xf32, #tpu.memory_space<vmem>>, vector<2x32xf32>
      %c0_11 = arith.constant 0 : index
      %c0_12 = arith.constant 0 : index
      %13 = vector.load %arg3[%c0_11, %c0_12] : memref<1x32xf32, #tpu.memory_space<vmem>>, vector<1x32xf32>
      %14 = vector.broadcast %13 : vector<1x32xf32> to vector<2x32xf32>
      %15 = arith.addf %12, %14 : vector<2x32xf32>
      %cst_13 = arith.constant dense<0.000000e+00> : vector<32xf32>
      %16 = vector.multi_reduction <add>, %15, %cst_13 [0] : vector<2x32xf32> to vector<32xf32>
      %17 = vector.shape_cast %16 : vector<32xf32> to vector<1x32xf32>
      %cst_14 = arith.constant 2.000000e+00 : f32
      %18 = vector.broadcast %cst_14 : f32 to vector<1x32xf32>
      %19 = arith.divf %17, %18 : vector<1x32xf32>
      %20 = vector.broadcast %19 : vector<1x32xf32> to vector<2x32xf32>
      %21 = arith.subf %15, %20 : vector<2x32xf32>
      %22 = arith.mulf %21, %21 : vector<2x32xf32>
      %cst_15 = arith.constant dense<0.000000e+00> : vector<32xf32>
      %23 = vector.multi_reduction <add>, %22, %cst_15 [0] : vector<2x32xf32> to vector<32xf32>
      %24 = vector.shape_cast %23 : vector<32xf32> to vector<1x32xf32>
      %cst_16 = arith.constant 2.000000e+00 : f32
      %25 = vector.broadcast %cst_16 : f32 to vector<1x32xf32>
      %26 = arith.divf %24, %25 : vector<1x32xf32>
      %27 = vector.broadcast %19 : vector<1x32xf32> to vector<2x32xf32>
      %28 = arith.subf %15, %27 : vector<2x32xf32>
      %cst_17 = arith.constant 9.99999974E-6 : f32
      %29 = vector.broadcast %cst_17 : f32 to vector<1x32xf32>
      %30 = arith.addf %26, %29 : vector<1x32xf32>
      %31 = math.rsqrt %30 : vector<1x32xf32>
      %32 = vector.broadcast %31 : vector<1x32xf32> to vector<2x32xf32>
      %33 = arith.mulf %28, %32 : vector<2x32xf32>
      %c0_18 = arith.constant 0 : index
      %c0_19 = arith.constant 0 : index
      %34 = vector.load %arg4[%c0_18, %c0_19] : memref<1x32xf32, #tpu.memory_space<vmem>>, vector<1x32xf32>
      %35 = vector.broadcast %34 : vector<1x32xf32> to vector<2x32xf32>
      %36 = arith.mulf %33, %35 : vector<2x32xf32>
      %c0_20 = arith.constant 0 : index
      %c0_21 = arith.constant 0 : index
      %37 = vector.load %arg5[%c0_20, %c0_21] : memref<1x32xf32, #tpu.memory_space<vmem>>, vector<1x32xf32>
      %38 = vector.broadcast %37 : vector<1x32xf32> to vector<2x32xf32>
      %39 = arith.addf %36, %38 : vector<2x32xf32>
      %cst_22 = arith.constant 0.000000e+00 : f32
      %40 = vector.broadcast %cst_22 : f32 to vector<2x32xf32>
      %41 = arith.maximumf %39, %40 : vector<2x32xf32>
      %c0_23 = arith.constant 0 : index
      %c0_24 = arith.constant 0 : index
      %42 = vector.load %arg6[%c0_23, %c0_24] : memref<2x32xf32, #tpu.memory_space<vmem>>, vector<2x32xf32>
      tpu.vector_store %arg6[%c0_23, %c0_24], %41 {strides = array<i32>} : memref<2x32xf32, #tpu.memory_space<vmem>>, vector<2x32xf32>,
    } else {
    }
    return
  }
  func.func @transform_0(%arg0: i32) -> (i32, i32) {
    %c0_i32 = arith.constant 0 : i32
    %c0_i32_0 = arith.constant 0 : i32
    return %c0_i32, %arg0 : i32, i32
  }
  func.func @transform_1(%arg0: i32) -> (i32, i32) {
    %c0_i32 = arith.constant 0 : i32
    %c0_i32_0 = arith.constant 0 : i32
    return %arg0, %c0_i32 : i32, i32
  }
  func.func @transform_2(%arg0: i32) -> (i32, i32) {
    %c0_i32 = arith.constant 0 : i32
    %c0_i32_0 = arith.constant 0 : i32
    %c0_i32_1 = arith.constant 0 : i32
    return %c0_i32, %c0_i32_0 : i32, i32
  }
  func.func @transform_3(%arg0: i32) -> (i32, i32) {
    %c0_i32 = arith.constant 0 : i32
    %c0_i32_0 = arith.constant 0 : i32
    %c0_i32_1 = arith.constant 0 : i32
    return %c0_i32, %c0_i32_0 : i32, i32
  }
  func.func @transform_4(%arg0: i32) -> (i32, i32) {
    %c0_i32 = arith.constant 0 : i32
    %c0_i32_0 = arith.constant 0 : i32
    %c0_i32_1 = arith.constant 0 : i32
    return %c0_i32, %c0_i32_0 : i32, i32
  }
  func.func @transform_5(%arg0: i32) -> (i32, i32) {
    %c0_i32 = arith.constant 0 : i32
    %c0_i32_0 = arith.constant 0 : i32
    %c0_i32_1 = arith.constant 0 : i32
    return %c0_i32, %c0_i32_0 : i32, i32
  }
}

module attributes {stable_mosaic.version = 11 : i64} {
  func.func @_fc2_bn_relu_kernel(%arg0: i32, %arg1: memref<2x32xf32, #tpu.memory_space<vmem>>, %arg2: memref<32x1792xbf16, #tpu.memory_space<vmem>>, %arg3: memref<1x1792xf32, #tpu.memory_space<vmem>>, %arg4: memref<1x1792xf32, #tpu.memory_space<vmem>>, %arg5: memref<1x1792xf32, #tpu.memory_space<vmem>>, %arg6: memref<2x1792xbf16, #tpu.memory_space<vmem>>) attributes {dimension_semantics = [#tpu.dimension_semantics<parallel>], iteration_bounds = array<i64: 7>, scalar_prefetch = 0 : i64, scratch_operands = 0 : i64, tpu.core_type = #tpu.core_type<tc>, window_params = [{pipeline_mode = #tpu.pipeline_mode<synchronous>, transform_indices = @transform_0, window_bounds = array<i64: 2, 32>}, {transform_indices = @transform_1, window_bounds = array<i64: 32, 1792>}, {transform_indices = @transform_2, window_bounds = array<i64: 1, 1792>}, {transform_indices = @transform_3, window_bounds = array<i64: 1, 1792>}, {transform_indices = @transform_4, window_bounds = array<i64: 1, 1792>}, {transform_indices = @transform_5, window_bounds = array<i64: 2, 1792>}]} {
    %c0 = arith.constant 0 : index
    %c0_0 = arith.constant 0 : index
    %0 = vector.load %arg1[%c0, %c0_0] : memref<2x32xf32, #tpu.memory_space<vmem>>, vector<2x32xf32>
    %c0_1 = arith.constant 0 : index
    %c0_2 = arith.constant 0 : index
    %1 = vector.load %arg2[%c0_1, %c0_2] : memref<32x1792xbf16, #tpu.memory_space<vmem>>, vector<32x1792xbf16>
    %2 = arith.extf %1 : vector<32x1792xbf16> to vector<32x1792xf32>
    %cst = arith.constant dense<0.000000e+00> : vector<2x1792xf32>
    %3 = tpu.matmul %0, %2, %cst {dimension_numbers = #tpu.dot_dimension_numbers<[1], [0], [0], [1], [0, 0, 1, 1], [], []>} : vector<2x32xf32>, vector<32x1792xf32>, vector<2x1792xf32> -> vector<2x1792xf32>
    %c0_3 = arith.constant 0 : index
    %c0_4 = arith.constant 0 : index
    %4 = vector.load %arg3[%c0_3, %c0_4] : memref<1x1792xf32, #tpu.memory_space<vmem>>, vector<1x1792xf32>
    %5 = vector.broadcast %4 : vector<1x1792xf32> to vector<2x1792xf32>
    %6 = arith.addf %3, %5 : vector<2x1792xf32>
    %cst_5 = arith.constant dense<0.000000e+00> : vector<1792xf32>
    %7 = vector.multi_reduction <add>, %6, %cst_5 [0] : vector<2x1792xf32> to vector<1792xf32>
    %8 = vector.shape_cast %7 : vector<1792xf32> to vector<1x1792xf32>
    %cst_6 = arith.constant 2.000000e+00 : f32
    %9 = vector.broadcast %cst_6 : f32 to vector<1x1792xf32>
    %10 = arith.divf %8, %9 : vector<1x1792xf32>
    %11 = vector.broadcast %10 : vector<1x1792xf32> to vector<2x1792xf32>
    %12 = arith.subf %6, %11 : vector<2x1792xf32>
    %13 = arith.mulf %12, %12 : vector<2x1792xf32>
    %cst_7 = arith.constant dense<0.000000e+00> : vector<1792xf32>
    %14 = vector.multi_reduction <add>, %13, %cst_7 [0] : vector<2x1792xf32> to vector<1792xf32>
    %15 = vector.shape_cast %14 : vector<1792xf32> to vector<1x1792xf32>
    %cst_8 = arith.constant 2.000000e+00 : f32
    %16 = vector.broadcast %cst_8 : f32 to vector<1x1792xf32>
    %17 = arith.divf %15, %16 : vector<1x1792xf32>
    %18 = vector.broadcast %10 : vector<1x1792xf32> to vector<2x1792xf32>
    %19 = arith.subf %6, %18 : vector<2x1792xf32>
    %cst_9 = arith.constant 9.99999974E-6 : f32
    %20 = vector.broadcast %cst_9 : f32 to vector<1x1792xf32>
    %21 = arith.addf %17, %20 : vector<1x1792xf32>
    %22 = math.rsqrt %21 : vector<1x1792xf32>
    %23 = vector.broadcast %22 : vector<1x1792xf32> to vector<2x1792xf32>
    %24 = arith.mulf %19, %23 : vector<2x1792xf32>
    %c0_10 = arith.constant 0 : index
    %c0_11 = arith.constant 0 : index
    %25 = vector.load %arg4[%c0_10, %c0_11] : memref<1x1792xf32, #tpu.memory_space<vmem>>, vector<1x1792xf32>
    %26 = vector.broadcast %25 : vector<1x1792xf32> to vector<2x1792xf32>
    %27 = arith.mulf %24, %26 : vector<2x1792xf32>
    %c0_12 = arith.constant 0 : index
    %c0_13 = arith.constant 0 : index
    %28 = vector.load %arg5[%c0_12, %c0_13] : memref<1x1792xf32, #tpu.memory_space<vmem>>, vector<1x1792xf32>
    %29 = vector.broadcast %28 : vector<1x1792xf32> to vector<2x1792xf32>
    %30 = arith.addf %27, %29 : vector<2x1792xf32>
    %cst_14 = arith.constant 0.000000e+00 : f32
    %31 = vector.broadcast %cst_14 : f32 to vector<2x1792xf32>
    %32 = arith.maximumf %30, %31 : vector<2x1792xf32>
    %33 = arith.truncf %32 : vector<2x1792xf32> to vector<2x1792xbf16>
    %c0_15 = arith.constant 0 : index
    %c0_16 = arith.constant 0 : index
    %34 = vector.load %arg6[%c0_15, %c0_16] : memref<2x1792xbf16, #tpu.memory_space<vmem>>, vector<2x1792xbf16>
    tpu.vector_store %arg6[%c0_15, %c0_16], %33 {strides = array<i32>} : memref<2x1792xbf16, #tpu.memory_space<vmem>>, vector<2x1792xbf16>,
    return
  }
  func.func @transform_0(%arg0: i32) -> (i32, i32) {
    %c0_i32 = arith.constant 0 : i32
    %c0_i32_0 = arith.constant 0 : i32
    %c0_i32_1 = arith.constant 0 : i32
    return %c0_i32, %c0_i32_0 : i32, i32
  }
  func.func @transform_1(%arg0: i32) -> (i32, i32) {
    %c0_i32 = arith.constant 0 : i32
    %c0_i32_0 = arith.constant 0 : i32
    return %c0_i32, %arg0 : i32, i32
  }
  func.func @transform_2(%arg0: i32) -> (i32, i32) {
    %c0_i32 = arith.constant 0 : i32
    %c0_i32_0 = arith.constant 0 : i32
    return %c0_i32, %arg0 : i32, i32
  }
  func.func @transform_3(%arg0: i32) -> (i32, i32) {
    %c0_i32 = arith.constant 0 : i32
    %c0_i32_0 = arith.constant 0 : i32
    return %c0_i32, %arg0 : i32, i32
  }
  func.func @transform_4(%arg0: i32) -> (i32, i32) {
    %c0_i32 = arith.constant 0 : i32
    %c0_i32_0 = arith.constant 0 : i32
    return %c0_i32, %arg0 : i32, i32
  }
  func.func @transform_5(%arg0: i32) -> (i32, i32) {
    %c0_i32 = arith.constant 0 : i32
    %c0_i32_0 = arith.constant 0 : i32
    return %c0_i32, %arg0 : i32, i32
  }
}

module attributes {stable_mosaic.version = 11 : i64} {
  func.func @_deconv_phase_kernel(%arg0: i32, %arg1: memref<4x256xbf16, #tpu.memory_space<vmem>>, %arg2: memref<256x450xbf16, #tpu.memory_space<vmem>>, %arg3: memref<4x1xf32, #tpu.memory_space<vmem>>, %arg4: memref<4x450xf32, #tpu.memory_space<vmem>>) attributes {dimension_semantics = [#tpu.dimension_semantics<parallel>], iteration_bounds = array<i64: 1>, scalar_prefetch = 0 : i64, scratch_operands = 0 : i64, tpu.core_type = #tpu.core_type<tc>, window_params = [{pipeline_mode = #tpu.pipeline_mode<synchronous>, transform_indices = @transform_0, window_bounds = array<i64: 4, 256>}, {transform_indices = @transform_1, window_bounds = array<i64: 256, 450>}, {pipeline_mode = #tpu.pipeline_mode<synchronous>, transform_indices = @transform_2, window_bounds = array<i64: 4, 1>}, {transform_indices = @transform_3, window_bounds = array<i64: 4, 450>}]} {
    %c0 = arith.constant 0 : index
    %c0_0 = arith.constant 0 : index
    %0 = vector.load %arg1[%c0, %c0_0] : memref<4x256xbf16, #tpu.memory_space<vmem>>, vector<4x256xbf16>
    %c0_1 = arith.constant 0 : index
    %c0_2 = arith.constant 0 : index
    %1 = vector.load %arg2[%c0_1, %c0_2] : memref<256x450xbf16, #tpu.memory_space<vmem>>, vector<256x450xbf16>
    %cst = arith.constant dense<0.000000e+00> : vector<4x450xf32>
    %2 = tpu.matmul %0, %1, %cst {dimension_numbers = #tpu.dot_dimension_numbers<[1], [0], [0], [1], [0, 0, 1, 1], [], []>} : vector<4x256xbf16>, vector<256x450xbf16>, vector<4x450xf32> -> vector<4x450xf32>
    %c0_3 = arith.constant 0 : index
    %c0_4 = arith.constant 0 : index
    %3 = vector.load %arg3[%c0_3, %c0_4] : memref<4x1xf32, #tpu.memory_space<vmem>>, vector<4x1xf32>
    %4 = vector.broadcast %3 : vector<4x1xf32> to vector<4x450xf32>
    %5 = arith.addf %2, %4 : vector<4x450xf32>
    %6 = arith.negf %5 : vector<4x450xf32>
    %7 = math.exp %6 : vector<4x450xf32>
    %cst_5 = arith.constant 1.000000e+00 : f32
    %8 = vector.broadcast %cst_5 : f32 to vector<4x450xf32>
    %9 = arith.addf %8, %7 : vector<4x450xf32>
    %10 = arith.divf %8, %9 : vector<4x450xf32>
    %c0_6 = arith.constant 0 : index
    %c0_7 = arith.constant 0 : index
    %11 = vector.load %arg4[%c0_6, %c0_7] : memref<4x450xf32, #tpu.memory_space<vmem>>, vector<4x450xf32>
    tpu.vector_store %arg4[%c0_6, %c0_7], %10 {strides = array<i32>} : memref<4x450xf32, #tpu.memory_space<vmem>>, vector<4x450xf32>,
    return
  }
  func.func @transform_0(%arg0: i32) -> (i32, i32) {
    %c0_i32 = arith.constant 0 : i32
    %c0_i32_0 = arith.constant 0 : i32
    %c0_i32_1 = arith.constant 0 : i32
    return %c0_i32, %c0_i32_0 : i32, i32
  }
  func.func @transform_1(%arg0: i32) -> (i32, i32) {
    %c0_i32 = arith.constant 0 : i32
    %c0_i32_0 = arith.constant 0 : i32
    return %c0_i32, %arg0 : i32, i32
  }
  func.func @transform_2(%arg0: i32) -> (i32, i32) {
    %c0_i32 = arith.constant 0 : i32
    %c0_i32_0 = arith.constant 0 : i32
    %c0_i32_1 = arith.constant 0 : i32
    return %c0_i32, %c0_i32_0 : i32, i32
  }
  func.func @transform_3(%arg0: i32) -> (i32, i32) {
    %c0_i32 = arith.constant 0 : i32
    %c0_i32_0 = arith.constant 0 : i32
    return %c0_i32, %arg0 : i32, i32
  }
}

</mosaic_0001>

<llo_original>
// kernel: discriminator_forward.4
$region0: #{discriminator_forward.4}
  #allocation0 [shape = 'u32[]', space=smem, size = 0x4, offset = 0x4, fixed_abs, tag = 'smem constant byte address 0x4 - core index']
  #allocation1 [shape = 'u32[72,128]{1,0:T(1,128)}', space=vmem, size = 0x9000, scoped, tag = 'internal scratch']
  %s0 = inlined_call_operand.vmem [shape: bf16[196,32], index: 0, kind: input, shape index: {}]
  %s1 = inlined_call_operand.hbm [shape: bf16[32,128], index: 1, kind: input, shape index: {}]
  %s2 = inlined_call_operand.hbm [shape: f32[1,128], index: 2, kind: input, shape index: {}]
  %s3 = inlined_call_operand.vmem [shape: bf16[196,128], index: 3, kind: output, shape index: {}]
  %s4 = sld [smem:[#allocation0]]
  $region30: #{discriminator_forward.4} parent=0
    _
  %s6 = ssub.s32 1, %s4
  %s7 = scalar_select 0, %s6, %s4
  $region1: #{discriminator_forward.4} parent=0
    #allocation2 [shape = 'u8[8192]{0}', space=vmem, size = 0x2000, scoped, tag = 'input window, operand 1, single buffered']
    #allocation3 [shape = 's32[1]{0}', space=sflag, size = 0x4, scoped, tag = 'scoped memory for discriminator_forward.4']
    #allocation4 [shape = 'u8[512]{0}', space=vmem, size = 0x400, scoped, tag = 'input window, operand 2, single buffered']
    #allocation5 [shape = 's32[1]{0}', space=sflag, size = 0x4, scoped, tag = 'scoped memory for discriminator_forward.4']
    %8 = vsyncpa [#allocation3], 0
    %9 = vsyncpa [#allocation5], 0
    // Predicated region
    $region2: #{discriminator_forward.4} parent=1 // pred_check
      _
    $region3: #{discriminator_forward.4} parent=1 // pred_check_branch
      %11 = sbr.rel (0) target = $region5
    $region4: #{discriminator_forward.4} parent=1 // pred_region
      _
    $region5: #{discriminator_forward.4} parent=1 // pred_fallthru
      _
    // Predicated region
    $region6: #{discriminator_forward.4} parent=1 // pred_check
      _
    $region7: #{discriminator_forward.4} parent=1 // pred_check_branch
      %13 = sbr.rel (0) target = $region9
    $region8: #{discriminator_forward.4} parent=1 // pred_region
      %15 = vsyncadd [#allocation3], 0
      %s16 = sshll.u32 %s1, 4
      %s17 = int_to_ptr.hbm [resolvable:$true] %s16
      %s18 = sshll.u32 [#allocation2], 4
      %s19 = int_to_ptr.vmem [resolvable:$true] %s18
      %24 = dma.hbm_to_vmem [thread:$0]  %s17, 256, %s19, [#allocation3], 64, 64, 4
    $region9: #{discriminator_forward.4} parent=1 // pred_fallthru
      _
    // Predicated region
    $region10: #{discriminator_forward.4} parent=1 // pred_check
      _
    $region11: #{discriminator_forward.4} parent=1 // pred_check_branch
      %26 = sbr.rel (0) target = $region13
    $region12: #{discriminator_forward.4} parent=1 // pred_region
      %28 = vsyncadd [#allocation5], 0
      %s30 = sshll.u32 %s2, 4
      %s31 = int_to_ptr.hbm [resolvable:$true] %s30
      %s32 = sshll.u32 [#allocation4], 4
      %s33 = int_to_ptr.vmem [resolvable:$true] %s32
      %35 = dma.hbm_to_vmem [thread:$0]  %s31, 16, %s33, [#allocation5]
    $region13: #{discriminator_forward.4} parent=1 // pred_fallthru
      _
    // Predicated region
    $region14: #{discriminator_forward.4} parent=1 // pred_check
      _
    $region15: #{discriminator_forward.4} parent=1 // pred_check_branch
      %37 = sbr.rel (0) target = $region17
    $region16: #{discriminator_forward.4} parent=1 // pred_region
      %39 = dma.done [#allocation3], 256
    $region17: #{discriminator_forward.4} parent=1 // pred_fallthru
      _
    // Predicated region
    $region18: #{discriminator_forward.4} parent=1 // pred_check
      _
    $region19: #{discriminator_forward.4} parent=1 // pred_check_branch
      %41 = sbr.rel (0) target = $region21
    $region20: #{discriminator_forward.4} parent=1 // pred_region
      %43 = dma.done [#allocation5], 16
    $region21: #{discriminator_forward.4} parent=1 // pred_fallthru
      _
    %v45 = vld [vmem:[%s0] sm:$0xf]
    %v46 = vld [vmem:[%s0 + $0x4] sm:$0xf]
    %v47 = vld [vmem:[%s0 + $0x8] sm:$0xf]
    %v48 = vld [vmem:[%s0 + $0xc] sm:$0xf]
    %v49 = vld [vmem:[%s0 + $0x10] sm:$0xf]
    %v50 = vld [vmem:[%s0 + $0x14] sm:$0xf]
    %v51 = vld [vmem:[%s0 + $0x18] sm:$0xf]
    %v52 = vld [vmem:[%s0 + $0x1c] sm:$0xf]
    %v53 = vld [vmem:[%s0 + $0x20] sm:$0xf]
    %v54 = vld [vmem:[%s0 + $0x24] sm:$0xf]
    %v55 = vld [vmem:[%s0 + $0x28] sm:$0xf]
    %v56 = vld [vmem:[%s0 + $0x2c] sm:$0xf]
    %v57 = vld [vmem:[%s0 + $0x30] sm:$0xf]
    %v58 = vld [vmem:[%s0 + $0x34] sm:$0xf]
    %v59 = vld [vmem:[%s0 + $0x38] sm:$0xf]
    %v60 = vld [vmem:[%s0 + $0x3c] sm:$0xf]
    %v61 = vld [vmem:[%s0 + $0x40] sm:$0xf]
    %v62 = vld [vmem:[%s0 + $0x44] sm:$0xf]
    %v63 = vld [vmem:[%s0 + $0x48] sm:$0xf]
    %v64 = vld [vmem:[%s0 + $0x4c] sm:$0xf]
    %v65 = vld [vmem:[%s0 + $0x50] sm:$0xf]
    %v66 = vld [vmem:[%s0 + $0x54] sm:$0xf]
    %v67 = vld [vmem:[%s0 + $0x58] sm:$0xf]
    %v68 = vld [vmem:[%s0 + $0x5c] sm:$0xf]
    %v69 = vld [vmem:[%s0 + $0x60] sm:$0x3]
    %v70 = vld [vmem:[#allocation2] sm:$0xf]
    %v71 = vld [vmem:[#allocation2 + $0x4] sm:$0xf]
    %v72 = vld [vmem:[#allocation2 + $0x8] sm:$0xf]
    %v73 = vld [vmem:[#allocation2 + $0xc] sm:$0xf]
    %v74 = vld [vmem:[#allocation4] sm:$0x1]
    %v76 = vperm.slane %v74, 0
    %v103 = vunpack.c.l.b16 %v45
    %v104 = vunpack.c.l.b16 %v46
    %v105 = vunpack.c.l.b16 %v47
    %v106 = vunpack.c.l.b16 %v48
    %v107 = vunpack.c.l.b16 %v49
    %v108 = vunpack.c.l.b16 %v50
    %v109 = vunpack.c.l.b16 %v51
    %v110 = vunpack.c.l.b16 %v52
    %v111 = vunpack.c.l.b16 %v53
    %v112 = vunpack.c.l.b16 %v54
    %v113 = vunpack.c.l.b16 %v55
    %v114 = vunpack.c.l.b16 %v56
    %v115 = vunpack.c.l.b16 %v57
    %v116 = vunpack.c.l.b16 %v58
    %v117 = vunpack.c.l.b16 %v59
    %v118 = vunpack.c.l.b16 %v60
    %v119 = vunpack.c.l.b16 %v61
    %v120 = vunpack.c.l.b16 %v62
    %v121 = vunpack.c.l.b16 %v63
    %v122 = vunpack.c.l.b16 %v64
    %v123 = vunpack.c.l.b16 %v65
    %v124 = vunpack.c.l.b16 %v66
    %v125 = vunpack.c.l.b16 %v67
    %v126 = vunpack.c.l.b16 %v68
    %v127 = vunpack.c.l.b16 %v69
    %v128 = vpack.c.b16 %v104, %v103
    %v129 = vpack.c.b16 %v106, %v105
    %v130 = vpack.c.b16 %v108, %v107
    %v131 = vpack.c.b16 %v110, %v109
    %v132 = vpack.c.b16 %v112, %v111
    %v133 = vpack.c.b16 %v114, %v113
    %v134 = vpack.c.b16 %v116, %v115
    %v135 = vpack.c.b16 %v118, %v117
    %v136 = vpack.c.b16 %v120, %v119
    %v137 = vpack.c.b16 %v122, %v121
    %v138 = vpack.c.b16 %v124, %v123
    %v139 = vpack.c.b16 %v126, %v125
    %v140 = vpack.c.b16 %v127, %v127
    %v145 = vunpack.c.l.b16 %v70
    %v146 = vunpack.c.l.b16 %v71
    %v147 = vunpack.c.l.b16 %v72
    %v148 = vunpack.c.l.b16 %v73
    %v149 = vpack.c.b16 %v146, %v145
    %v150 = vpack.c.b16 %v148, %v147
    %vm153 = vcmask 261120
    %v155 = vsel %vm153, %v128, 0
    %v158 = vsel %vm153, %v129, 0
    %v161 = vsel %vm153, %v130, 0
    %v164 = vsel %vm153, %v131, 0
    %v167 = vsel %vm153, %v132, 0
    %v170 = vsel %vm153, %v133, 0
    %v173 = vsel %vm153, %v134, 0
    %v176 = vsel %vm153, %v135, 0
    %v179 = vsel %vm153, %v136, 0
    %v182 = vsel %vm153, %v137, 0
    %v185 = vsel %vm153, %v138, 0
    %v188 = vsel %vm153, %v139, 0
    %v191 = vsel %vm153, %v140, 0
    %193 = vmatpush.bf16.msra.mxu0 0
    %194 = vmatpush.bf16.msra.mxu0 0
    %195 = vmatpush.bf16.msra.mxu0 0
    %196 = vmatpush.bf16.msra.mxu0 0
    %197 = vmatpush.bf16.msra.mxu0 0
    %198 = vmatpush.bf16.msra.mxu0 0
    %199 = vmatpush.bf16.msra.mxu0 %v150
    %200 = vmatpush.bf16.msra.mxu0 %v149
    %201 = vmatmul.bf16.gmra.mxu0 %v155
    %v202 = vpop.f32.mrf.mxu0
    %v203 = vadd.f32 %v76, %v202
    %v204 = vpop.f32.mrf.mxu0
    %v205 = vadd.f32 %v76, %v204
    %206 = vmatmul.bf16.gmra.mxu0 %v158
    %v207 = vpop.f32.mrf.mxu0
    %v208 = vadd.f32 %v76, %v207
    %v209 = vpop.f32.mrf.mxu0
    %v210 = vadd.f32 %v76, %v209
    %211 = vmatmul.bf16.gmra.mxu0 %v161
    %v212 = vpop.f32.mrf.mxu0
    %v213 = vadd.f32 %v76, %v212
    %v214 = vpop.f32.mrf.mxu0
    %v215 = vadd.f32 %v76, %v214
    %216 = vmatmul.bf16.gmra.mxu0 %v164
    %v217 = vpop.f32.mrf.mxu0
    %v218 = vadd.f32 %v76, %v217
    %v219 = vpop.f32.mrf.mxu0
    %v220 = vadd.f32 %v76, %v219
    %221 = vmatmul.bf16.gmra.mxu0 %v167
    %v222 = vpop.f32.mrf.mxu0
    %v223 = vadd.f32 %v76, %v222
    %v224 = vpop.f32.mrf.mxu0
    %v225 = vadd.f32 %v76, %v224
    %226 = vmatmul.bf16.gmra.mxu0 %v170
    %v227 = vpop.f32.mrf.mxu0
    %v228 = vadd.f32 %v76, %v227
    %v229 = vpop.f32.mrf.mxu0
    %v230 = vadd.f32 %v76, %v229
    %231 = vmatmul.bf16.gmra.mxu0 %v173
    %v232 = vpop.f32.mrf.mxu0
    %v233 = vadd.f32 %v76, %v232
    %v234 = vpop.f32.mrf.mxu0
    %v235 = vadd.f32 %v76, %v234
    %236 = vmatmul.bf16.gmra.mxu0 %v176
    %v237 = vpop.f32.mrf.mxu0
    %v238 = vadd.f32 %v76, %v237
    %v239 = vpop.f32.mrf.mxu0
    %v240 = vadd.f32 %v76, %v239
    %241 = vmatmul.bf16.gmra.mxu0 %v179
    %v242 = vpop.f32.mrf.mxu0
    %v243 = vadd.f32 %v76, %v242
    %v244 = vpop.f32.mrf.mxu0
    %v245 = vadd.f32 %v76, %v244
    %246 = vmatmul.bf16.gmra.mxu0 %v182
    %v247 = vpop.f32.mrf.mxu0
    %v248 = vadd.f32 %v76, %v247
    %v249 = vpop.f32.mrf.mxu0
    %v250 = vadd.f32 %v76, %v249
    %251 = vmatmul.bf16.gmra.mxu0 %v185
    %v252 = vpop.f32.mrf.mxu0
    %v253 = vadd.f32 %v76, %v252
    %v254 = vpop.f32.mrf.mxu0
    %v255 = vadd.f32 %v76, %v254
    %256 = vmatmul.bf16.gmra.mxu0 %v188
    %v257 = vpop.f32.mrf.mxu0
    %v258 = vadd.f32 %v76, %v257
    %v259 = vpop.f32.mrf.mxu0
    %v260 = vadd.f32 %v76, %v259
    %261 = vmatmul.bf16.gmra.mxu0 %v191
    %v262 = vpop.f32.mrf.mxu0
    %v263 = vadd.f32 %v76, %v262
    %v264 = vpop.f32.mrf.mxu0
    %265 = vdwg.mxu0
    %v266 = vmax.f32 %v203, 0.0
    %v267 = vmax.f32 %v205, 0.0
    %v268 = vmax.f32 %v208, 0.0
    %v269 = vmax.f32 %v210, 0.0
    %v270 = vmax.f32 %v213, 0.0
    %v271 = vmax.f32 %v215, 0.0
    %v272 = vmax.f32 %v218, 0.0
    %v273 = vmax.f32 %v220, 0.0
    %v274 = vmax.f32 %v223, 0.0
    %v275 = vmax.f32 %v225, 0.0
    %v276 = vmax.f32 %v228, 0.0
    %v277 = vmax.f32 %v230, 0.0
    %v278 = vmax.f32 %v233, 0.0
    %v279 = vmax.f32 %v235, 0.0
    %v280 = vmax.f32 %v238, 0.0
    %v281 = vmax.f32 %v240, 0.0
    %v282 = vmax.f32 %v243, 0.0
    %v283 = vmax.f32 %v245, 0.0
    %v284 = vmax.f32 %v248, 0.0
    %v285 = vmax.f32 %v250, 0.0
    %v286 = vmax.f32 %v253, 0.0
    %v287 = vmax.f32 %v255, 0.0
    %v288 = vmax.f32 %v258, 0.0
    %v289 = vmax.f32 %v260, 0.0
    %v290 = vmax.f32 %v263, 0.0
    %v291 = vpack.c.bf16 %v266, %v266
    %v292 = vpack.c.bf16 %v267, %v267
    %v293 = vpack.c.bf16 %v268, %v268
    %v294 = vpack.c.bf16 %v269, %v269
    %v295 = vpack.c.bf16 %v270, %v270
    %v296 = vpack.c.bf16 %v271, %v271
    %v297 = vpack.c.bf16 %v272, %v272
    %v298 = vpack.c.bf16 %v273, %v273
    %v299 = vpack.c.bf16 %v274, %v274
    %v300 = vpack.c.bf16 %v275, %v275
    %v301 = vpack.c.bf16 %v276, %v276
    %v302 = vpack.c.bf16 %v277, %v277
    %v303 = vpack.c.bf16 %v278, %v278
    %v304 = vpack.c.bf16 %v279, %v279
    %v305 = vpack.c.bf16 %v280, %v280
    %v306 = vpack.c.bf16 %v281, %v281
    %v307 = vpack.c.bf16 %v282, %v282
    %v308 = vpack.c.bf16 %v283, %v283
    %v309 = vpack.c.bf16 %v284, %v284
    %v310 = vpack.c.bf16 %v285, %v285
    %v311 = vpack.c.bf16 %v286, %v286
    %v312 = vpack.c.bf16 %v287, %v287
    %v313 = vpack.c.bf16 %v288, %v288
    %v314 = vpack.c.bf16 %v289, %v289
    %v315 = vpack.c.bf16 %v290, %v290
    %316 = vst [vmem:[%s3] sm:$0xf] %v291
    %317 = vst [vmem:[%s3 + $0x4] sm:$0xf] %v292
    %318 = vst [vmem:[%s3 + $0x8] sm:$0xf] %v293
    %319 = vst [vmem:[%s3 + $0xc] sm:$0xf] %v294
    %320 = vst [vmem:[%s3 + $0x10] sm:$0xf] %v295
    %321 = vst [vmem:[%s3 + $0x14] sm:$0xf] %v296
    %322 = vst [vmem:[%s3 + $0x18] sm:$0xf] %v297
    %323 = vst [vmem:[%s3 + $0x1c] sm:$0xf] %v298
    %324 = vst [vmem:[%s3 + $0x20] sm:$0xf] %v299
    %325 = vst [vmem:[%s3 + $0x24] sm:$0xf] %v300
    %326 = vst [vmem:[%s3 + $0x28] sm:$0xf] %v301
    %327 = vst [vmem:[%s3 + $0x2c] sm:$0xf] %v302
    %328 = vst [vmem:[%s3 + $0x30] sm:$0xf] %v303
    %329 = vst [vmem:[%s3 + $0x34] sm:$0xf] %v304
    %330 = vst [vmem:[%s3 + $0x38] sm:$0xf] %v305
    %331 = vst [vmem:[%s3 + $0x3c] sm:$0xf] %v306
    %332 = vst [vmem:[%s3 + $0x40] sm:$0xf] %v307
    %333 = vst [vmem:[%s3 + $0x44] sm:$0xf] %v308
    %334 = vst [vmem:[%s3 + $0x48] sm:$0xf] %v309
    %335 = vst [vmem:[%s3 + $0x4c] sm:$0xf] %v310
    %336 = vst [vmem:[%s3 + $0x50] sm:$0xf] %v311
    %337 = vst [vmem:[%s3 + $0x54] sm:$0xf] %v312
    %338 = vst [vmem:[%s3 + $0x58] sm:$0xf] %v313
    %339 = vst [vmem:[%s3 + $0x5c] sm:$0xf] %v314
    %340 = vst [vmem:[%s3 + $0x60] sm:$0x3] %v315
    // Predicated region
    $region22: #{discriminator_forward.4} parent=1 // pred_check
      _
    $region23: #{discriminator_forward.4} parent=1 // pred_check_branch
      %342 = sbr.rel (0) target = $region25
    $region24: #{discriminator_forward.4} parent=1 // pred_region
      _
    $region25: #{discriminator_forward.4} parent=1 // pred_fallthru
      _
    // Predicated region
    $region26: #{discriminator_forward.4} parent=1 // pred_check
      _
    $region27: #{discriminator_forward.4} parent=1 // pred_check_branch
      %344 = sbr.rel (0) target = $region29
    $region28: #{discriminator_forward.4} parent=1 // pred_region
      _
    $region29: #{discriminator_forward.4} parent=1 // pred_fallthru
      _
    %345 = vsyncpa [#allocation3], 1
    %346 = vsyncpa [#allocation5], 1

// kernel: discriminator_forward.6
$region0: #{discriminator_forward.6}
  #allocation0 [shape = 'u32[]', space=smem, size = 0x4, offset = 0x4, fixed_abs, tag = 'smem constant byte address 0x4 - core index']
  #allocation1 [shape = 'u32[72,128]{1,0:T(1,128)}', space=vmem, size = 0x9000, scoped, tag = 'internal scratch']
  %s0 = inlined_call_operand.vmem [shape: f32[2,32], index: 0, kind: input, shape index: {}]
  %s1 = inlined_call_operand.vmem [shape: bf16[32,12544], index: 1, kind: input, shape index: {}]
  %s2 = inlined_call_operand.vmem [shape: f32[1,12544], index: 2, kind: input, shape index: {}]
  %s3 = inlined_call_operand.vmem [shape: f32[1,12544], index: 3, kind: input, shape index: {}]
  %s4 = inlined_call_operand.vmem [shape: f32[1,12544], index: 4, kind: input, shape index: {}]
  %s5 = inlined_call_operand.vmem [shape: bf16[2,12544], index: 5, kind: output, shape index: {}]
  %s6 = sld [smem:[#allocation0]]
  $region76: #{discriminator_forward.6} parent=0
    _
  %s8 = ssub.s32 1, %s6
  %s9 = scalar_select 0, %s8, %s6
  $region1: #{discriminator_forward.6} parent=0
    #allocation2 [shape = 'u8[229376]{0}', space=vmem, size = 0x38000, scoped, tag = 'input window, operand 1']
    loop: start=0, step=1, limit=9
    $region2: #{discriminator_forward.6} parent=1 // loop_pre_header
      _
    $region3: #{discriminator_forward.6} parent=1 // loop_header
      %s11 = sphi 0, %s15
      %p12 = scmp.ge.s32.totalorder %s11, 9
      %s19 = sphi 0, %s19
      %s21 = sphi 0, %s19
      %s22 = sphi 0, %s21
      %s36 = sphi 0, %s22
      %s42 = sphi 0, %s44
      %s45 = sphi 0, %s42
      %s46 = sphi 0, %s45
      %s62 = sphi 0, %s46
      %s68 = sphi 0, %s70
      %s71 = sphi 0, %s68
      %s72 = sphi 0, %s71
      %s88 = sphi 0, %s72
      %s94 = sphi 0, %s96
      %s97 = sphi 0, %s94
      %s98 = sphi 0, %s97
      %s114 = sphi 0, %s98
      %s120 = sphi 0, %s122
      %s123 = sphi 0, %s120
      %s124 = sphi 0, %s123
      %s140 = sphi 0, %s124
      %s146 = sphi 0, %s148
      %s149 = sphi 0, %s146
      %s150 = sphi 0, %s149
      %s166 = sphi 0, %s150
    $region4: #{discriminator_forward.6} parent=1 // loop_header_branch
      %14 = sbr.rel (%p12) target = $region8
    $region5: #{discriminator_forward.6} parent=1 // loop_body
      %s16 = ssub.s32 %s11, 1
      %s17 = ssub.s32 %s11, 2
      %s18 = sadd.s32 %s11, 1
      %s20 = sadd.s32 %s19, 1
      %p23 = scmp.eq.s32.totalorder %s11, 6
      %p24 = scmp.ne.s32.totalorder %s19, %s21
      %p25 = scmp.eq.s32.totalorder %s11, 0
      %p26 = por %p24, %p25
      %p27 = scmp.ne.s32.totalorder %s19, %s21
      %p28 = scmp.eq.s32.totalorder %s16, 6
      %p29 = por %p27, %p28
      %p30 = scmp.ne.s32.totalorder %s21, %s22
      %p31 = scmp.eq.s32.totalorder %s16, 0
      %p32 = por %p30, %p31
      %p33 = scmp.ne.s32.totalorder %s21, %s22
      %p34 = scmp.eq.s32.totalorder %s17, 6
      %p35 = por %p33, %p34
      %p37 = scmp.ne.s32.totalorder %s22, %s36
      %p38 = scmp.eq.s32.totalorder %s17, 0
      %p39 = por %p37, %p38
      %s40 = ssub.s32 %s11, %s18
      %p41 = scmp.eq.s32.totalorder %s40, 0
      %s43 = sadd.s32 %s42, 1
      %s44 = scalar_select %p41, %s42, %s43
      %p47 = pneg %p41
      %p48 = scmp.eq.s32.totalorder %s11, 6
      %p49 = por %p47, %p48
      %p50 = scmp.ne.s32.totalorder %s42, %s45
      %p51 = scmp.eq.s32.totalorder %s11, 0
      %p52 = por %p50, %p51
      %p53 = scmp.ne.s32.totalorder %s42, %s45
      %p54 = scmp.eq.s32.totalorder %s16, 6
      %p55 = por %p53, %p54
      %p56 = scmp.ne.s32.totalorder %s45, %s46
      %p57 = scmp.eq.s32.totalorder %s16, 0
      %p58 = por %p56, %p57
      %p59 = scmp.ne.s32.totalorder %s45, %s46
      %p60 = scmp.eq.s32.totalorder %s17, 6
      %p61 = por %p59, %p60
      %p63 = scmp.ne.s32.totalorder %s46, %s62
      %p64 = scmp.eq.s32.totalorder %s17, 0
      %p65 = por %p63, %p64
      %s66 = ssub.s32 %s11, %s18
      %p67 = scmp.eq.s32.totalorder %s66, 0
      %s69 = sadd.s32 %s68, 1
      %s70 = scalar_select %p67, %s68, %s69
      %p73 = pneg %p67
      %p74 = scmp.eq.s32.totalorder %s11, 6
      %p75 = por %p73, %p74
      %p76 = scmp.ne.s32.totalorder %s68, %s71
      %p77 = scmp.eq.s32.totalorder %s11, 0
      %p78 = por %p76, %p77
      %p79 = scmp.ne.s32.totalorder %s68, %s71
      %p80 = scmp.eq.s32.totalorder %s16, 6
      %p81 = por %p79, %p80
      %p82 = scmp.ne.s32.totalorder %s71, %s72
      %p83 = scmp.eq.s32.totalorder %s16, 0
      %p84 = por %p82, %p83
      %p85 = scmp.ne.s32.totalorder %s71, %s72
      %p86 = scmp.eq.s32.totalorder %s17, 6
      %p87 = por %p85, %p86
      %p89 = scmp.ne.s32.totalorder %s72, %s88
      %p90 = scmp.eq.s32.totalorder %s17, 0
      %p91 = por %p89, %p90
      %s92 = ssub.s32 %s11, %s18
      %p93 = scmp.eq.s32.totalorder %s92, 0
      %s95 = sadd.s32 %s94, 1
      %s96 = scalar_select %p93, %s94, %s95
      %p99 = pneg %p93
      %p100 = scmp.eq.s32.totalorder %s11, 6
      %p101 = por %p99, %p100
      %p102 = scmp.ne.s32.totalorder %s94, %s97
      %p103 = scmp.eq.s32.totalorder %s11, 0
      %p104 = por %p102, %p103
      %p105 = scmp.ne.s32.totalorder %s94, %s97
      %p106 = scmp.eq.s32.totalorder %s16, 6
      %p107 = por %p105, %p106
      %p108 = scmp.ne.s32.totalorder %s97, %s98
      %p109 = scmp.eq.s32.totalorder %s16, 0
      %p110 = por %p108, %p109
      %p111 = scmp.ne.s32.totalorder %s97, %s98
      %p112 = scmp.eq.s32.totalorder %s17, 6
      %p113 = por %p111, %p112
      %p115 = scmp.ne.s32.totalorder %s98, %s114
      %p116 = scmp.eq.s32.totalorder %s17, 0
      %p117 = por %p115, %p116
      %s118 = ssub.s32 %s11, %s18
      %p119 = scmp.eq.s32.totalorder %s118, 0
      %s121 = sadd.s32 %s120, 1
      %s122 = scalar_select %p119, %s120, %s121
      %p125 = pneg %p119
      %p126 = scmp.eq.s32.totalorder %s11, 6
      %p127 = por %p125, %p126
      %p128 = scmp.ne.s32.totalorder %s120, %s123
      %p129 = scmp.eq.s32.totalorder %s11, 0
      %p130 = por %p128, %p129
      %p131 = scmp.ne.s32.totalorder %s120, %s123
      %p132 = scmp.eq.s32.totalorder %s16, 6
      %p133 = por %p131, %p132
      %p134 = scmp.ne.s32.totalorder %s123, %s124
      %p135 = scmp.eq.s32.totalorder %s16, 0
      %p136 = por %p134, %p135
      %p137 = scmp.ne.s32.totalorder %s123, %s124
      %p138 = scmp.eq.s32.totalorder %s17, 6
      %p139 = por %p137, %p138
      %p141 = scmp.ne.s32.totalorder %s124, %s140
      %p142 = scmp.eq.s32.totalorder %s17, 0
      %p143 = por %p141, %p142
      %s144 = ssub.s32 %s11, %s18
      %p145 = scmp.eq.s32.totalorder %s144, 0
      %s147 = sadd.s32 %s146, 1
      %s148 = scalar_select %p145, %s146, %s147
      %p151 = pneg %p145
      %p152 = scmp.eq.s32.totalorder %s11, 6
      %p153 = por %p151, %p152
      %p154 = scmp.ne.s32.totalorder %s146, %s149
      %p155 = scmp.eq.s32.totalorder %s11, 0
      %p156 = por %p154, %p155
      %p157 = scmp.ne.s32.totalorder %s146, %s149
      %p158 = scmp.eq.s32.totalorder %s16, 6
      %p159 = por %p157, %p158
      %p160 = scmp.ne.s32.totalorder %s149, %s150
      %p161 = scmp.eq.s32.totalorder %s16, 0
      %p162 = por %p160, %p161
      %p163 = scmp.ne.s32.totalorder %s149, %s150
      %p164 = scmp.eq.s32.totalorder %s17, 6
      %p165 = por %p163, %p164
      %p167 = scmp.ne.s32.totalorder %s150, %s166
      %p168 = scmp.eq.s32.totalorder %s17, 0
      %p169 = por %p167, %p168
      %p170 = scmp.le.s32.totalorder 1, %s11
      %p171 = scmp.lt.s32.totalorder %s11, 8
      %p172 = pnand %p170, %p171
      %p173 = pneg %p172
      // Predicated region
      $region9: #{discriminator_forward.6} parent=5 // pred_check
        _
      $region10: #{discriminator_forward.6} parent=5 // pred_check_branch
        %175 = sbr.rel (%p172) target = $region12
      $region11: #{discriminator_forward.6} parent=5 // pred_region
        %s176 = ssub.s32 %s11, 1
        // Predicated region
        $region13: #{discriminator_forward.6} parent=11 // pred_check
          %p177 = pneg %p32
        $region14: #{discriminator_forward.6} parent=11 // pred_check_branch
          %179 = sbr.rel (%p177) target = $region16
        $region15: #{discriminator_forward.6} parent=11 // pred_region
          _
        $region16: #{discriminator_forward.6} parent=11 // pred_fallthru
          _
      $region12: #{discriminator_forward.6} parent=5 // pred_fallthru
        _
      %p180 = scmp.lt.s32.totalorder %s11, 7
      // Predicated region
      $region17: #{discriminator_forward.6} parent=5 // pred_check
        %p181 = pneg %p180
      $region18: #{discriminator_forward.6} parent=5 // pred_check_branch
        %183 = sbr.rel (%p181) target = $region20
      $region19: #{discriminator_forward.6} parent=5 // pred_region
        // Predicated region
        $region21: #{discriminator_forward.6} parent=19 // pred_check
          %p184 = pneg %p52
        $region22: #{discriminator_forward.6} parent=19 // pred_check_branch
          %186 = sbr.rel (%p184) target = $region24
        $region23: #{discriminator_forward.6} parent=19 // pred_region
          %s187 = sand.u32 %s42, 1
          %s188 = sand.u32 %s42, 1
          %s189 = smul.addr %s188, 224
          %s190 = scalar_lea.vmem [#allocation2], %s189
          %s191 = smul.u32 14, %s11
          %s192 = smul.addr %s191, 4
          %s193 = scalar_lea.vmem %s1, %s192
          // Predicated region
          $region25: #{discriminator_forward.6} parent=23 // pred_check
            _
          $region26: #{discriminator_forward.6} parent=23 // pred_check_branch
            %195 = sbr.rel (0) target = $region28
          $region27: #{discriminator_forward.6} parent=23 // pred_region
            // Predicated region
            $region29: #{discriminator_forward.6} parent=27 // pred_check
              _
            $region30: #{discriminator_forward.6} parent=27 // pred_check_branch
              %197 = sbr.rel (0) target = $region32
            $region31: #{discriminator_forward.6} parent=27 // pred_region
              loop: start=0, step=1, limit=1
              $region33: #{discriminator_forward.6} parent=31 // loop_pre_header
                _
              $region34: #{discriminator_forward.6} parent=31 // loop_header
                %s199 = sphi 0, %s203
                %p200 = scmp.ge.s32.totalorder %s199, 1
                %s204 = sphi %s193, %s193
                %s205 = sphi %s190, %s190
              $region35: #{discriminator_forward.6} parent=31 // loop_header_branch
                %202 = sbr.rel (%p200) target = $region39
              $region36: #{discriminator_forward.6} parent=31 // loop_body
                %v206 = vld [vmem:[%s204] sm:$0xff]
                %207 = vst [vmem:[%s205] sm:$0xff] %v206
                %v208 = vld [vmem:[%s204 + $0x8] sm:$0xff]
                %209 = vst [vmem:[%s205 + $0x8] sm:$0xff] %v208
                %v210 = vld [vmem:[%s204 + $0x10] sm:$0xff]
                %211 = vst [vmem:[%s205 + $0x10] sm:$0xff] %v210
                %v212 = vld [vmem:[%s204 + $0x18] sm:$0xff]
                %213 = vst [vmem:[%s205 + $0x18] sm:$0xff] %v212
                %v214 = vld [vmem:[%s204 + $0x20] sm:$0xff]
                %215 = vst [vmem:[%s205 + $0x20] sm:$0xff] %v214
                %v216 = vld [vmem:[%s204 + $0x28] sm:$0xff]
                %217 = vst [vmem:[%s205 + $0x28] sm:$0xff] %v216
                %v218 = vld [vmem:[%s204 + $0x30] sm:$0xff]
                %219 = vst [vmem:[%s205 + $0x30] sm:$0xff] %v218
                %v220 = vld [vmem:[%s204 + $0x188] sm:$0xff]
                %221 = vst [vmem:[%s205 + $0x38] sm:$0xff] %v220
                %v222 = vld [vmem:[%s204 + $0x190] sm:$0xff]
                %223 = vst [vmem:[%s205 + $0x40] sm:$0xff] %v222
                %v224 = vld [vmem:[%s204 + $0x198] sm:$0xff]
                %225 = vst [vmem:[%s205 + $0x48] sm:$0xff] %v224
                %v226 = vld [vmem:[%s204 + $0x1a0] sm:$0xff]
                %227 = vst [vmem:[%s205 + $0x50] sm:$0xff] %v226
                %v228 = vld [vmem:[%s204 + $0x1a8] sm:$0xff]
                %229 = vst [vmem:[%s205 + $0x58] sm:$0xff] %v228
                %v230 = vld [vmem:[%s204 + $0x1b0] sm:$0xff]
                %231 = vst [vmem:[%s205 + $0x60] sm:$0xff] %v230
                %v232 = vld [vmem:[%s204 + $0x1b8] sm:$0xff]
                %233 = vst [vmem:[%s205 + $0x68] sm:$0xff] %v232
                %v234 = vld [vmem:[%s204 + $0x310] sm:$0xff]
                %235 = vst [vmem:[%s205 + $0x70] sm:$0xff] %v234
                %v236 = vld [vmem:[%s204 + $0x318] sm:$0xff]
                %237 = vst [vmem:[%s205 + $0x78] sm:$0xff] %v236
                %v238 = vld [vmem:[%s204 + $0x320] sm:$0xff]
                %239 = vst [vmem:[%s205 + $0x80] sm:$0xff] %v238
                %v240 = vld [vmem:[%s204 + $0x328] sm:$0xff]
                %241 = vst [vmem:[%s205 + $0x88] sm:$0xff] %v240
                %v242 = vld [vmem:[%s204 + $0x330] sm:$0xff]
                %243 = vst [vmem:[%s205 + $0x90] sm:$0xff] %v242
                %v244 = vld [vmem:[%s204 + $0x338] sm:$0xff]
                %245 = vst [vmem:[%s205 + $0x98] sm:$0xff] %v244
                %v246 = vld [vmem:[%s204 + $0x340] sm:$0xff]
                %247 = vst [vmem:[%s205 + $0xa0] sm:$0xff] %v246
                %v248 = vld [vmem:[%s204 + $0x498] sm:$0xff]
                %249 = vst [vmem:[%s205 + $0xa8] sm:$0xff] %v248
                %v250 = vld [vmem:[%s204 + $0x4a0] sm:$0xff]
                %251 = vst [vmem:[%s205 + $0xb0] sm:$0xff] %v250
                %v252 = vld [vmem:[%s204 + $0x4a8] sm:$0xff]
                %253 = vst [vmem:[%s205 + $0xb8] sm:$0xff] %v252
                %v254 = vld [vmem:[%s204 + $0x4b0] sm:$0xff]
                %255 = vst [vmem:[%s205 + $0xc0] sm:$0xff] %v254
                %v256 = vld [vmem:[%s204 + $0x4b8] sm:$0xff]
                %257 = vst [vmem:[%s205 + $0xc8] sm:$0xff] %v256
                %v258 = vld [vmem:[%s204 + $0x4c0] sm:$0xff]
                %259 = vst [vmem:[%s205 + $0xd0] sm:$0xff] %v258
                %v260 = vld [vmem:[%s204 + $0x4c8] sm:$0xff]
                %261 = vst [vmem:[%s205 + $0xd8] sm:$0xff] %v260
              $region37: #{discriminator_forward.6} parent=31 // loop_footer
                %s203 = sadd.s32 1, %s199
              $region38: #{discriminator_forward.6} parent=31 // loop_footer_branch
                %198 = sbr.rel target = $region34
              $region39: #{discriminator_forward.6} parent=31 // loop_exit
                _
            $region32: #{discriminator_forward.6} parent=27 // pred_fallthru
              _
            // Predicated region
            $region40: #{discriminator_forward.6} parent=27 // pred_check
              _
            $region41: #{discriminator_forward.6} parent=27 // pred_check_branch
              %263 = sbr.rel target = $region43
            $region42: #{discriminator_forward.6} parent=27 // pred_region
              _
            $region43: #{discriminator_forward.6} parent=27 // pred_fallthru
              _
          $region28: #{discriminator_forward.6} parent=23 // pred_fallthru
            _
          %264 = vnop
        $region24: #{discriminator_forward.6} parent=19 // pred_fallthru
          _
        // Predicated region
        $region44: #{discriminator_forward.6} parent=19 // pred_check
          %p265 = pneg %p78
        $region45: #{discriminator_forward.6} parent=19 // pred_check_branch
          %267 = sbr.rel (%p265) target = $region47
        $region46: #{discriminator_forward.6} parent=19 // pred_region
          %s268 = smul.u32 14, %s11
          %p269 = scmp.lt.s32.totalorder %s268, 97
          %s270 = scalar_select %p269, %s268, 97
          %s271 = scalar_lea.vmem %s2, %s270
          %s272 = smul.u32 14, %s11
        $region47: #{discriminator_forward.6} parent=19 // pred_fallthru
          _
        // Predicated region
        $region48: #{discriminator_forward.6} parent=19 // pred_check
          %p273 = pneg %p104
        $region49: #{discriminator_forward.6} parent=19 // pred_check_branch
          %275 = sbr.rel (%p273) target = $region51
        $region50: #{discriminator_forward.6} parent=19 // pred_region
          %s276 = smul.u32 14, %s11
          %p277 = scmp.lt.s32.totalorder %s276, 97
          %s278 = scalar_select %p277, %s276, 97
          %s279 = scalar_lea.vmem %s3, %s278
          %s280 = smul.u32 14, %s11
        $region51: #{discriminator_forward.6} parent=19 // pred_fallthru
          _
        // Predicated region
        $region52: #{discriminator_forward.6} parent=19 // pred_check
          %p281 = pneg %p130
        $region53: #{discriminator_forward.6} parent=19 // pred_check_branch
          %283 = sbr.rel (%p281) target = $region55
        $region54: #{discriminator_forward.6} parent=19 // pred_region
          %s284 = smul.u32 14, %s11
          %p285 = scmp.lt.s32.totalorder %s284, 97
          %s286 = scalar_select %p285, %s284, 97
          %s287 = scalar_lea.vmem %s4, %s286
          %s288 = smul.u32 14, %s11
        $region55: #{discriminator_forward.6} parent=19 // pred_fallthru
          _
      $region20: #{discriminator_forward.6} parent=5 // pred_fallthru
        _
      %p289 = scmp.le.s32.totalorder 1, %s11
      %p290 = scmp.lt.s32.totalorder %s11, 8
      %p291 = pnand %p289, %p290
      %p292 = pneg %p291
      // Predicated region
      $region56: #{discriminator_forward.6} parent=5 // pred_check
        _
      $region57: #{discriminator_forward.6} parent=5 // pred_check_branch
        %294 = sbr.rel (%p291) target = $region59
      $region58: #{discriminator_forward.6} parent=5 // pred_region
        %s295 = ssub.s32 %s11, 1
        %s296 = sand.u32 %s45, 1
        %s297 = sand.u32 %s45, 1
        %s298 = smul.addr %s297, 224
        %s299 = scalar_lea.vmem [#allocation2], %s298
        // Predicated region
        $region60: #{discriminator_forward.6} parent=58 // pred_check
          %p300 = pneg %p58
        $region61: #{discriminator_forward.6} parent=58 // pred_check_branch
          %302 = sbr.rel (%p300) target = $region63
        $region62: #{discriminator_forward.6} parent=58 // pred_region
          _
        $region63: #{discriminator_forward.6} parent=58 // pred_fallthru
          _
        %p303 = pneg %p32
        %p304 = pneg %p29
        %s305 = sand.u32 %s45, 1
        %s306 = sand.u32 %s45, 1
        %s307 = smul.addr %s306, 224
        %s308 = scalar_lea.vmem [#allocation2], %s307
        %p309 = pneg %p58
        %p310 = pneg %p55
        %s311 = smul.u32 14, %s16
        %p312 = scmp.lt.s32.totalorder %s311, 97
        %s313 = scalar_select %p312, %s311, 97
        %s314 = scalar_lea.vmem %s2, %s313
        %p315 = pneg %p84
        %p316 = pneg %p81
        %s317 = smul.u32 14, %s16
        %p318 = scmp.lt.s32.totalorder %s317, 97
        %s319 = scalar_select %p318, %s317, 97
        %s320 = scalar_lea.vmem %s3, %s319
        %p321 = pneg %p110
        %p322 = pneg %p107
        %s323 = smul.u32 14, %s16
        %p324 = scmp.lt.s32.totalorder %s323, 97
        %s325 = scalar_select %p324, %s323, 97
        %s326 = scalar_lea.vmem %s4, %s325
        %p327 = pneg %p136
        %p328 = pneg %p133
        %p329 = pneg %p162
        %p330 = pneg %p159
        %s331 = smul.u32 14, %s16
        %p332 = scmp.lt.s32.totalorder %s331, 97
        %s333 = scalar_select %p332, %s331, 97
        %s334 = scalar_lea.vmem %s5, %s333
        %s335 = smul.u32 14, %s16
        %s336 = smul.u32 14, %s16
        %p337 = scmp.lt.s32.totalorder %s336, 97
        %s338 = scalar_select %p337, %s336, 97
        %s339 = scalar_lea.vmem %s2, %s338
        %s340 = smul.u32 14, %s16
        %s341 = smul.u32 14, %s16
        %p342 = scmp.lt.s32.totalorder %s341, 97
        %s343 = scalar_select %p342, %s341, 97
        %s344 = scalar_lea.vmem %s3, %s343
        %s345 = smul.u32 14, %s16
        %s346 = smul.u32 14, %s16
        %p347 = scmp.lt.s32.totalorder %s346, 97
        %s348 = scalar_select %p347, %s346, 97
        %s349 = scalar_lea.vmem %s4, %s348
        %s350 = smul.u32 14, %s16
        %s351 = smul.u32 14, %s16
        %p352 = scmp.lt.s32.totalorder %s351, 97
        %s353 = scalar_select %p352, %s351, 97
        %s354 = scalar_lea.vmem %s5, %s353
        %s355 = smul.u32 14, %s16
        %v356 = vld [vmem:[%s0] sm:$0x3]
        %v357 = vld [vmem:[%s299] sm:$0xff]
        %v358 = vld [vmem:[%s299 + $0x8] sm:$0xff]
        %v359 = vld [vmem:[%s299 + $0x10] sm:$0xff]
        %v360 = vld [vmem:[%s299 + $0x18] sm:$0xff]
        %v361 = vld [vmem:[%s299 + $0x20] sm:$0xff]
        %v362 = vld [vmem:[%s299 + $0x28] sm:$0xff]
        %v363 = vld [vmem:[%s299 + $0x30] sm:$0xff]
        %v364 = vld [vmem:[%s299 + $0x38] sm:$0xff]
        %v365 = vld [vmem:[%s299 + $0x40] sm:$0xff]
        %v366 = vld [vmem:[%s299 + $0x48] sm:$0xff]
        %v367 = vld [vmem:[%s299 + $0x50] sm:$0xff]
        %v368 = vld [vmem:[%s299 + $0x58] sm:$0xff]
        %v369 = vld [vmem:[%s299 + $0x60] sm:$0xff]
        %v370 = vld [vmem:[%s299 + $0x68] sm:$0xff]
        %v371 = vld [vmem:[%s299 + $0x70] sm:$0xff]
        %v372 = vld [vmem:[%s299 + $0x78] sm:$0xff]
        %v373 = vld [vmem:[%s299 + $0x80] sm:$0xff]
        %v374 = vld [vmem:[%s299 + $0x88] sm:$0xff]
        %v375 = vld [vmem:[%s299 + $0x90] sm:$0xff]
        %v376 = vld [vmem:[%s299 + $0x98] sm:$0xff]
        %v377 = vld [vmem:[%s299 + $0xa0] sm:$0xff]
        %v378 = vld [vmem:[%s299 + $0xa8] sm:$0xff]
        %v379 = vld [vmem:[%s299 + $0xb0] sm:$0xff]
        %v380 = vld [vmem:[%s299 + $0xb8] sm:$0xff]
        %v381 = vld [vmem:[%s299 + $0xc0] sm:$0xff]
        %v382 = vld [vmem:[%s299 + $0xc8] sm:$0xff]
        %v383 = vld [vmem:[%s299 + $0xd0] sm:$0xff]
        %v384 = vld [vmem:[%s299 + $0xd8] sm:$0xff]
        %v385 = vunpack.c.l.bf16 %v357
        %v386 = vunpack.c.h.bf16 %v357
        %v387 = vunpack.c.l.bf16 %v358
        %v388 = vunpack.c.h.bf16 %v358
        %v389 = vunpack.c.l.bf16 %v359
        %v390 = vunpack.c.h.bf16 %v359
        %v391 = vunpack.c.l.bf16 %v360
        %v392 = vunpack.c.h.bf16 %v360
        %v393 = vunpack.c.l.bf16 %v361
        %v394 = vunpack.c.h.bf16 %v361
        %v395 = vunpack.c.l.bf16 %v362
        %v396 = vunpack.c.h.bf16 %v362
        %v397 = vunpack.c.l.bf16 %v363
        %v398 = vunpack.c.h.bf16 %v363
        %v399 = vunpack.c.l.bf16 %v364
        %v400 = vunpack.c.h.bf16 %v364
        %v401 = vunpack.c.l.bf16 %v365
        %v402 = vunpack.c.h.bf16 %v365
        %v403 = vunpack.c.l.bf16 %v366
        %v404 = vunpack.c.h.bf16 %v366
        %v405 = vunpack.c.l.bf16 %v367
        %v406 = vunpack.c.h.bf16 %v367
        %v407 = vunpack.c.l.bf16 %v368
        %v408 = vunpack.c.h.bf16 %v368
        %v409 = vunpack.c.l.bf16 %v369
        %v410 = vunpack.c.h.bf16 %v369
        %v411 = vunpack.c.l.bf16 %v370
        %v412 = vunpack.c.h.bf16 %v370
        %v413 = vunpack.c.l.bf16 %v371
        %v414 = vunpack.c.h.bf16 %v371
        %v415 = vunpack.c.l.bf16 %v372
        %v416 = vunpack.c.h.bf16 %v372
        %v417 = vunpack.c.l.bf16 %v373
        %v418 = vunpack.c.h.bf16 %v373
        %v419 = vunpack.c.l.bf16 %v374
        %v420 = vunpack.c.h.bf16 %v374
        %v421 = vunpack.c.l.bf16 %v375
        %v422 = vunpack.c.h.bf16 %v375
        %v423 = vunpack.c.l.bf16 %v376
        %v424 = vunpack.c.h.bf16 %v376
        %v425 = vunpack.c.l.bf16 %v377
        %v426 = vunpack.c.h.bf16 %v377
        %v427 = vunpack.c.l.bf16 %v378
        %v428 = vunpack.c.h.bf16 %v378
        %v429 = vunpack.c.l.bf16 %v379
        %v430 = vunpack.c.h.bf16 %v379
        %v431 = vunpack.c.l.bf16 %v380
        %v432 = vunpack.c.h.bf16 %v380
        %v433 = vunpack.c.l.bf16 %v381
        %v434 = vunpack.c.h.bf16 %v381
        %v435 = vunpack.c.l.bf16 %v382
        %v436 = vunpack.c.h.bf16 %v382
        %v437 = vunpack.c.l.bf16 %v383
        %v438 = vunpack.c.h.bf16 %v383
        %v439 = vunpack.c.l.bf16 %v384
        %v440 = vunpack.c.h.bf16 %v384
        %v441 = vld [vmem:[%s339] sm:$0xff]
        %v442 = vld [vmem:[%s339 + $0x8] sm:$0x3f]
        %v445 = vperm.slane %v441, 0
        %v446 = vperm.slane %v441, 1
        %v447 = vperm.slane %v441, 2
        %v448 = vperm.slane %v441, 3
        %v449 = vperm.slane %v441, 4
        %v450 = vperm.slane %v441, 5
        %v451 = vperm.slane %v441, 6
        %v452 = vperm.slane %v441, 7
        %v453 = vperm.slane %v442, 0
        %v454 = vperm.slane %v442, 1
        %v455 = vperm.slane %v442, 2
        %v456 = vperm.slane %v442, 3
        %v457 = vperm.slane %v442, 4
        %v458 = vperm.slane %v442, 5
        %vm473 = vcmask 261120
        %v475 = vsel %vm473, %v356, 0
        %477 = vmatpush.msra.mxu0 0.0
        %478 = vmatpush.msra.mxu0 0.0
        %479 = vmatpush.msra.mxu0 0.0
        %480 = vmatpush.msra.mxu0 0.0
        %481 = vmatpush.msra.mxu0 0.0
        %482 = vmatpush.msra.mxu0 0.0
        %483 = vmatpush.msra.mxu0 0.0
        %484 = vmatpush.msra.mxu0 0.0
        %485 = vmatpush.msra.mxu0 0.0
        %486 = vmatpush.msra.mxu0 0.0
        %487 = vmatpush.msra.mxu0 0.0
        %488 = vmatpush.msra.mxu0 0.0
        %489 = vmatpush.msra.mxu0 %v427
        %490 = vmatpush.msra.mxu0 %v413
        %491 = vmatpush.msra.mxu0 %v399
        %492 = vmatpush.msra.mxu0 %v385
        %493 = vmatmul.f32.gmra.mxu0 %v475
        %v494 = vpop.f32.mrf.mxu0
        %v495 = vadd.f32 %v445, %v494
        %496 = vdwg.mxu0
        %497 = vmatpush.msra.mxu0 0.0
        %498 = vmatpush.msra.mxu0 0.0
        %499 = vmatpush.msra.mxu0 0.0
        %500 = vmatpush.msra.mxu0 0.0
        %501 = vmatpush.msra.mxu0 0.0
        %502 = vmatpush.msra.mxu0 0.0
        %503 = vmatpush.msra.mxu0 0.0
        %504 = vmatpush.msra.mxu0 0.0
        %505 = vmatpush.msra.mxu0 0.0
        %506 = vmatpush.msra.mxu0 0.0
        %507 = vmatpush.msra.mxu0 0.0
        %508 = vmatpush.msra.mxu0 0.0
        %509 = vmatpush.msra.mxu0 %v428
        %510 = vmatpush.msra.mxu0 %v414
        %511 = vmatpush.msra.mxu0 %v400
        %512 = vmatpush.msra.mxu0 %v386
        %513 = vmatmul.f32.gmra.mxu0 %v475
        %v514 = vpop.f32.mrf.mxu0
        %v515 = vadd.f32 %v446, %v514
        %516 = vdwg.mxu0
        %517 = vmatpush.msra.mxu0 0.0
        %518 = vmatpush.msra.mxu0 0.0
        %519 = vmatpush.msra.mxu0 0.0
        %520 = vmatpush.msra.mxu0 0.0
        %521 = vmatpush.msra.mxu0 0.0
        %522 = vmatpush.msra.mxu0 0.0
        %523 = vmatpush.msra.mxu0 0.0
        %524 = vmatpush.msra.mxu0 0.0
        %525 = vmatpush.msra.mxu0 0.0
        %526 = vmatpush.msra.mxu0 0.0
        %527 = vmatpush.msra.mxu0 0.0
        %528 = vmatpush.msra.mxu0 0.0
        %529 = vmatpush.msra.mxu0 %v429
        %530 = vmatpush.msra.mxu0 %v415
        %531 = vmatpush.msra.mxu0 %v401
        %532 = vmatpush.msra.mxu0 %v387
        %533 = vmatmul.f32.gmra.mxu0 %v475
        %v534 = vpop.f32.mrf.mxu0
        %v535 = vadd.f32 %v447, %v534
        %536 = vdwg.mxu0
        %537 = vmatpush.msra.mxu0 0.0
        %538 = vmatpush.msra.mxu0 0.0
        %539 = vmatpush.msra.mxu0 0.0
        %540 = vmatpush.msra.mxu0 0.0
        %541 = vmatpush.msra.mxu0 0.0
        %542 = vmatpush.msra.mxu0 0.0
        %543 = vmatpush.msra.mxu0 0.0
        %544 = vmatpush.msra.mxu0 0.0
        %545 = vmatpush.msra.mxu0 0.0
        %546 = vmatpush.msra.mxu0 0.0
        %547 = vmatpush.msra.mxu0 0.0
        %548 = vmatpush.msra.mxu0 0.0
        %549 = vmatpush.msra.mxu0 %v430
        %550 = vmatpush.msra.mxu0 %v416
        %551 = vmatpush.msra.mxu0 %v402
        %552 = vmatpush.msra.mxu0 %v388
        %553 = vmatmul.f32.gmra.mxu0 %v475
        %v554 = vpop.f32.mrf.mxu0
        %v555 = vadd.f32 %v448, %v554
        %556 = vdwg.mxu0
        %557 = vmatpush.msra.mxu0 0.0
        %558 = vmatpush.msra.mxu0 0.0
        %559 = vmatpush.msra.mxu0 0.0
        %560 = vmatpush.msra.mxu0 0.0
        %561 = vmatpush.msra.mxu0 0.0
        %562 = vmatpush.msra.mxu0 0.0
        %563 = vmatpush.msra.mxu0 0.0
        %564 = vmatpush.msra.mxu0 0.0
        %565 = vmatpush.msra.mxu0 0.0
        %566 = vmatpush.msra.mxu0 0.0
        %567 = vmatpush.msra.mxu0 0.0
        %568 = vmatpush.msra.mxu0 0.0
        %569 = vmatpush.msra.mxu0 %v431
        %570 = vmatpush.msra.mxu0 %v417
        %571 = vmatpush.msra.mxu0 %v403
        %572 = vmatpush.msra.mxu0 %v389
        %573 = vmatmul.f32.gmra.mxu0 %v475
        %v574 = vpop.f32.mrf.mxu0
        %v575 = vadd.f32 %v449, %v574
        %576 = vdwg.mxu0
        %577 = vmatpush.msra.mxu0 0.0
        %578 = vmatpush.msra.mxu0 0.0
        %579 = vmatpush.msra.mxu0 0.0
        %580 = vmatpush.msra.mxu0 0.0
        %581 = vmatpush.msra.mxu0 0.0
        %582 = vmatpush.msra.mxu0 0.0
        %583 = vmatpush.msra.mxu0 0.0
        %584 = vmatpush.msra.mxu0 0.0
        %585 = vmatpush.msra.mxu0 0.0
        %586 = vmatpush.msra.mxu0 0.0
        %587 = vmatpush.msra.mxu0 0.0
        %588 = vmatpush.msra.mxu0 0.0
        %589 = vmatpush.msra.mxu0 %v432
        %590 = vmatpush.msra.mxu0 %v418
        %591 = vmatpush.msra.mxu0 %v404
        %592 = vmatpush.msra.mxu0 %v390
        %593 = vmatmul.f32.gmra.mxu0 %v475
        %v594 = vpop.f32.mrf.mxu0
        %v595 = vadd.f32 %v450, %v594
        %596 = vdwg.mxu0
        %597 = vmatpush.msra.mxu0 0.0
        %598 = vmatpush.msra.mxu0 0.0
        %599 = vmatpush.msra.mxu0 0.0
        %600 = vmatpush.msra.mxu0 0.0
        %601 = vmatpush.msra.mxu0 0.0
        %602 = vmatpush.msra.mxu0 0.0
        %603 = vmatpush.msra.mxu0 0.0
        %604 = vmatpush.msra.mxu0 0.0
        %605 = vmatpush.msra.mxu0 0.0
        %606 = vmatpush.msra.mxu0 0.0
        %607 = vmatpush.msra.mxu0 0.0
        %608 = vmatpush.msra.mxu0 0.0
        %609 = vmatpush.msra.mxu0 %v433
        %610 = vmatpush.msra.mxu0 %v419
        %611 = vmatpush.msra.mxu0 %v405
        %612 = vmatpush.msra.mxu0 %v391
        %613 = vmatmul.f32.gmra.mxu0 %v475
        %v614 = vpop.f32.mrf.mxu0
        %v615 = vadd.f32 %v451, %v614
        %616 = vdwg.mxu0
        %617 = vmatpush.msra.mxu0 0.0
        %618 = vmatpush.msra.mxu0 0.0
        %619 = vmatpush.msra.mxu0 0.0
        %620 = vmatpush.msra.mxu0 0.0
        %621 = vmatpush.msra.mxu0 0.0
        %622 = vmatpush.msra.mxu0 0.0
        %623 = vmatpush.msra.mxu0 0.0
        %624 = vmatpush.msra.mxu0 0.0
        %625 = vmatpush.msra.mxu0 0.0
        %626 = vmatpush.msra.mxu0 0.0
        %627 = vmatpush.msra.mxu0 0.0
        %628 = vmatpush.msra.mxu0 0.0
        %629 = vmatpush.msra.mxu0 %v434
        %630 = vmatpush.msra.mxu0 %v420
        %631 = vmatpush.msra.mxu0 %v406
        %632 = vmatpush.msra.mxu0 %v392
        %633 = vmatmul.f32.gmra.mxu0 %v475
        %v634 = vpop.f32.mrf.mxu0
        %v635 = vadd.f32 %v452, %v634
        %636 = vdwg.mxu0
        %637 = vmatpush.msra.mxu0 0.0
        %638 = vmatpush.msra.mxu0 0.0
        %639 = vmatpush.msra.mxu0 0.0
        %640 = vmatpush.msra.mxu0 0.0
        %641 = vmatpush.msra.mxu0 0.0
        %642 = vmatpush.msra.mxu0 0.0
        %643 = vmatpush.msra.mxu0 0.0
        %644 = vmatpush.msra.mxu0 0.0
        %645 = vmatpush.msra.mxu0 0.0
        %646 = vmatpush.msra.mxu0 0.0
        %647 = vmatpush.msra.mxu0 0.0
        %648 = vmatpush.msra.mxu0 0.0
        %649 = vmatpush.msra.mxu0 %v435
        %650 = vmatpush.msra.mxu0 %v421
        %651 = vmatpush.msra.mxu0 %v407
        %652 = vmatpush.msra.mxu0 %v393
        %653 = vmatmul.f32.gmra.mxu0 %v475
        %v654 = vpop.f32.mrf.mxu0
        %v655 = vadd.f32 %v453, %v654
        %656 = vdwg.mxu0
        %657 = vmatpush.msra.mxu0 0.0
        %658 = vmatpush.msra.mxu0 0.0
        %659 = vmatpush.msra.mxu0 0.0
        %660 = vmatpush.msra.mxu0 0.0
        %661 = vmatpush.msra.mxu0 0.0
        %662 = vmatpush.msra.mxu0 0.0
        %663 = vmatpush.msra.mxu0 0.0
        %664 = vmatpush.msra.mxu0 0.0
        %665 = vmatpush.msra.mxu0 0.0
        %666 = vmatpush.msra.mxu0 0.0
        %667 = vmatpush.msra.mxu0 0.0
        %668 = vmatpush.msra.mxu0 0.0
        %669 = vmatpush.msra.mxu0 %v436
        %670 = vmatpush.msra.mxu0 %v422
        %671 = vmatpush.msra.mxu0 %v408
        %672 = vmatpush.msra.mxu0 %v394
        %673 = vmatmul.f32.gmra.mxu0 %v475
        %v674 = vpop.f32.mrf.mxu0
        %v675 = vadd.f32 %v454, %v674
        %676 = vdwg.mxu0
        %677 = vmatpush.msra.mxu0 0.0
        %678 = vmatpush.msra.mxu0 0.0
        %679 = vmatpush.msra.mxu0 0.0
        %680 = vmatpush.msra.mxu0 0.0
        %681 = vmatpush.msra.mxu0 0.0
        %682 = vmatpush.msra.mxu0 0.0
        %683 = vmatpush.msra.mxu0 0.0
        %684 = vmatpush.msra.mxu0 0.0
        %685 = vmatpush.msra.mxu0 0.0
        %686 = vmatpush.msra.mxu0 0.0
        %687 = vmatpush.msra.mxu0 0.0
        %688 = vmatpush.msra.mxu0 0.0
        %689 = vmatpush.msra.mxu0 %v437
        %690 = vmatpush.msra.mxu0 %v423
        %691 = vmatpush.msra.mxu0 %v409
        %692 = vmatpush.msra.mxu0 %v395
        %693 = vmatmul.f32.gmra.mxu0 %v475
        %v694 = vpop.f32.mrf.mxu0
        %v695 = vadd.f32 %v455, %v694
        %696 = vdwg.mxu0
        %697 = vmatpush.msra.mxu0 0.0
        %698 = vmatpush.msra.mxu0 0.0
        %699 = vmatpush.msra.mxu0 0.0
        %700 = vmatpush.msra.mxu0 0.0
        %701 = vmatpush.msra.mxu0 0.0
        %702 = vmatpush.msra.mxu0 0.0
        %703 = vmatpush.msra.mxu0 0.0
        %704 = vmatpush.msra.mxu0 0.0
        %705 = vmatpush.msra.mxu0 0.0
        %706 = vmatpush.msra.mxu0 0.0
        %707 = vmatpush.msra.mxu0 0.0
        %708 = vmatpush.msra.mxu0 0.0
        %709 = vmatpush.msra.mxu0 %v438
        %710 = vmatpush.msra.mxu0 %v424
        %711 = vmatpush.msra.mxu0 %v410
        %712 = vmatpush.msra.mxu0 %v396
        %713 = vmatmul.f32.gmra.mxu0 %v475
        %v714 = vpop.f32.mrf.mxu0
        %v715 = vadd.f32 %v456, %v714
        %716 = vdwg.mxu0
        %717 = vmatpush.msra.mxu0 0.0
        %718 = vmatpush.msra.mxu0 0.0
        %719 = vmatpush.msra.mxu0 0.0
        %720 = vmatpush.msra.mxu0 0.0
        %721 = vmatpush.msra.mxu0 0.0
        %722 = vmatpush.msra.mxu0 0.0
        %723 = vmatpush.msra.mxu0 0.0
        %724 = vmatpush.msra.mxu0 0.0
        %725 = vmatpush.msra.mxu0 0.0
        %726 = vmatpush.msra.mxu0 0.0
        %727 = vmatpush.msra.mxu0 0.0
        %728 = vmatpush.msra.mxu0 0.0
        %729 = vmatpush.msra.mxu0 %v439
        %730 = vmatpush.msra.mxu0 %v425
        %731 = vmatpush.msra.mxu0 %v411
        %732 = vmatpush.msra.mxu0 %v397
        %733 = vmatmul.f32.gmra.mxu0 %v475
        %v734 = vpop.f32.mrf.mxu0
        %v735 = vadd.f32 %v457, %v734
        %736 = vdwg.mxu0
        %737 = vmatpush.msra.mxu0 0.0
        %738 = vmatpush.msra.mxu0 0.0
        %739 = vmatpush.msra.mxu0 0.0
        %740 = vmatpush.msra.mxu0 0.0
        %741 = vmatpush.msra.mxu0 0.0
        %742 = vmatpush.msra.mxu0 0.0
        %743 = vmatpush.msra.mxu0 0.0
        %744 = vmatpush.msra.mxu0 0.0
        %745 = vmatpush.msra.mxu0 0.0
        %746 = vmatpush.msra.mxu0 0.0
        %747 = vmatpush.msra.mxu0 0.0
        %748 = vmatpush.msra.mxu0 0.0
        %749 = vmatpush.msra.mxu0 %v440
        %750 = vmatpush.msra.mxu0 %v426
        %751 = vmatpush.msra.mxu0 %v412
        %752 = vmatpush.msra.mxu0 %v398
        %753 = vmatmul.f32.gmra.mxu0 %v475
        %v754 = vpop.f32.mrf.mxu0
        %v755 = vadd.f32 %v458, %v754
        %756 = vdwg.mxu0
        %vm757 = vcmask 1041408
        %v758 = vsel %vm757, %v495, 0.0
        %v759 = vrot.slane %v758, 4
        %v760 = vadd.f32 %v758, %v759
        %v761 = vrot.slane %v760, 2
        %v762 = vadd.f32 %v760, %v761
        %v763 = vrot.slane %v762, 1
        %v764 = vadd.f32 %v762, %v763
        %v765 = vsel %vm757, %v515, 0.0
        %v766 = vrot.slane %v765, 4
        %v767 = vadd.f32 %v765, %v766
        %v768 = vrot.slane %v767, 2
        %v769 = vadd.f32 %v767, %v768
        %v770 = vrot.slane %v769, 1
        %v771 = vadd.f32 %v769, %v770
        %v772 = vsel %vm757, %v535, 0.0
        %v773 = vrot.slane %v772, 4
        %v774 = vadd.f32 %v772, %v773
        %v775 = vrot.slane %v774, 2
        %v776 = vadd.f32 %v774, %v775
        %v777 = vrot.slane %v776, 1
        %v778 = vadd.f32 %v776, %v777
        %v779 = vsel %vm757, %v555, 0.0
        %v780 = vrot.slane %v779, 4
        %v781 = vadd.f32 %v779, %v780
        %v782 = vrot.slane %v781, 2
        %v783 = vadd.f32 %v781, %v782
        %v784 = vrot.slane %v783, 1
        %v785 = vadd.f32 %v783, %v784
        %v786 = vsel %vm757, %v575, 0.0
        %v787 = vrot.slane %v786, 4
        %v788 = vadd.f32 %v786, %v787
        %v789 = vrot.slane %v788, 2
        %v790 = vadd.f32 %v788, %v789
        %v791 = vrot.slane %v790, 1
        %v792 = vadd.f32 %v790, %v791
        %v793 = vsel %vm757, %v595, 0.0
        %v794 = vrot.slane %v793, 4
        %v795 = vadd.f32 %v793, %v794
        %v796 = vrot.slane %v795, 2
        %v797 = vadd.f32 %v795, %v796
        %v798 = vrot.slane %v797, 1
        %v799 = vadd.f32 %v797, %v798
        %v800 = vsel %vm757, %v615, 0.0
        %v801 = vrot.slane %v800, 4
        %v802 = vadd.f32 %v800, %v801
        %v803 = vrot.slane %v802, 2
        %v804 = vadd.f32 %v802, %v803
        %v805 = vrot.slane %v804, 1
        %v806 = vadd.f32 %v804, %v805
        %v807 = vsel %vm757, %v635, 0.0
        %v808 = vrot.slane %v807, 4
        %v809 = vadd.f32 %v807, %v808
        %v810 = vrot.slane %v809, 2
        %v811 = vadd.f32 %v809, %v810
        %v812 = vrot.slane %v811, 1
        %v813 = vadd.f32 %v811, %v812
        %v814 = vsel %vm757, %v655, 0.0
        %v815 = vrot.slane %v814, 4
        %v816 = vadd.f32 %v814, %v815
        %v817 = vrot.slane %v816, 2
        %v818 = vadd.f32 %v816, %v817
        %v819 = vrot.slane %v818, 1
        %v820 = vadd.f32 %v818, %v819
        %v821 = vsel %vm757, %v675, 0.0
        %v822 = vrot.slane %v821, 4
        %v823 = vadd.f32 %v821, %v822
        %v824 = vrot.slane %v823, 2
        %v825 = vadd.f32 %v823, %v824
        %v826 = vrot.slane %v825, 1
        %v827 = vadd.f32 %v825, %v826
        %v828 = vsel %vm757, %v695, 0.0
        %v829 = vrot.slane %v828, 4
        %v830 = vadd.f32 %v828, %v829
        %v831 = vrot.slane %v830, 2
        %v832 = vadd.f32 %v830, %v831
        %v833 = vrot.slane %v832, 1
        %v834 = vadd.f32 %v832, %v833
        %v835 = vsel %vm757, %v715, 0.0
        %v836 = vrot.slane %v835, 4
        %v837 = vadd.f32 %v835, %v836
        %v838 = vrot.slane %v837, 2
        %v839 = vadd.f32 %v837, %v838
        %v840 = vrot.slane %v839, 1
        %v841 = vadd.f32 %v839, %v840
        %v842 = vsel %vm757, %v735, 0.0
        %v843 = vrot.slane %v842, 4
        %v844 = vadd.f32 %v842, %v843
        %v845 = vrot.slane %v844, 2
        %v846 = vadd.f32 %v844, %v845
        %v847 = vrot.slane %v846, 1
        %v848 = vadd.f32 %v846, %v847
        %v849 = vsel %vm757, %v755, 0.0
        %v850 = vrot.slane %v849, 4
        %v851 = vadd.f32 %v849, %v850
        %v852 = vrot.slane %v851, 2
        %v853 = vadd.f32 %v851, %v852
        %v854 = vrot.slane %v853, 1
        %v855 = vadd.f32 %v853, %v854
        %v856 = vrcp.pop 2.0
        %v857 = vmul.f32 2.0, %v856
        %v858 = vsub.f32 1.0, %v857
        %v859 = vmul.f32 %v856, %v858
        %v860 = vadd.f32 %v856, %v859
        %vm861 = vweird.f32 %v856
        %v862 = vsel %vm861, %v856, %v860
        %v863 = vmul.f32 %v764, %v862
        %v864 = vmul.f32 %v771, %v862
        %v865 = vmul.f32 %v778, %v862
        %v866 = vmul.f32 %v785, %v862
        %v867 = vmul.f32 %v792, %v862
        %v868 = vmul.f32 %v799, %v862
        %v869 = vmul.f32 %v806, %v862
        %v870 = vmul.f32 %v813, %v862
        %v871 = vmul.f32 %v820, %v862
        %v872 = vmul.f32 %v827, %v862
        %v873 = vmul.f32 %v834, %v862
        %v874 = vmul.f32 %v841, %v862
        %v875 = vmul.f32 %v848, %v862
        %v876 = vmul.f32 %v855, %v862
        %v877 = vsub.f32 %v495, %v863
        %v878 = vsub.f32 %v515, %v864
        %v879 = vsub.f32 %v535, %v865
        %v880 = vsub.f32 %v555, %v866
        %v881 = vsub.f32 %v575, %v867
        %v882 = vsub.f32 %v595, %v868
        %v883 = vsub.f32 %v615, %v869
        %v884 = vsub.f32 %v635, %v870
        %v885 = vsub.f32 %v655, %v871
        %v886 = vsub.f32 %v675, %v872
        %v887 = vsub.f32 %v695, %v873
        %v888 = vsub.f32 %v715, %v874
        %v889 = vsub.f32 %v735, %v875
        %v890 = vsub.f32 %v755, %v876
        %v891 = vmul.f32 %v877, %v877
        %v892 = vmul.f32 %v878, %v878
        %v893 = vmul.f32 %v879, %v879
        %v894 = vmul.f32 %v880, %v880
        %v895 = vmul.f32 %v881, %v881
        %v896 = vmul.f32 %v882, %v882
        %v897 = vmul.f32 %v883, %v883
        %v898 = vmul.f32 %v884, %v884
        %v899 = vmul.f32 %v885, %v885
        %v900 = vmul.f32 %v886, %v886
        %v901 = vmul.f32 %v887, %v887
        %v902 = vmul.f32 %v888, %v888
        %v903 = vmul.f32 %v889, %v889
        %v904 = vmul.f32 %v890, %v890
        %v905 = vsel %vm757, %v891, 0.0
        %v906 = vrot.slane %v905, 4
        %v907 = vadd.f32 %v905, %v906
        %v908 = vrot.slane %v907, 2
        %v909 = vadd.f32 %v907, %v908
        %v910 = vrot.slane %v909, 1
        %v911 = vadd.f32 %v909, %v910
        %v912 = vsel %vm757, %v892, 0.0
        %v913 = vrot.slane %v912, 4
        %v914 = vadd.f32 %v912, %v913
        %v915 = vrot.slane %v914, 2
        %v916 = vadd.f32 %v914, %v915
        %v917 = vrot.slane %v916, 1
        %v918 = vadd.f32 %v916, %v917
        %v919 = vsel %vm757, %v893, 0.0
        %v920 = vrot.slane %v919, 4
        %v921 = vadd.f32 %v919, %v920
        %v922 = vrot.slane %v921, 2
        %v923 = vadd.f32 %v921, %v922
        %v924 = vrot.slane %v923, 1
        %v925 = vadd.f32 %v923, %v924
        %v926 = vsel %vm757, %v894, 0.0
        %v927 = vrot.slane %v926, 4
        %v928 = vadd.f32 %v926, %v927
        %v929 = vrot.slane %v928, 2
        %v930 = vadd.f32 %v928, %v929
        %v931 = vrot.slane %v930, 1
        %v932 = vadd.f32 %v930, %v931
        %v933 = vsel %vm757, %v895, 0.0
        %v934 = vrot.slane %v933, 4
        %v935 = vadd.f32 %v933, %v934
        %v936 = vrot.slane %v935, 2
        %v937 = vadd.f32 %v935, %v936
        %v938 = vrot.slane %v937, 1
        %v939 = vadd.f32 %v937, %v938
        %v940 = vsel %vm757, %v896, 0.0
        %v941 = vrot.slane %v940, 4
        %v942 = vadd.f32 %v940, %v941
        %v943 = vrot.slane %v942, 2
        %v944 = vadd.f32 %v942, %v943
        %v945 = vrot.slane %v944, 1
        %v946 = vadd.f32 %v944, %v945
        %v947 = vsel %vm757, %v897, 0.0
        %v948 = vrot.slane %v947, 4
        %v949 = vadd.f32 %v947, %v948
        %v950 = vrot.slane %v949, 2
        %v951 = vadd.f32 %v949, %v950
        %v952 = vrot.slane %v951, 1
        %v953 = vadd.f32 %v951, %v952
        %v954 = vsel %vm757, %v898, 0.0
        %v955 = vrot.slane %v954, 4
        %v956 = vadd.f32 %v954, %v955
        %v957 = vrot.slane %v956, 2
        %v958 = vadd.f32 %v956, %v957
        %v959 = vrot.slane %v958, 1
        %v960 = vadd.f32 %v958, %v959
        %v961 = vsel %vm757, %v899, 0.0
        %v962 = vrot.slane %v961, 4
        %v963 = vadd.f32 %v961, %v962
        %v964 = vrot.slane %v963, 2
        %v965 = vadd.f32 %v963, %v964
        %v966 = vrot.slane %v965, 1
        %v967 = vadd.f32 %v965, %v966
        %v968 = vsel %vm757, %v900, 0.0
        %v969 = vrot.slane %v968, 4
        %v970 = vadd.f32 %v968, %v969
        %v971 = vrot.slane %v970, 2
        %v972 = vadd.f32 %v970, %v971
        %v973 = vrot.slane %v972, 1
        %v974 = vadd.f32 %v972, %v973
        %v975 = vsel %vm757, %v901, 0.0
        %v976 = vrot.slane %v975, 4
        %v977 = vadd.f32 %v975, %v976
        %v978 = vrot.slane %v977, 2
        %v979 = vadd.f32 %v977, %v978
        %v980 = vrot.slane %v979, 1
        %v981 = vadd.f32 %v979, %v980
        %v982 = vsel %vm757, %v902, 0.0
        %v983 = vrot.slane %v982, 4
        %v984 = vadd.f32 %v982, %v983
        %v985 = vrot.slane %v984, 2
        %v986 = vadd.f32 %v984, %v985
        %v987 = vrot.slane %v986, 1
        %v988 = vadd.f32 %v986, %v987
        %v989 = vsel %vm757, %v903, 0.0
        %v990 = vrot.slane %v989, 4
        %v991 = vadd.f32 %v989, %v990
        %v992 = vrot.slane %v991, 2
        %v993 = vadd.f32 %v991, %v992
        %v994 = vrot.slane %v993, 1
        %v995 = vadd.f32 %v993, %v994
        %v996 = vsel %vm757, %v904, 0.0
        %v997 = vrot.slane %v996, 4
        %v998 = vadd.f32 %v996, %v997
        %v999 = vrot.slane %v998, 2
        %v1000 = vadd.f32 %v998, %v999
        %v1001 = vrot.slane %v1000, 1
        %v1002 = vadd.f32 %v1000, %v1001
        %v1003 = vmul.f32 %v911, %v862
        %v1004 = vmul.f32 %v918, %v862
        %v1005 = vmul.f32 %v925, %v862
        %v1006 = vmul.f32 %v932, %v862
        %v1007 = vmul.f32 %v939, %v862
        %v1008 = vmul.f32 %v946, %v862
        %v1009 = vmul.f32 %v953, %v862
        %v1010 = vmul.f32 %v960, %v862
        %v1011 = vmul.f32 %v967, %v862
        %v1012 = vmul.f32 %v974, %v862
        %v1013 = vmul.f32 %v981, %v862
        %v1014 = vmul.f32 %v988, %v862
        %v1015 = vmul.f32 %v995, %v862
        %v1016 = vmul.f32 %v1002, %v862
        %v1017 = vadd.f32 %v1003, 1e-05
        %v1018 = vadd.f32 %v1004, 1e-05
        %v1019 = vadd.f32 %v1005, 1e-05
        %v1020 = vadd.f32 %v1006, 1e-05
        %v1021 = vadd.f32 %v1007, 1e-05
        %v1022 = vadd.f32 %v1008, 1e-05
        %v1023 = vadd.f32 %v1009, 1e-05
        %v1024 = vadd.f32 %v1010, 1e-05
        %v1025 = vadd.f32 %v1011, 1e-05
        %v1026 = vadd.f32 %v1012, 1e-05
        %v1027 = vadd.f32 %v1013, 1e-05
        %v1028 = vadd.f32 %v1014, 1e-05
        %v1029 = vadd.f32 %v1015, 1e-05
        %v1030 = vadd.f32 %v1016, 1e-05
        %v1031 = vrsqrt.pop %v1017
        %v1032 = vmul.f32 %v1031, %v1017
        %v1033 = vmul.f32 %v1032, %v1031
        %v1034 = vmul.f32 0.5, %v1033
        %v1035 = vsub.f32 1.5, %v1034
        %v1036 = vmul.f32 %v1031, %v1035
        %vm1037 = vweird.f32 %v1017
        %vm1038 = vweird.f32 %v1031
        %vm1039 = vmor %vm1037, %vm1038
        %v1040 = vsel %vm1039, %v1031, %v1036
        %v1041 = vrsqrt.pop %v1018
        %v1042 = vmul.f32 %v1041, %v1018
        %v1043 = vmul.f32 %v1042, %v1041
        %v1044 = vmul.f32 0.5, %v1043
        %v1045 = vsub.f32 1.5, %v1044
        %v1046 = vmul.f32 %v1041, %v1045
        %vm1047 = vweird.f32 %v1018
        %vm1048 = vweird.f32 %v1041
        %vm1049 = vmor %vm1047, %vm1048
        %v1050 = vsel %vm1049, %v1041, %v1046
        %v1051 = vrsqrt.pop %v1019
        %v1052 = vmul.f32 %v1051, %v1019
        %v1053 = vmul.f32 %v1052, %v1051
        %v1054 = vmul.f32 0.5, %v1053
        %v1055 = vsub.f32 1.5, %v1054
        %v1056 = vmul.f32 %v1051, %v1055
        %vm1057 = vweird.f32 %v1019
        %vm1058 = vweird.f32 %v1051
        %vm1059 = vmor %vm1057, %vm1058
        %v1060 = vsel %vm1059, %v1051, %v1056
        %v1061 = vrsqrt.pop %v1020
        %v1062 = vmul.f32 %v1061, %v1020
        %v1063 = vmul.f32 %v1062, %v1061
        %v1064 = vmul.f32 0.5, %v1063
        %v1065 = vsub.f32 1.5, %v1064
        %v1066 = vmul.f32 %v1061, %v1065
        %vm1067 = vweird.f32 %v1020
        %vm1068 = vweird.f32 %v1061
        %vm1069 = vmor %vm1067, %vm1068
        %v1070 = vsel %vm1069, %v1061, %v1066
        %v1071 = vrsqrt.pop %v1021
        %v1072 = vmul.f32 %v1071, %v1021
        %v1073 = vmul.f32 %v1072, %v1071
        %v1074 = vmul.f32 0.5, %v1073
        %v1075 = vsub.f32 1.5, %v1074
        %v1076 = vmul.f32 %v1071, %v1075
        %vm1077 = vweird.f32 %v1021
        %vm1078 = vweird.f32 %v1071
        %vm1079 = vmor %vm1077, %vm1078
        %v1080 = vsel %vm1079, %v1071, %v1076
        %v1081 = vrsqrt.pop %v1022
        %v1082 = vmul.f32 %v1081, %v1022
        %v1083 = vmul.f32 %v1082, %v1081
        %v1084 = vmul.f32 0.5, %v1083
        %v1085 = vsub.f32 1.5, %v1084
        %v1086 = vmul.f32 %v1081, %v1085
        %vm1087 = vweird.f32 %v1022
        %vm1088 = vweird.f32 %v1081
        %vm1089 = vmor %vm1087, %vm1088
        %v1090 = vsel %vm1089, %v1081, %v1086
        %v1091 = vrsqrt.pop %v1023
        %v1092 = vmul.f32 %v1091, %v1023
        %v1093 = vmul.f32 %v1092, %v1091
        %v1094 = vmul.f32 0.5, %v1093
        %v1095 = vsub.f32 1.5, %v1094
        %v1096 = vmul.f32 %v1091, %v1095
        %vm1097 = vweird.f32 %v1023
        %vm1098 = vweird.f32 %v1091
        %vm1099 = vmor %vm1097, %vm1098
        %v1100 = vsel %vm1099, %v1091, %v1096
        %v1101 = vrsqrt.pop %v1024
        %v1102 = vmul.f32 %v1101, %v1024
        %v1103 = vmul.f32 %v1102, %v1101
        %v1104 = vmul.f32 0.5, %v1103
        %v1105 = vsub.f32 1.5, %v1104
        %v1106 = vmul.f32 %v1101, %v1105
        %vm1107 = vweird.f32 %v1024
        %vm1108 = vweird.f32 %v1101
        %vm1109 = vmor %vm1107, %vm1108
        %v1110 = vsel %vm1109, %v1101, %v1106
        %v1111 = vrsqrt.pop %v1025
        %v1112 = vmul.f32 %v1111, %v1025
        %v1113 = vmul.f32 %v1112, %v1111
        %v1114 = vmul.f32 0.5, %v1113
        %v1115 = vsub.f32 1.5, %v1114
        %v1116 = vmul.f32 %v1111, %v1115
        %vm1117 = vweird.f32 %v1025
        %vm1118 = vweird.f32 %v1111
        %vm1119 = vmor %vm1117, %vm1118
        %v1120 = vsel %vm1119, %v1111, %v1116
        %v1121 = vrsqrt.pop %v1026
        %v1122 = vmul.f32 %v1121, %v1026
        %v1123 = vmul.f32 %v1122, %v1121
        %v1124 = vmul.f32 0.5, %v1123
        %v1125 = vsub.f32 1.5, %v1124
        %v1126 = vmul.f32 %v1121, %v1125
        %vm1127 = vweird.f32 %v1026
        %vm1128 = vweird.f32 %v1121
        %vm1129 = vmor %vm1127, %vm1128
        %v1130 = vsel %vm1129, %v1121, %v1126
        %v1131 = vrsqrt.pop %v1027
        %v1132 = vmul.f32 %v1131, %v1027
        %v1133 = vmul.f32 %v1132, %v1131
        %v1134 = vmul.f32 0.5, %v1133
        %v1135 = vsub.f32 1.5, %v1134
        %v1136 = vmul.f32 %v1131, %v1135
        %vm1137 = vweird.f32 %v1027
        %vm1138 = vweird.f32 %v1131
        %vm1139 = vmor %vm1137, %vm1138
        %v1140 = vsel %vm1139, %v1131, %v1136
        %v1141 = vrsqrt.pop %v1028
        %v1142 = vmul.f32 %v1141, %v1028
        %v1143 = vmul.f32 %v1142, %v1141
        %v1144 = vmul.f32 0.5, %v1143
        %v1145 = vsub.f32 1.5, %v1144
        %v1146 = vmul.f32 %v1141, %v1145
        %vm1147 = vweird.f32 %v1028
        %vm1148 = vweird.f32 %v1141
        %vm1149 = vmor %vm1147, %vm1148
        %v1150 = vsel %vm1149, %v1141, %v1146
        %v1151 = vrsqrt.pop %v1029
        %v1152 = vmul.f32 %v1151, %v1029
        %v1153 = vmul.f32 %v1152, %v1151
        %v1154 = vmul.f32 0.5, %v1153
        %v1155 = vsub.f32 1.5, %v1154
        %v1156 = vmul.f32 %v1151, %v1155
        %vm1157 = vweird.f32 %v1029
        %vm1158 = vweird.f32 %v1151
        %vm1159 = vmor %vm1157, %vm1158
        %v1160 = vsel %vm1159, %v1151, %v1156
        %v1161 = vrsqrt.pop %v1030
        %v1162 = vmul.f32 %v1161, %v1030
        %v1163 = vmul.f32 %v1162, %v1161
        %v1164 = vmul.f32 0.5, %v1163
        %v1165 = vsub.f32 1.5, %v1164
        %v1166 = vmul.f32 %v1161, %v1165
        %vm1167 = vweird.f32 %v1030
        %vm1168 = vweird.f32 %v1161
        %vm1169 = vmor %vm1167, %vm1168
        %v1170 = vsel %vm1169, %v1161, %v1166
        %v1171 = vmul.f32 %v877, %v1040
        %v1172 = vmul.f32 %v878, %v1050
        %v1173 = vmul.f32 %v879, %v1060
        %v1174 = vmul.f32 %v880, %v1070
        %v1175 = vmul.f32 %v881, %v1080
        %v1176 = vmul.f32 %v882, %v1090
        %v1177 = vmul.f32 %v883, %v1100
        %v1178 = vmul.f32 %v884, %v1110
        %v1179 = vmul.f32 %v885, %v1120
        %v1180 = vmul.f32 %v886, %v1130
        %v1181 = vmul.f32 %v887, %v1140
        %v1182 = vmul.f32 %v888, %v1150
        %v1183 = vmul.f32 %v889, %v1160
        %v1184 = vmul.f32 %v890, %v1170
        %v1185 = vld [vmem:[%s344] sm:$0xff]
        %v1186 = vld [vmem:[%s344 + $0x8] sm:$0x3f]
        %v1189 = vperm.slane %v1185, 0
        %v1190 = vperm.slane %v1185, 1
        %v1191 = vperm.slane %v1185, 2
        %v1192 = vperm.slane %v1185, 3
        %v1193 = vperm.slane %v1185, 4
        %v1194 = vperm.slane %v1185, 5
        %v1195 = vperm.slane %v1185, 6
        %v1196 = vperm.slane %v1185, 7
        %v1197 = vperm.slane %v1186, 0
        %v1198 = vperm.slane %v1186, 1
        %v1199 = vperm.slane %v1186, 2
        %v1200 = vperm.slane %v1186, 3
        %v1201 = vperm.slane %v1186, 4
        %v1202 = vperm.slane %v1186, 5
        %v1217 = vmul.f32 %v1171, %v1189
        %v1218 = vmul.f32 %v1172, %v1190
        %v1219 = vmul.f32 %v1173, %v1191
        %v1220 = vmul.f32 %v1174, %v1192
        %v1221 = vmul.f32 %v1175, %v1193
        %v1222 = vmul.f32 %v1176, %v1194
        %v1223 = vmul.f32 %v1177, %v1195
        %v1224 = vmul.f32 %v1178, %v1196
        %v1225 = vmul.f32 %v1179, %v1197
        %v1226 = vmul.f32 %v1180, %v1198
        %v1227 = vmul.f32 %v1181, %v1199
        %v1228 = vmul.f32 %v1182, %v1200
        %v1229 = vmul.f32 %v1183, %v1201
        %v1230 = vmul.f32 %v1184, %v1202
        %v1231 = vld [vmem:[%s349] sm:$0xff]
        %v1232 = vld [vmem:[%s349 + $0x8] sm:$0x3f]
        %v1235 = vperm.slane %v1231, 0
        %v1236 = vperm.slane %v1231, 1
        %v1237 = vperm.slane %v1231, 2
        %v1238 = vperm.slane %v1231, 3
        %v1239 = vperm.slane %v1231, 4
        %v1240 = vperm.slane %v1231, 5
        %v1241 = vperm.slane %v1231, 6
        %v1242 = vperm.slane %v1231, 7
        %v1243 = vperm.slane %v1232, 0
        %v1244 = vperm.slane %v1232, 1
        %v1245 = vperm.slane %v1232, 2
        %v1246 = vperm.slane %v1232, 3
        %v1247 = vperm.slane %v1232, 4
        %v1248 = vperm.slane %v1232, 5
        %v1263 = vadd.f32 %v1217, %v1235
        %v1264 = vadd.f32 %v1218, %v1236
        %v1265 = vadd.f32 %v1219, %v1237
        %v1266 = vadd.f32 %v1220, %v1238
        %v1267 = vadd.f32 %v1221, %v1239
        %v1268 = vadd.f32 %v1222, %v1240
        %v1269 = vadd.f32 %v1223, %v1241
        %v1270 = vadd.f32 %v1224, %v1242
        %v1271 = vadd.f32 %v1225, %v1243
        %v1272 = vadd.f32 %v1226, %v1244
        %v1273 = vadd.f32 %v1227, %v1245
        %v1274 = vadd.f32 %v1228, %v1246
        %v1275 = vadd.f32 %v1229, %v1247
        %v1276 = vadd.f32 %v1230, %v1248
        %v1277 = vmax.f32 %v1263, 0.0
        %v1278 = vmax.f32 %v1264, 0.0
        %v1279 = vmax.f32 %v1265, 0.0
        %v1280 = vmax.f32 %v1266, 0.0
        %v1281 = vmax.f32 %v1267, 0.0
        %v1282 = vmax.f32 %v1268, 0.0
        %v1283 = vmax.f32 %v1269, 0.0
        %v1284 = vmax.f32 %v1270, 0.0
        %v1285 = vmax.f32 %v1271, 0.0
        %v1286 = vmax.f32 %v1272, 0.0
        %v1287 = vmax.f32 %v1273, 0.0
        %v1288 = vmax.f32 %v1274, 0.0
        %v1289 = vmax.f32 %v1275, 0.0
        %v1290 = vmax.f32 %v1276, 0.0
        %v1291 = vpack.c.bf16 %v1278, %v1277
        %v1292 = vpack.c.bf16 %v1280, %v1279
        %v1293 = vpack.c.bf16 %v1282, %v1281
        %v1294 = vpack.c.bf16 %v1284, %v1283
        %v1295 = vpack.c.bf16 %v1286, %v1285
        %v1296 = vpack.c.bf16 %v1288, %v1287
        %v1297 = vpack.c.bf16 %v1290, %v1289
        %v1305 = vrot.slane %v1291, 3
        %v1306 = vrot.slane %v1292, 6
        %v1307 = vrot.slane %v1292, 1
        %v1308 = vrot.slane %v1293, 4
        %v1309 = vrot.slane %v1293, 7
        %v1310 = vrot.slane %v1294, 2
        %v1311 = vrot.slane %v1294, 5
        %v1312 = vrot.slane %v1295, 3
        %v1313 = vrot.slane %v1296, 6
        %v1314 = vrot.slane %v1296, 1
        %v1315 = vrot.slane %v1297, 4
        %v1316 = vrot.slane %v1297, 7
        %vm1317 = vcmask 1040384
        %v1320 = vsel %vm1317, %v1291, %v1305
        %vm1321 = vcmask 1042434
        %v1324 = vsel %vm1321, %v1306, %v1307
        %v1325 = vsel %vm757, %v1320, %v1324
        %vm1326 = vcmask 1044484
        %v1329 = vsel %vm1326, %v1308, %v1309
        %vm1330 = vcmask 1046534
        %v1333 = vsel %vm1330, %v1310, %v1311
        %vm1334 = vcmask 1045508
        %v1335 = vsel %vm1334, %v1329, %v1333
        %vm1336 = vcmask 1043456
        %v1337 = vsel %vm1336, %v1325, %v1335
        %v1340 = vsel %vm1317, %v1295, %v1312
        %v1342 = vsel %vm757, %v1340, %v1313
        %vm1343 = vcmask 1043459
        %v1346 = vsel %vm1343, %v1314, %v1315
        %vm1347 = vcmask 1044483
        %v1349 = vsel %vm1347, %v1346, %v1316
        %vm1350 = vcmask 1042432
        %v1351 = vsel %vm1350, %v1342, %v1349
        %1354 = vst [vmem:[%s354] sm:$0xff] %v1337
        %1355 = vst [vmem:[%s354 + $0x8] sm:$0x3f] %v1351
        %s1356 = smul.u32 14, %s16
        %p1357 = scmp.lt.s32.totalorder %s1356, 97
        %s1358 = scalar_select %p1357, %s1356, 97
        %s1359 = scalar_lea.vmem %s5, %s1358
        // Predicated region
        $region64: #{discriminator_forward.6} parent=58 // pred_check
          %p1360 = pneg %p159
        $region65: #{discriminator_forward.6} parent=58 // pred_check_branch
          %1362 = sbr.rel (%p1360) target = $region67
        $region66: #{discriminator_forward.6} parent=58 // pred_region
          %s1363 = smul.u32 14, %s16
        $region67: #{discriminator_forward.6} parent=58 // pred_fallthru
          _
      $region59: #{discriminator_forward.6} parent=5 // pred_fallthru
        _
      %p1364 = scmp.le.s32.totalorder 2, %s11
      // Predicated region
      $region68: #{discriminator_forward.6} parent=5 // pred_check
        %p1365 = pneg %p1364
      $region69: #{discriminator_forward.6} parent=5 // pred_check_branch
        %1367 = sbr.rel (%p1365) target = $region71
      $region70: #{discriminator_forward.6} parent=5 // pred_region
        %s1368 = ssub.s32 %s11, 2
        // Predicated region
        $region72: #{discriminator_forward.6} parent=70 // pred_check
          %p1369 = pneg %p165
        $region73: #{discriminator_forward.6} parent=70 // pred_check_branch
          %1371 = sbr.rel (%p1369) target = $region75
        $region74: #{discriminator_forward.6} parent=70 // pred_region
          %s1372 = smul.u32 14, %s17
          %p1373 = scmp.lt.s32.totalorder %s1372, 97
          %s1374 = scalar_select %p1373, %s1372, 97
          %s1375 = scalar_lea.vmem %s5, %s1374
        $region75: #{discriminator_forward.6} parent=70 // pred_fallthru
          _
      $region71: #{discriminator_forward.6} parent=5 // pred_fallthru
        _
    $region6: #{discriminator_forward.6} parent=1 // loop_footer
      %s15 = sadd.s32 1, %s11
    $region7: #{discriminator_forward.6} parent=1 // loop_footer_branch
      %10 = sbr.rel target = $region3
    $region8: #{discriminator_forward.6} parent=1 // loop_exit
      _

// kernel: discriminator_forward.5
$region0: #{discriminator_forward.5}
  #allocation0 [shape = 'u32[]', space=smem, size = 0x4, offset = 0x4, fixed_abs, tag = 'smem constant byte address 0x4 - core index']
  #allocation1 [shape = 'u32[72,128]{1,0:T(1,128)}', space=vmem, size = 0x9000, scoped, tag = 'internal scratch']
  #allocation2 [shape = 'f32[2,32]{1,0:T(2,128)}', space=vmem, size = 0x400, scoped, tag = 'scratch operand']
  %s0 = inlined_call_operand.vmem [shape: bf16[2,12544], index: 0, kind: input, shape index: {}]
  %s1 = inlined_call_operand.vmem [shape: bf16[12544,32], index: 1, kind: input, shape index: {}]
  %s2 = inlined_call_operand.vmem [shape: f32[1,32], index: 2, kind: input, shape index: {}]
  %s3 = inlined_call_operand.vmem [shape: f32[1,32], index: 3, kind: input, shape index: {}]
  %s4 = inlined_call_operand.vmem [shape: f32[1,32], index: 4, kind: input, shape index: {}]
  %s5 = inlined_call_operand.vmem [shape: f32[2,32], index: 5, kind: output, shape index: {}]
  %s6 = sld [smem:[#allocation0]]
  $region61: #{discriminator_forward.5} parent=0
    _
  %s8 = ssub.s32 1, %s6
  %s9 = scalar_select 0, %s8, %s6
  loop: start=0, step=1, limit=9
  $region2: #{discriminator_forward.5} parent=0 // loop_pre_header
    _
  $region3: #{discriminator_forward.5} parent=0 // loop_header
    %s11 = sphi 0, %s15
    %p12 = scmp.ge.s32.totalorder %s11, 9
    %s21 = sphi 0, %s23
    %s24 = sphi 0, %s21
    %s25 = sphi 0, %s24
    %s41 = sphi 0, %s25
    %s47 = sphi 0, %s49
    %s50 = sphi 0, %s47
    %s51 = sphi 0, %s50
    %s67 = sphi 0, %s51
    %s71 = sphi 0, %s71
    %s73 = sphi 0, %s71
    %s74 = sphi 0, %s73
    %s88 = sphi 0, %s74
    %s92 = sphi 0, %s92
    %s94 = sphi 0, %s92
    %s95 = sphi 0, %s94
    %s109 = sphi 0, %s95
    %s113 = sphi 0, %s113
    %s115 = sphi 0, %s113
    %s116 = sphi 0, %s115
    %s130 = sphi 0, %s116
    %s134 = sphi 0, %s134
    %s136 = sphi 0, %s134
    %s137 = sphi 0, %s136
    %s151 = sphi 0, %s137
  $region4: #{discriminator_forward.5} parent=0 // loop_header_branch
    %14 = sbr.rel (%p12) target = $region8
  $region5: #{discriminator_forward.5} parent=0 // loop_body
    %s16 = ssub.s32 %s11, 1
    %s17 = ssub.s32 %s11, 2
    %s18 = sadd.s32 %s11, 1
    %s19 = ssub.s32 %s11, %s18
    %p20 = scmp.eq.s32.totalorder %s19, 0
    %s22 = sadd.s32 %s21, 1
    %s23 = scalar_select %p20, %s21, %s22
    %p26 = pneg %p20
    %p27 = scmp.eq.s32.totalorder %s11, 6
    %p28 = por %p26, %p27
    %p29 = scmp.ne.s32.totalorder %s21, %s24
    %p30 = scmp.eq.s32.totalorder %s11, 0
    %p31 = por %p29, %p30
    %p32 = scmp.ne.s32.totalorder %s21, %s24
    %p33 = scmp.eq.s32.totalorder %s16, 6
    %p34 = por %p32, %p33
    %p35 = scmp.ne.s32.totalorder %s24, %s25
    %p36 = scmp.eq.s32.totalorder %s16, 0
    %p37 = por %p35, %p36
    %p38 = scmp.ne.s32.totalorder %s24, %s25
    %p39 = scmp.eq.s32.totalorder %s17, 6
    %p40 = por %p38, %p39
    %p42 = scmp.ne.s32.totalorder %s25, %s41
    %p43 = scmp.eq.s32.totalorder %s17, 0
    %p44 = por %p42, %p43
    %s45 = ssub.s32 %s11, %s18
    %p46 = scmp.eq.s32.totalorder %s45, 0
    %s48 = sadd.s32 %s47, 1
    %s49 = scalar_select %p46, %s47, %s48
    %p52 = pneg %p46
    %p53 = scmp.eq.s32.totalorder %s11, 6
    %p54 = por %p52, %p53
    %p55 = scmp.ne.s32.totalorder %s47, %s50
    %p56 = scmp.eq.s32.totalorder %s11, 0
    %p57 = por %p55, %p56
    %p58 = scmp.ne.s32.totalorder %s47, %s50
    %p59 = scmp.eq.s32.totalorder %s16, 6
    %p60 = por %p58, %p59
    %p61 = scmp.ne.s32.totalorder %s50, %s51
    %p62 = scmp.eq.s32.totalorder %s16, 0
    %p63 = por %p61, %p62
    %p64 = scmp.ne.s32.totalorder %s50, %s51
    %p65 = scmp.eq.s32.totalorder %s17, 6
    %p66 = por %p64, %p65
    %p68 = scmp.ne.s32.totalorder %s51, %s67
    %p69 = scmp.eq.s32.totalorder %s17, 0
    %p70 = por %p68, %p69
    %s72 = sadd.s32 %s71, 1
    %p75 = scmp.eq.s32.totalorder %s11, 6
    %p76 = scmp.ne.s32.totalorder %s71, %s73
    %p77 = scmp.eq.s32.totalorder %s11, 0
    %p78 = por %p76, %p77
    %p79 = scmp.ne.s32.totalorder %s71, %s73
    %p80 = scmp.eq.s32.totalorder %s16, 6
    %p81 = por %p79, %p80
    %p82 = scmp.ne.s32.totalorder %s73, %s74
    %p83 = scmp.eq.s32.totalorder %s16, 0
    %p84 = por %p82, %p83
    %p85 = scmp.ne.s32.totalorder %s73, %s74
    %p86 = scmp.eq.s32.totalorder %s17, 6
    %p87 = por %p85, %p86
    %p89 = scmp.ne.s32.totalorder %s74, %s88
    %p90 = scmp.eq.s32.totalorder %s17, 0
    %p91 = por %p89, %p90
    %s93 = sadd.s32 %s92, 1
    %p96 = scmp.eq.s32.totalorder %s11, 6
    %p97 = scmp.ne.s32.totalorder %s92, %s94
    %p98 = scmp.eq.s32.totalorder %s11, 0
    %p99 = por %p97, %p98
    %p100 = scmp.ne.s32.totalorder %s92, %s94
    %p101 = scmp.eq.s32.totalorder %s16, 6
    %p102 = por %p100, %p101
    %p103 = scmp.ne.s32.totalorder %s94, %s95
    %p104 = scmp.eq.s32.totalorder %s16, 0
    %p105 = por %p103, %p104
    %p106 = scmp.ne.s32.totalorder %s94, %s95
    %p107 = scmp.eq.s32.totalorder %s17, 6
    %p108 = por %p106, %p107
    %p110 = scmp.ne.s32.totalorder %s95, %s109
    %p111 = scmp.eq.s32.totalorder %s17, 0
    %p112 = por %p110, %p111
    %s114 = sadd.s32 %s113, 1
    %p117 = scmp.eq.s32.totalorder %s11, 6
    %p118 = scmp.ne.s32.totalorder %s113, %s115
    %p119 = scmp.eq.s32.totalorder %s11, 0
    %p120 = por %p118, %p119
    %p121 = scmp.ne.s32.totalorder %s113, %s115
    %p122 = scmp.eq.s32.totalorder %s16, 6
    %p123 = por %p121, %p122
    %p124 = scmp.ne.s32.totalorder %s115, %s116
    %p125 = scmp.eq.s32.totalorder %s16, 0
    %p126 = por %p124, %p125
    %p127 = scmp.ne.s32.totalorder %s115, %s116
    %p128 = scmp.eq.s32.totalorder %s17, 6
    %p129 = por %p127, %p128
    %p131 = scmp.ne.s32.totalorder %s116, %s130
    %p132 = scmp.eq.s32.totalorder %s17, 0
    %p133 = por %p131, %p132
    %s135 = sadd.s32 %s134, 1
    %p138 = scmp.eq.s32.totalorder %s11, 6
    %p139 = scmp.ne.s32.totalorder %s134, %s136
    %p140 = scmp.eq.s32.totalorder %s11, 0
    %p141 = por %p139, %p140
    %p142 = scmp.ne.s32.totalorder %s134, %s136
    %p143 = scmp.eq.s32.totalorder %s16, 6
    %p144 = por %p142, %p143
    %p145 = scmp.ne.s32.totalorder %s136, %s137
    %p146 = scmp.eq.s32.totalorder %s16, 0
    %p147 = por %p145, %p146
    %p148 = scmp.ne.s32.totalorder %s136, %s137
    %p149 = scmp.eq.s32.totalorder %s17, 6
    %p150 = por %p148, %p149
    %p152 = scmp.ne.s32.totalorder %s137, %s151
    %p153 = scmp.eq.s32.totalorder %s17, 0
    %p154 = por %p152, %p153
    %p155 = scmp.le.s32.totalorder 1, %s11
    %p156 = scmp.lt.s32.totalorder %s11, 8
    %p157 = pnand %p155, %p156
    %p158 = pneg %p157
    // Predicated region
    $region9: #{discriminator_forward.5} parent=5 // pred_check
      _
    $region10: #{discriminator_forward.5} parent=5 // pred_check_branch
      %160 = sbr.rel (%p157) target = $region12
    $region11: #{discriminator_forward.5} parent=5 // pred_region
      %s161 = ssub.s32 %s11, 1
      // Predicated region
      $region13: #{discriminator_forward.5} parent=11 // pred_check
        %p162 = pneg %p84
      $region14: #{discriminator_forward.5} parent=11 // pred_check_branch
        %164 = sbr.rel (%p162) target = $region16
      $region15: #{discriminator_forward.5} parent=11 // pred_region
        _
      $region16: #{discriminator_forward.5} parent=11 // pred_fallthru
        _
      // Predicated region
      $region17: #{discriminator_forward.5} parent=11 // pred_check
        %p165 = pneg %p105
      $region18: #{discriminator_forward.5} parent=11 // pred_check_branch
        %167 = sbr.rel (%p165) target = $region20
      $region19: #{discriminator_forward.5} parent=11 // pred_region
        _
      $region20: #{discriminator_forward.5} parent=11 // pred_fallthru
        _
      // Predicated region
      $region21: #{discriminator_forward.5} parent=11 // pred_check
        %p168 = pneg %p126
      $region22: #{discriminator_forward.5} parent=11 // pred_check_branch
        %170 = sbr.rel (%p168) target = $region24
      $region23: #{discriminator_forward.5} parent=11 // pred_region
        _
      $region24: #{discriminator_forward.5} parent=11 // pred_fallthru
        _
    $region12: #{discriminator_forward.5} parent=5 // pred_fallthru
      _
    %p171 = scmp.lt.s32.totalorder %s11, 7
    // Predicated region
    $region25: #{discriminator_forward.5} parent=5 // pred_check
      %p172 = pneg %p171
    $region26: #{discriminator_forward.5} parent=5 // pred_check_branch
      %174 = sbr.rel (%p172) target = $region28
    $region27: #{discriminator_forward.5} parent=5 // pred_region
      // Predicated region
      $region29: #{discriminator_forward.5} parent=27 // pred_check
        %p175 = pneg %p31
      $region30: #{discriminator_forward.5} parent=27 // pred_check_branch
        %177 = sbr.rel (%p175) target = $region32
      $region31: #{discriminator_forward.5} parent=27 // pred_region
        %s178 = smul.u32 14, %s11
        %p179 = scmp.lt.s32.totalorder %s178, 97
        %s180 = scalar_select %p179, %s178, 97
        %s181 = scalar_lea.vmem %s0, %s180
        %s182 = smul.u32 14, %s11
      $region32: #{discriminator_forward.5} parent=27 // pred_fallthru
        _
      // Predicated region
      $region33: #{discriminator_forward.5} parent=27 // pred_check
        %p183 = pneg %p57
      $region34: #{discriminator_forward.5} parent=27 // pred_check_branch
        %185 = sbr.rel (%p183) target = $region36
      $region35: #{discriminator_forward.5} parent=27 // pred_region
        %s186 = smul.u32 224, %s11
        %p187 = scmp.lt.s32.totalorder %s186, 1567
        %s188 = scalar_select %p187, %s186, 1567
        %s189 = smul.addr %s188, 4
        %s190 = scalar_lea.vmem %s1, %s189
        %s191 = smul.u32 224, %s11
      $region36: #{discriminator_forward.5} parent=27 // pred_fallthru
        _
    $region28: #{discriminator_forward.5} parent=5 // pred_fallthru
      _
    %p192 = scmp.le.s32.totalorder 1, %s11
    %p193 = scmp.lt.s32.totalorder %s11, 8
    %p194 = pnand %p192, %p193
    %p195 = pneg %p194
    // Predicated region
    $region37: #{discriminator_forward.5} parent=5 // pred_check
      _
    $region38: #{discriminator_forward.5} parent=5 // pred_check_branch
      %197 = sbr.rel (%p194) target = $region40
    $region39: #{discriminator_forward.5} parent=5 // pred_region
      %s198 = ssub.s32 %s11, 1
      %s199 = smul.u32 14, %s16
      %p200 = scmp.lt.s32.totalorder %s199, 97
      %s201 = scalar_select %p200, %s199, 97
      %s202 = scalar_lea.vmem %s0, %s201
      %p203 = pneg %p37
      %p204 = pneg %p34
      %s205 = smul.u32 224, %s16
      %p206 = scmp.lt.s32.totalorder %s205, 1567
      %s207 = scalar_select %p206, %s205, 1567
      %s208 = smul.addr %s207, 4
      %s209 = scalar_lea.vmem %s1, %s208
      %p210 = pneg %p63
      %p211 = pneg %p60
      %p212 = pneg %p84
      %p213 = pneg %p81
      %p214 = pneg %p105
      %p215 = pneg %p102
      %p216 = pneg %p126
      %p217 = pneg %p123
      %p218 = pneg %p147
      %p219 = pneg %p144
      %s220 = smul.u32 14, %s16
      %p221 = scmp.lt.s32.totalorder %s220, 97
      %s222 = scalar_select %p221, %s220, 97
      %s223 = scalar_lea.vmem %s0, %s222
      %s224 = smul.u32 14, %s16
      %s225 = smul.u32 224, %s16
      %p226 = scmp.lt.s32.totalorder %s225, 1567
      %s227 = scalar_select %p226, %s225, 1567
      %s228 = smul.addr %s227, 4
      %s229 = scalar_lea.vmem %s1, %s228
      %s230 = smul.u32 224, %s16
      %p231 = scmp.eq.s32.totalorder %s16, 0
      // Predicated region
      $region41: #{discriminator_forward.5} parent=39 // pred_check
        %p232 = pneg %p231
      $region42: #{discriminator_forward.5} parent=39 // pred_check_branch
        %234 = sbr.rel (%p232) target = $region44
      $region43: #{discriminator_forward.5} parent=39 // pred_region
        %vm235 = vcmask 254976
        %236 = vst.msk [vmem:[#allocation2] sm:$0x3] %vm235, 0.0
      $region44: #{discriminator_forward.5} parent=39 // pred_fallthru
        _
      %v237 = vld [vmem:[#allocation2] sm:$0x3]
      %v238 = vld [vmem:[%s223] sm:$0xff]
      %v239 = vld [vmem:[%s223 + $0x8] sm:$0x3f]
      %v240 = vld [vmem:[%s229] sm:$0xf]
      %v241 = vld [vmem:[%s229 + $0x4] sm:$0xf]
      %v242 = vld [vmem:[%s229 + $0x8] sm:$0xf]
      %v243 = vld [vmem:[%s229 + $0xc] sm:$0xf]
      %v244 = vld [vmem:[%s229 + $0x10] sm:$0xf]
      %v245 = vld [vmem:[%s229 + $0x14] sm:$0xf]
      %v246 = vld [vmem:[%s229 + $0x18] sm:$0xf]
      %v247 = vld [vmem:[%s229 + $0x1c] sm:$0xf]
      %v248 = vld [vmem:[%s229 + $0x20] sm:$0xf]
      %v249 = vld [vmem:[%s229 + $0x24] sm:$0xf]
      %v250 = vld [vmem:[%s229 + $0x28] sm:$0xf]
      %v251 = vld [vmem:[%s229 + $0x2c] sm:$0xf]
      %v252 = vld [vmem:[%s229 + $0x30] sm:$0xf]
      %v253 = vld [vmem:[%s229 + $0x34] sm:$0xf]
      %v254 = vld [vmem:[%s229 + $0x38] sm:$0xf]
      %v255 = vld [vmem:[%s229 + $0x3c] sm:$0xf]
      %v256 = vld [vmem:[%s229 + $0x40] sm:$0xf]
      %v257 = vld [vmem:[%s229 + $0x44] sm:$0xf]
      %v258 = vld [vmem:[%s229 + $0x48] sm:$0xf]
      %v259 = vld [vmem:[%s229 + $0x4c] sm:$0xf]
      %v260 = vld [vmem:[%s229 + $0x50] sm:$0xf]
      %v261 = vld [vmem:[%s229 + $0x54] sm:$0xf]
      %v262 = vld [vmem:[%s229 + $0x58] sm:$0xf]
      %v263 = vld [vmem:[%s229 + $0x5c] sm:$0xf]
      %v264 = vld [vmem:[%s229 + $0x60] sm:$0xf]
      %v265 = vld [vmem:[%s229 + $0x64] sm:$0xf]
      %v266 = vld [vmem:[%s229 + $0x68] sm:$0xf]
      %v267 = vld [vmem:[%s229 + $0x6c] sm:$0xf]
      %v268 = vld [vmem:[%s229 + $0x70] sm:$0xf]
      %v269 = vld [vmem:[%s229 + $0x74] sm:$0xf]
      %v270 = vld [vmem:[%s229 + $0x78] sm:$0xf]
      %v271 = vld [vmem:[%s229 + $0x7c] sm:$0xf]
      %v272 = vld [vmem:[%s229 + $0x80] sm:$0xf]
      %v273 = vld [vmem:[%s229 + $0x84] sm:$0xf]
      %v274 = vld [vmem:[%s229 + $0x88] sm:$0xf]
      %v275 = vld [vmem:[%s229 + $0x8c] sm:$0xf]
      %v276 = vld [vmem:[%s229 + $0x90] sm:$0xf]
      %v277 = vld [vmem:[%s229 + $0x94] sm:$0xf]
      %v278 = vld [vmem:[%s229 + $0x98] sm:$0xf]
      %v279 = vld [vmem:[%s229 + $0x9c] sm:$0xf]
      %v280 = vld [vmem:[%s229 + $0xa0] sm:$0xf]
      %v281 = vld [vmem:[%s229 + $0xa4] sm:$0xf]
      %v282 = vld [vmem:[%s229 + $0xa8] sm:$0xf]
      %v283 = vld [vmem:[%s229 + $0xac] sm:$0xf]
      %v284 = vld [vmem:[%s229 + $0xb0] sm:$0xf]
      %v285 = vld [vmem:[%s229 + $0xb4] sm:$0xf]
      %v286 = vld [vmem:[%s229 + $0xb8] sm:$0xf]
      %v287 = vld [vmem:[%s229 + $0xbc] sm:$0xf]
      %v288 = vld [vmem:[%s229 + $0xc0] sm:$0xf]
      %v289 = vld [vmem:[%s229 + $0xc4] sm:$0xf]
      %v290 = vld [vmem:[%s229 + $0xc8] sm:$0xf]
      %v291 = vld [vmem:[%s229 + $0xcc] sm:$0xf]
      %v292 = vld [vmem:[%s229 + $0xd0] sm:$0xf]
      %v293 = vld [vmem:[%s229 + $0xd4] sm:$0xf]
      %v294 = vld [vmem:[%s229 + $0xd8] sm:$0xf]
      %v295 = vld [vmem:[%s229 + $0xdc] sm:$0xf]
      %v296 = vld [vmem:[%s229 + $0xe0] sm:$0xf]
      %v297 = vld [vmem:[%s229 + $0xe4] sm:$0xf]
      %v298 = vld [vmem:[%s229 + $0xe8] sm:$0xf]
      %v299 = vld [vmem:[%s229 + $0xec] sm:$0xf]
      %v300 = vld [vmem:[%s229 + $0xf0] sm:$0xf]
      %v301 = vld [vmem:[%s229 + $0xf4] sm:$0xf]
      %v302 = vld [vmem:[%s229 + $0xf8] sm:$0xf]
      %v303 = vld [vmem:[%s229 + $0xfc] sm:$0xf]
      %v304 = vld [vmem:[%s229 + $0x100] sm:$0xf]
      %v305 = vld [vmem:[%s229 + $0x104] sm:$0xf]
      %v306 = vld [vmem:[%s229 + $0x108] sm:$0xf]
      %v307 = vld [vmem:[%s229 + $0x10c] sm:$0xf]
      %v308 = vld [vmem:[%s229 + $0x110] sm:$0xf]
      %v309 = vld [vmem:[%s229 + $0x114] sm:$0xf]
      %v310 = vld [vmem:[%s229 + $0x118] sm:$0xf]
      %v311 = vld [vmem:[%s229 + $0x11c] sm:$0xf]
      %v312 = vld [vmem:[%s229 + $0x120] sm:$0xf]
      %v313 = vld [vmem:[%s229 + $0x124] sm:$0xf]
      %v314 = vld [vmem:[%s229 + $0x128] sm:$0xf]
      %v315 = vld [vmem:[%s229 + $0x12c] sm:$0xf]
      %v316 = vld [vmem:[%s229 + $0x130] sm:$0xf]
      %v317 = vld [vmem:[%s229 + $0x134] sm:$0xf]
      %v318 = vld [vmem:[%s229 + $0x138] sm:$0xf]
      %v319 = vld [vmem:[%s229 + $0x13c] sm:$0xf]
      %v320 = vld [vmem:[%s229 + $0x140] sm:$0xf]
      %v321 = vld [vmem:[%s229 + $0x144] sm:$0xf]
      %v322 = vld [vmem:[%s229 + $0x148] sm:$0xf]
      %v323 = vld [vmem:[%s229 + $0x14c] sm:$0xf]
      %v324 = vld [vmem:[%s229 + $0x150] sm:$0xf]
      %v325 = vld [vmem:[%s229 + $0x154] sm:$0xf]
      %v326 = vld [vmem:[%s229 + $0x158] sm:$0xf]
      %v327 = vld [vmem:[%s229 + $0x15c] sm:$0xf]
      %v328 = vld [vmem:[%s229 + $0x160] sm:$0xf]
      %v329 = vld [vmem:[%s229 + $0x164] sm:$0xf]
      %v330 = vld [vmem:[%s229 + $0x168] sm:$0xf]
      %v331 = vld [vmem:[%s229 + $0x16c] sm:$0xf]
      %v332 = vld [vmem:[%s229 + $0x170] sm:$0xf]
      %v333 = vld [vmem:[%s229 + $0x174] sm:$0xf]
      %v334 = vld [vmem:[%s229 + $0x178] sm:$0xf]
      %v335 = vld [vmem:[%s229 + $0x17c] sm:$0xf]
      %v336 = vld [vmem:[%s229 + $0x180] sm:$0xf]
      %v337 = vld [vmem:[%s229 + $0x184] sm:$0xf]
      %v338 = vld [vmem:[%s229 + $0x188] sm:$0xf]
      %v339 = vld [vmem:[%s229 + $0x18c] sm:$0xf]
      %v340 = vld [vmem:[%s229 + $0x190] sm:$0xf]
      %v341 = vld [vmem:[%s229 + $0x194] sm:$0xf]
      %v342 = vld [vmem:[%s229 + $0x198] sm:$0xf]
      %v343 = vld [vmem:[%s229 + $0x19c] sm:$0xf]
      %v344 = vld [vmem:[%s229 + $0x1a0] sm:$0xf]
      %v345 = vld [vmem:[%s229 + $0x1a4] sm:$0xf]
      %v346 = vld [vmem:[%s229 + $0x1a8] sm:$0xf]
      %v347 = vld [vmem:[%s229 + $0x1ac] sm:$0xf]
      %v348 = vld [vmem:[%s229 + $0x1b0] sm:$0xf]
      %v349 = vld [vmem:[%s229 + $0x1b4] sm:$0xf]
      %v350 = vld [vmem:[%s229 + $0x1b8] sm:$0xf]
      %v351 = vld [vmem:[%s229 + $0x1bc] sm:$0xf]
      %v352 = vld [vmem:[%s229 + $0x1c0] sm:$0xf]
      %v353 = vld [vmem:[%s229 + $0x1c4] sm:$0xf]
      %v354 = vld [vmem:[%s229 + $0x1c8] sm:$0xf]
      %v355 = vld [vmem:[%s229 + $0x1cc] sm:$0xf]
      %v356 = vld [vmem:[%s229 + $0x1d0] sm:$0xf]
      %v357 = vld [vmem:[%s229 + $0x1d4] sm:$0xf]
      %v358 = vld [vmem:[%s229 + $0x1d8] sm:$0xf]
      %v359 = vld [vmem:[%s229 + $0x1dc] sm:$0xf]
      %v360 = vld [vmem:[%s229 + $0x1e0] sm:$0xf]
      %v361 = vld [vmem:[%s229 + $0x1e4] sm:$0xf]
      %v362 = vld [vmem:[%s229 + $0x1e8] sm:$0xf]
      %v363 = vld [vmem:[%s229 + $0x1ec] sm:$0xf]
      %v364 = vld [vmem:[%s229 + $0x1f0] sm:$0xf]
      %v365 = vld [vmem:[%s229 + $0x1f4] sm:$0xf]
      %v366 = vld [vmem:[%s229 + $0x1f8] sm:$0xf]
      %v367 = vld [vmem:[%s229 + $0x1fc] sm:$0xf]
      %v368 = vld [vmem:[%s229 + $0x200] sm:$0xf]
      %v369 = vld [vmem:[%s229 + $0x204] sm:$0xf]
      %v370 = vld [vmem:[%s229 + $0x208] sm:$0xf]
      %v371 = vld [vmem:[%s229 + $0x20c] sm:$0xf]
      %v372 = vld [vmem:[%s229 + $0x210] sm:$0xf]
      %v373 = vld [vmem:[%s229 + $0x214] sm:$0xf]
      %v374 = vld [vmem:[%s229 + $0x218] sm:$0xf]
      %v375 = vld [vmem:[%s229 + $0x21c] sm:$0xf]
      %v376 = vld [vmem:[%s229 + $0x220] sm:$0xf]
      %v377 = vld [vmem:[%s229 + $0x224] sm:$0xf]
      %v378 = vld [vmem:[%s229 + $0x228] sm:$0xf]
      %v379 = vld [vmem:[%s229 + $0x22c] sm:$0xf]
      %v380 = vld [vmem:[%s229 + $0x230] sm:$0xf]
      %v381 = vld [vmem:[%s229 + $0x234] sm:$0xf]
      %v382 = vld [vmem:[%s229 + $0x238] sm:$0xf]
      %v383 = vld [vmem:[%s229 + $0x23c] sm:$0xf]
      %v384 = vld [vmem:[%s229 + $0x240] sm:$0xf]
      %v385 = vld [vmem:[%s229 + $0x244] sm:$0xf]
      %v386 = vld [vmem:[%s229 + $0x248] sm:$0xf]
      %v387 = vld [vmem:[%s229 + $0x24c] sm:$0xf]
      %v388 = vld [vmem:[%s229 + $0x250] sm:$0xf]
      %v389 = vld [vmem:[%s229 + $0x254] sm:$0xf]
      %v390 = vld [vmem:[%s229 + $0x258] sm:$0xf]
      %v391 = vld [vmem:[%s229 + $0x25c] sm:$0xf]
      %v392 = vld [vmem:[%s229 + $0x260] sm:$0xf]
      %v393 = vld [vmem:[%s229 + $0x264] sm:$0xf]
      %v394 = vld [vmem:[%s229 + $0x268] sm:$0xf]
      %v395 = vld [vmem:[%s229 + $0x26c] sm:$0xf]
      %v396 = vld [vmem:[%s229 + $0x270] sm:$0xf]
      %v397 = vld [vmem:[%s229 + $0x274] sm:$0xf]
      %v398 = vld [vmem:[%s229 + $0x278] sm:$0xf]
      %v399 = vld [vmem:[%s229 + $0x27c] sm:$0xf]
      %v400 = vld [vmem:[%s229 + $0x280] sm:$0xf]
      %v401 = vld [vmem:[%s229 + $0x284] sm:$0xf]
      %v402 = vld [vmem:[%s229 + $0x288] sm:$0xf]
      %v403 = vld [vmem:[%s229 + $0x28c] sm:$0xf]
      %v404 = vld [vmem:[%s229 + $0x290] sm:$0xf]
      %v405 = vld [vmem:[%s229 + $0x294] sm:$0xf]
      %v406 = vld [vmem:[%s229 + $0x298] sm:$0xf]
      %v407 = vld [vmem:[%s229 + $0x29c] sm:$0xf]
      %v408 = vld [vmem:[%s229 + $0x2a0] sm:$0xf]
      %v409 = vld [vmem:[%s229 + $0x2a4] sm:$0xf]
      %v410 = vld [vmem:[%s229 + $0x2a8] sm:$0xf]
      %v411 = vld [vmem:[%s229 + $0x2ac] sm:$0xf]
      %v412 = vld [vmem:[%s229 + $0x2b0] sm:$0xf]
      %v413 = vld [vmem:[%s229 + $0x2b4] sm:$0xf]
      %v414 = vld [vmem:[%s229 + $0x2b8] sm:$0xf]
      %v415 = vld [vmem:[%s229 + $0x2bc] sm:$0xf]
      %v416 = vld [vmem:[%s229 + $0x2c0] sm:$0xf]
      %v417 = vld [vmem:[%s229 + $0x2c4] sm:$0xf]
      %v418 = vld [vmem:[%s229 + $0x2c8] sm:$0xf]
      %v419 = vld [vmem:[%s229 + $0x2cc] sm:$0xf]
      %v420 = vld [vmem:[%s229 + $0x2d0] sm:$0xf]
      %v421 = vld [vmem:[%s229 + $0x2d4] sm:$0xf]
      %v422 = vld [vmem:[%s229 + $0x2d8] sm:$0xf]
      %v423 = vld [vmem:[%s229 + $0x2dc] sm:$0xf]
      %v424 = vld [vmem:[%s229 + $0x2e0] sm:$0xf]
      %v425 = vld [vmem:[%s229 + $0x2e4] sm:$0xf]
      %v426 = vld [vmem:[%s229 + $0x2e8] sm:$0xf]
      %v427 = vld [vmem:[%s229 + $0x2ec] sm:$0xf]
      %v428 = vld [vmem:[%s229 + $0x2f0] sm:$0xf]
      %v429 = vld [vmem:[%s229 + $0x2f4] sm:$0xf]
      %v430 = vld [vmem:[%s229 + $0x2f8] sm:$0xf]
      %v431 = vld [vmem:[%s229 + $0x2fc] sm:$0xf]
      %v432 = vld [vmem:[%s229 + $0x300] sm:$0xf]
      %v433 = vld [vmem:[%s229 + $0x304] sm:$0xf]
      %v434 = vld [vmem:[%s229 + $0x308] sm:$0xf]
      %v435 = vld [vmem:[%s229 + $0x30c] sm:$0xf]
      %v436 = vld [vmem:[%s229 + $0x310] sm:$0xf]
      %v437 = vld [vmem:[%s229 + $0x314] sm:$0xf]
      %v438 = vld [vmem:[%s229 + $0x318] sm:$0xf]
      %v439 = vld [vmem:[%s229 + $0x31c] sm:$0xf]
      %v440 = vld [vmem:[%s229 + $0x320] sm:$0xf]
      %v441 = vld [vmem:[%s229 + $0x324] sm:$0xf]
      %v442 = vld [vmem:[%s229 + $0x328] sm:$0xf]
      %v443 = vld [vmem:[%s229 + $0x32c] sm:$0xf]
      %v444 = vld [vmem:[%s229 + $0x330] sm:$0xf]
      %v445 = vld [vmem:[%s229 + $0x334] sm:$0xf]
      %v446 = vld [vmem:[%s229 + $0x338] sm:$0xf]
      %v447 = vld [vmem:[%s229 + $0x33c] sm:$0xf]
      %v448 = vld [vmem:[%s229 + $0x340] sm:$0xf]
      %v449 = vld [vmem:[%s229 + $0x344] sm:$0xf]
      %v450 = vld [vmem:[%s229 + $0x348] sm:$0xf]
      %v451 = vld [vmem:[%s229 + $0x34c] sm:$0xf]
      %v452 = vld [vmem:[%s229 + $0x350] sm:$0xf]
      %v453 = vld [vmem:[%s229 + $0x354] sm:$0xf]
      %v454 = vld [vmem:[%s229 + $0x358] sm:$0xf]
      %v455 = vld [vmem:[%s229 + $0x35c] sm:$0xf]
      %v456 = vld [vmem:[%s229 + $0x360] sm:$0xf]
      %v457 = vld [vmem:[%s229 + $0x364] sm:$0xf]
      %v458 = vld [vmem:[%s229 + $0x368] sm:$0xf]
      %v459 = vld [vmem:[%s229 + $0x36c] sm:$0xf]
      %v460 = vld [vmem:[%s229 + $0x370] sm:$0xf]
      %v461 = vld [vmem:[%s229 + $0x374] sm:$0xf]
      %v462 = vld [vmem:[%s229 + $0x378] sm:$0xf]
      %v463 = vld [vmem:[%s229 + $0x37c] sm:$0xf]
      %465 = vst [vmem:[#allocation1] ss:$9 sm:$0xff] %v238
      %v466 = vld [vmem:[#allocation1] sm:$0xff]
      %v467 = vld [vmem:[#allocation1 + $0x9] sm:$0xff]
      %v468 = vld [vmem:[#allocation1 + $0x12] sm:$0xff]
      %v469 = vld [vmem:[#allocation1 + $0x1b] sm:$0xff]
      %v470 = vld [vmem:[#allocation1 + $0x24] sm:$0xff]
      %v471 = vld [vmem:[#allocation1 + $0x2d] sm:$0xff]
      %v472 = vld [vmem:[#allocation1 + $0x36] sm:$0xff]
      %v473 = vld [vmem:[#allocation1 + $0x3f] sm:$0xff]
      %475 = vst [vmem:[#allocation1] ss:$9 sm:$0xff] %v239
      %v476 = vld [vmem:[#allocation1] sm:$0xff]
      %v477 = vld [vmem:[#allocation1 + $0x9] sm:$0xff]
      %v478 = vld [vmem:[#allocation1 + $0x12] sm:$0xff]
      %v479 = vld [vmem:[#allocation1 + $0x1b] sm:$0xff]
      %v480 = vld [vmem:[#allocation1 + $0x24] sm:$0xff]
      %v481 = vld [vmem:[#allocation1 + $0x2d] sm:$0xff]
      %v720 = vunpack.c.l.b16 %v240
      %v721 = vunpack.c.l.b16 %v241
      %v722 = vunpack.c.l.b16 %v242
      %v723 = vunpack.c.l.b16 %v243
      %v724 = vunpack.c.l.b16 %v244
      %v725 = vunpack.c.l.b16 %v245
      %v726 = vunpack.c.l.b16 %v246
      %v727 = vunpack.c.l.b16 %v247
      %v728 = vunpack.c.l.b16 %v248
      %v729 = vunpack.c.l.b16 %v249
      %v730 = vunpack.c.l.b16 %v250
      %v731 = vunpack.c.l.b16 %v251
      %v732 = vunpack.c.l.b16 %v252
      %v733 = vunpack.c.l.b16 %v253
      %v734 = vunpack.c.l.b16 %v254
      %v735 = vunpack.c.l.b16 %v255
      %v736 = vunpack.c.l.b16 %v256
      %v737 = vunpack.c.l.b16 %v257
      %v738 = vunpack.c.l.b16 %v258
      %v739 = vunpack.c.l.b16 %v259
      %v740 = vunpack.c.l.b16 %v260
      %v741 = vunpack.c.l.b16 %v261
      %v742 = vunpack.c.l.b16 %v262
      %v743 = vunpack.c.l.b16 %v263
      %v744 = vunpack.c.l.b16 %v264
      %v745 = vunpack.c.l.b16 %v265
      %v746 = vunpack.c.l.b16 %v266
      %v747 = vunpack.c.l.b16 %v267
      %v748 = vunpack.c.l.b16 %v268
      %v749 = vunpack.c.l.b16 %v269
      %v750 = vunpack.c.l.b16 %v270
      %v751 = vunpack.c.l.b16 %v271
      %v752 = vunpack.c.l.b16 %v272
      %v753 = vunpack.c.l.b16 %v273
      %v754 = vunpack.c.l.b16 %v274
      %v755 = vunpack.c.l.b16 %v275
      %v756 = vunpack.c.l.b16 %v276
      %v757 = vunpack.c.l.b16 %v277
      %v758 = vunpack.c.l.b16 %v278
      %v759 = vunpack.c.l.b16 %v279
      %v760 = vunpack.c.l.b16 %v280
      %v761 = vunpack.c.l.b16 %v281
      %v762 = vunpack.c.l.b16 %v282
      %v763 = vunpack.c.l.b16 %v283
      %v764 = vunpack.c.l.b16 %v284
      %v765 = vunpack.c.l.b16 %v285
      %v766 = vunpack.c.l.b16 %v286
      %v767 = vunpack.c.l.b16 %v287
      %v768 = vunpack.c.l.b16 %v288
      %v769 = vunpack.c.l.b16 %v289
      %v770 = vunpack.c.l.b16 %v290
      %v771 = vunpack.c.l.b16 %v291
      %v772 = vunpack.c.l.b16 %v292
      %v773 = vunpack.c.l.b16 %v293
      %v774 = vunpack.c.l.b16 %v294
      %v775 = vunpack.c.l.b16 %v295
      %v776 = vunpack.c.l.b16 %v296
      %v777 = vunpack.c.l.b16 %v297
      %v778 = vunpack.c.l.b16 %v298
      %v779 = vunpack.c.l.b16 %v299
      %v780 = vunpack.c.l.b16 %v300
      %v781 = vunpack.c.l.b16 %v301
      %v782 = vunpack.c.l.b16 %v302
      %v783 = vunpack.c.l.b16 %v303
      %v784 = vunpack.c.l.b16 %v304
      %v785 = vunpack.c.l.b16 %v305
      %v786 = vunpack.c.l.b16 %v306
      %v787 = vunpack.c.l.b16 %v307
      %v788 = vunpack.c.l.b16 %v308
      %v789 = vunpack.c.l.b16 %v309
      %v790 = vunpack.c.l.b16 %v310
      %v791 = vunpack.c.l.b16 %v311
      %v792 = vunpack.c.l.b16 %v312
      %v793 = vunpack.c.l.b16 %v313
      %v794 = vunpack.c.l.b16 %v314
      %v795 = vunpack.c.l.b16 %v315
      %v796 = vunpack.c.l.b16 %v316
      %v797 = vunpack.c.l.b16 %v317
      %v798 = vunpack.c.l.b16 %v318
      %v799 = vunpack.c.l.b16 %v319
      %v800 = vunpack.c.l.b16 %v320
      %v801 = vunpack.c.l.b16 %v321
      %v802 = vunpack.c.l.b16 %v322
      %v803 = vunpack.c.l.b16 %v323
      %v804 = vunpack.c.l.b16 %v324
      %v805 = vunpack.c.l.b16 %v325
      %v806 = vunpack.c.l.b16 %v326
      %v807 = vunpack.c.l.b16 %v327
      %v808 = vunpack.c.l.b16 %v328
      %v809 = vunpack.c.l.b16 %v329
      %v810 = vunpack.c.l.b16 %v330
      %v811 = vunpack.c.l.b16 %v331
      %v812 = vunpack.c.l.b16 %v332
      %v813 = vunpack.c.l.b16 %v333
      %v814 = vunpack.c.l.b16 %v334
      %v815 = vunpack.c.l.b16 %v335
      %v816 = vunpack.c.l.b16 %v336
      %v817 = vunpack.c.l.b16 %v337
      %v818 = vunpack.c.l.b16 %v338
      %v819 = vunpack.c.l.b16 %v339
      %v820 = vunpack.c.l.b16 %v340
      %v821 = vunpack.c.l.b16 %v341
      %v822 = vunpack.c.l.b16 %v342
      %v823 = vunpack.c.l.b16 %v343
      %v824 = vunpack.c.l.b16 %v344
      %v825 = vunpack.c.l.b16 %v345
      %v826 = vunpack.c.l.b16 %v346
      %v827 = vunpack.c.l.b16 %v347
      %v828 = vunpack.c.l.b16 %v348
      %v829 = vunpack.c.l.b16 %v349
      %v830 = vunpack.c.l.b16 %v350
      %v831 = vunpack.c.l.b16 %v351
      %v832 = vunpack.c.l.b16 %v352
      %v833 = vunpack.c.l.b16 %v353
      %v834 = vunpack.c.l.b16 %v354
      %v835 = vunpack.c.l.b16 %v355
      %v836 = vunpack.c.l.b16 %v356
      %v837 = vunpack.c.l.b16 %v357
      %v838 = vunpack.c.l.b16 %v358
      %v839 = vunpack.c.l.b16 %v359
      %v840 = vunpack.c.l.b16 %v360
      %v841 = vunpack.c.l.b16 %v361
      %v842 = vunpack.c.l.b16 %v362
      %v843 = vunpack.c.l.b16 %v363
      %v844 = vunpack.c.l.b16 %v364
      %v845 = vunpack.c.l.b16 %v365
      %v846 = vunpack.c.l.b16 %v366
      %v847 = vunpack.c.l.b16 %v367
      %v848 = vunpack.c.l.b16 %v368
      %v849 = vunpack.c.l.b16 %v369
      %v850 = vunpack.c.l.b16 %v370
      %v851 = vunpack.c.l.b16 %v371
      %v852 = vunpack.c.l.b16 %v372
      %v853 = vunpack.c.l.b16 %v373
      %v854 = vunpack.c.l.b16 %v374
      %v855 = vunpack.c.l.b16 %v375
      %v856 = vunpack.c.l.b16 %v376
      %v857 = vunpack.c.l.b16 %v377
      %v858 = vunpack.c.l.b16 %v378
      %v859 = vunpack.c.l.b16 %v379
      %v860 = vunpack.c.l.b16 %v380
      %v861 = vunpack.c.l.b16 %v381
      %v862 = vunpack.c.l.b16 %v382
      %v863 = vunpack.c.l.b16 %v383
      %v864 = vunpack.c.l.b16 %v384
      %v865 = vunpack.c.l.b16 %v385
      %v866 = vunpack.c.l.b16 %v386
      %v867 = vunpack.c.l.b16 %v387
      %v868 = vunpack.c.l.b16 %v388
      %v869 = vunpack.c.l.b16 %v389
      %v870 = vunpack.c.l.b16 %v390
      %v871 = vunpack.c.l.b16 %v391
      %v872 = vunpack.c.l.b16 %v392
      %v873 = vunpack.c.l.b16 %v393
      %v874 = vunpack.c.l.b16 %v394
      %v875 = vunpack.c.l.b16 %v395
      %v876 = vunpack.c.l.b16 %v396
      %v877 = vunpack.c.l.b16 %v397
      %v878 = vunpack.c.l.b16 %v398
      %v879 = vunpack.c.l.b16 %v399
      %v880 = vunpack.c.l.b16 %v400
      %v881 = vunpack.c.l.b16 %v401
      %v882 = vunpack.c.l.b16 %v402
      %v883 = vunpack.c.l.b16 %v403
      %v884 = vunpack.c.l.b16 %v404
      %v885 = vunpack.c.l.b16 %v405
      %v886 = vunpack.c.l.b16 %v406
      %v887 = vunpack.c.l.b16 %v407
      %v888 = vunpack.c.l.b16 %v408
      %v889 = vunpack.c.l.b16 %v409
      %v890 = vunpack.c.l.b16 %v410
      %v891 = vunpack.c.l.b16 %v411
      %v892 = vunpack.c.l.b16 %v412
      %v893 = vunpack.c.l.b16 %v413
      %v894 = vunpack.c.l.b16 %v414
      %v895 = vunpack.c.l.b16 %v415
      %v896 = vunpack.c.l.b16 %v416
      %v897 = vunpack.c.l.b16 %v417
      %v898 = vunpack.c.l.b16 %v418
      %v899 = vunpack.c.l.b16 %v419
      %v900 = vunpack.c.l.b16 %v420
      %v901 = vunpack.c.l.b16 %v421
      %v902 = vunpack.c.l.b16 %v422
      %v903 = vunpack.c.l.b16 %v423
      %v904 = vunpack.c.l.b16 %v424
      %v905 = vunpack.c.l.b16 %v425
      %v906 = vunpack.c.l.b16 %v426
      %v907 = vunpack.c.l.b16 %v427
      %v908 = vunpack.c.l.b16 %v428
      %v909 = vunpack.c.l.b16 %v429
      %v910 = vunpack.c.l.b16 %v430
      %v911 = vunpack.c.l.b16 %v431
      %v912 = vunpack.c.l.b16 %v432
      %v913 = vunpack.c.l.b16 %v433
      %v914 = vunpack.c.l.b16 %v434
      %v915 = vunpack.c.l.b16 %v435
      %v916 = vunpack.c.l.b16 %v436
      %v917 = vunpack.c.l.b16 %v437
      %v918 = vunpack.c.l.b16 %v438
      %v919 = vunpack.c.l.b16 %v439
      %v920 = vunpack.c.l.b16 %v440
      %v921 = vunpack.c.l.b16 %v441
      %v922 = vunpack.c.l.b16 %v442
      %v923 = vunpack.c.l.b16 %v443
      %v924 = vunpack.c.l.b16 %v444
      %v925 = vunpack.c.l.b16 %v445
      %v926 = vunpack.c.l.b16 %v446
      %v927 = vunpack.c.l.b16 %v447
      %v928 = vunpack.c.l.b16 %v448
      %v929 = vunpack.c.l.b16 %v449
      %v930 = vunpack.c.l.b16 %v450
      %v931 = vunpack.c.l.b16 %v451
      %v932 = vunpack.c.l.b16 %v452
      %v933 = vunpack.c.l.b16 %v453
      %v934 = vunpack.c.l.b16 %v454
      %v935 = vunpack.c.l.b16 %v455
      %v936 = vunpack.c.l.b16 %v456
      %v937 = vunpack.c.l.b16 %v457
      %v938 = vunpack.c.l.b16 %v458
      %v939 = vunpack.c.l.b16 %v459
      %v940 = vunpack.c.l.b16 %v460
      %v941 = vunpack.c.l.b16 %v461
      %v942 = vunpack.c.l.b16 %v462
      %v943 = vunpack.c.l.b16 %v463
      %v944 = vpack.c.b16 %v721, %v720
      %v945 = vpack.c.b16 %v723, %v722
      %v946 = vpack.c.b16 %v725, %v724
      %v947 = vpack.c.b16 %v727, %v726
      %v948 = vpack.c.b16 %v729, %v728
      %v949 = vpack.c.b16 %v731, %v730
      %v950 = vpack.c.b16 %v733, %v732
      %v951 = vpack.c.b16 %v735, %v734
      %v952 = vpack.c.b16 %v737, %v736
      %v953 = vpack.c.b16 %v739, %v738
      %v954 = vpack.c.b16 %v741, %v740
      %v955 = vpack.c.b16 %v743, %v742
      %v956 = vpack.c.b16 %v745, %v744
      %v957 = vpack.c.b16 %v747, %v746
      %v958 = vpack.c.b16 %v749, %v748
      %v959 = vpack.c.b16 %v751, %v750
      %v960 = vpack.c.b16 %v753, %v752
      %v961 = vpack.c.b16 %v755, %v754
      %v962 = vpack.c.b16 %v757, %v756
      %v963 = vpack.c.b16 %v759, %v758
      %v964 = vpack.c.b16 %v761, %v760
      %v965 = vpack.c.b16 %v763, %v762
      %v966 = vpack.c.b16 %v765, %v764
      %v967 = vpack.c.b16 %v767, %v766
      %v968 = vpack.c.b16 %v769, %v768
      %v969 = vpack.c.b16 %v771, %v770
      %v970 = vpack.c.b16 %v773, %v772
      %v971 = vpack.c.b16 %v775, %v774
      %v972 = vpack.c.b16 %v777, %v776
      %v973 = vpack.c.b16 %v779, %v778
      %v974 = vpack.c.b16 %v781, %v780
      %v975 = vpack.c.b16 %v783, %v782
      %v976 = vpack.c.b16 %v785, %v784
      %v977 = vpack.c.b16 %v787, %v786
      %v978 = vpack.c.b16 %v789, %v788
      %v979 = vpack.c.b16 %v791, %v790
      %v980 = vpack.c.b16 %v793, %v792
      %v981 = vpack.c.b16 %v795, %v794
      %v982 = vpack.c.b16 %v797, %v796
      %v983 = vpack.c.b16 %v799, %v798
      %v984 = vpack.c.b16 %v801, %v800
      %v985 = vpack.c.b16 %v803, %v802
      %v986 = vpack.c.b16 %v805, %v804
      %v987 = vpack.c.b16 %v807, %v806
      %v988 = vpack.c.b16 %v809, %v808
      %v989 = vpack.c.b16 %v811, %v810
      %v990 = vpack.c.b16 %v813, %v812
      %v991 = vpack.c.b16 %v815, %v814
      %v992 = vpack.c.b16 %v817, %v816
      %v993 = vpack.c.b16 %v819, %v818
      %v994 = vpack.c.b16 %v821, %v820
      %v995 = vpack.c.b16 %v823, %v822
      %v996 = vpack.c.b16 %v825, %v824
      %v997 = vpack.c.b16 %v827, %v826
      %v998 = vpack.c.b16 %v829, %v828
      %v999 = vpack.c.b16 %v831, %v830
      %v1000 = vpack.c.b16 %v833, %v832
      %v1001 = vpack.c.b16 %v835, %v834
      %v1002 = vpack.c.b16 %v837, %v836
      %v1003 = vpack.c.b16 %v839, %v838
      %v1004 = vpack.c.b16 %v841, %v840
      %v1005 = vpack.c.b16 %v843, %v842
      %v1006 = vpack.c.b16 %v845, %v844
      %v1007 = vpack.c.b16 %v847, %v846
      %v1008 = vpack.c.b16 %v849, %v848
      %v1009 = vpack.c.b16 %v851, %v850
      %v1010 = vpack.c.b16 %v853, %v852
      %v1011 = vpack.c.b16 %v855, %v854
      %v1012 = vpack.c.b16 %v857, %v856
      %v1013 = vpack.c.b16 %v859, %v858
      %v1014 = vpack.c.b16 %v861, %v860
      %v1015 = vpack.c.b16 %v863, %v862
      %v1016 = vpack.c.b16 %v865, %v864
      %v1017 = vpack.c.b16 %v867, %v866
      %v1018 = vpack.c.b16 %v869, %v868
      %v1019 = vpack.c.b16 %v871, %v870
      %v1020 = vpack.c.b16 %v873, %v872
      %v1021 = vpack.c.b16 %v875, %v874
      %v1022 = vpack.c.b16 %v877, %v876
      %v1023 = vpack.c.b16 %v879, %v878
      %v1024 = vpack.c.b16 %v881, %v880
      %v1025 = vpack.c.b16 %v883, %v882
      %v1026 = vpack.c.b16 %v885, %v884
      %v1027 = vpack.c.b16 %v887, %v886
      %v1028 = vpack.c.b16 %v889, %v888
      %v1029 = vpack.c.b16 %v891, %v890
      %v1030 = vpack.c.b16 %v893, %v892
      %v1031 = vpack.c.b16 %v895, %v894
      %v1032 = vpack.c.b16 %v897, %v896
      %v1033 = vpack.c.b16 %v899, %v898
      %v1034 = vpack.c.b16 %v901, %v900
      %v1035 = vpack.c.b16 %v903, %v902
      %v1036 = vpack.c.b16 %v905, %v904
      %v1037 = vpack.c.b16 %v907, %v906
      %v1038 = vpack.c.b16 %v909, %v908
      %v1039 = vpack.c.b16 %v911, %v910
      %v1040 = vpack.c.b16 %v913, %v912
      %v1041 = vpack.c.b16 %v915, %v914
      %v1042 = vpack.c.b16 %v917, %v916
      %v1043 = vpack.c.b16 %v919, %v918
      %v1044 = vpack.c.b16 %v921, %v920
      %v1045 = vpack.c.b16 %v923, %v922
      %v1046 = vpack.c.b16 %v925, %v924
      %v1047 = vpack.c.b16 %v927, %v926
      %v1048 = vpack.c.b16 %v929, %v928
      %v1049 = vpack.c.b16 %v931, %v930
      %v1050 = vpack.c.b16 %v933, %v932
      %v1051 = vpack.c.b16 %v935, %v934
      %v1052 = vpack.c.b16 %v937, %v936
      %v1053 = vpack.c.b16 %v939, %v938
      %v1054 = vpack.c.b16 %v941, %v940
      %v1055 = vpack.c.b16 %v943, %v942
      %1168 = vmatpush.bf16.msra.mxu0 %v951
      %1169 = vmatpush.bf16.msra.mxu0 %v950
      %1170 = vmatpush.bf16.msra.mxu0 %v949
      %1171 = vmatpush.bf16.msra.mxu0 %v948
      %1172 = vmatpush.bf16.msra.mxu0 %v947
      %1173 = vmatpush.bf16.msra.mxu0 %v946
      %1174 = vmatpush.bf16.msra.mxu0 %v945
      %1175 = vmatpush.bf16.msra.mxu0 %v944
      %1176 = vmatmul.bf16.gmra.mxu0 %v466
      %v1177 = vpop.f32.mrf.mxu0
      %v1178 = vadd.f32 0.0, %v1177
      %v1179 = vpop.f32.mrf.mxu0
      %1180 = vdwg.mxu0
      %1181 = vmatpush.bf16.msra.mxu0 %v959
      %1182 = vmatpush.bf16.msra.mxu0 %v958
      %1183 = vmatpush.bf16.msra.mxu0 %v957
      %1184 = vmatpush.bf16.msra.mxu0 %v956
      %1185 = vmatpush.bf16.msra.mxu0 %v955
      %1186 = vmatpush.bf16.msra.mxu0 %v954
      %1187 = vmatpush.bf16.msra.mxu0 %v953
      %1188 = vmatpush.bf16.msra.mxu0 %v952
      %1189 = vmatmul.bf16.gmra.mxu0 %v467
      %v1190 = vpop.f32.mrf.mxu0
      %v1191 = vadd.f32 %v1178, %v1190
      %v1192 = vpop.f32.mrf.mxu0
      %1193 = vdwg.mxu0
      %1194 = vmatpush.bf16.msra.mxu0 %v967
      %1195 = vmatpush.bf16.msra.mxu0 %v966
      %1196 = vmatpush.bf16.msra.mxu0 %v965
      %1197 = vmatpush.bf16.msra.mxu0 %v964
      %1198 = vmatpush.bf16.msra.mxu0 %v963
      %1199 = vmatpush.bf16.msra.mxu0 %v962
      %1200 = vmatpush.bf16.msra.mxu0 %v961
      %1201 = vmatpush.bf16.msra.mxu0 %v960
      %1202 = vmatmul.bf16.gmra.mxu0 %v468
      %v1203 = vpop.f32.mrf.mxu0
      %v1204 = vadd.f32 %v1191, %v1203
      %v1205 = vpop.f32.mrf.mxu0
      %1206 = vdwg.mxu0
      %1207 = vmatpush.bf16.msra.mxu0 %v975
      %1208 = vmatpush.bf16.msra.mxu0 %v974
      %1209 = vmatpush.bf16.msra.mxu0 %v973
      %1210 = vmatpush.bf16.msra.mxu0 %v972
      %1211 = vmatpush.bf16.msra.mxu0 %v971
      %1212 = vmatpush.bf16.msra.mxu0 %v970
      %1213 = vmatpush.bf16.msra.mxu0 %v969
      %1214 = vmatpush.bf16.msra.mxu0 %v968
      %1215 = vmatmul.bf16.gmra.mxu0 %v469
      %v1216 = vpop.f32.mrf.mxu0
      %v1217 = vadd.f32 %v1204, %v1216
      %v1218 = vpop.f32.mrf.mxu0
      %1219 = vdwg.mxu0
      %1220 = vmatpush.bf16.msra.mxu0 %v983
      %1221 = vmatpush.bf16.msra.mxu0 %v982
      %1222 = vmatpush.bf16.msra.mxu0 %v981
      %1223 = vmatpush.bf16.msra.mxu0 %v980
      %1224 = vmatpush.bf16.msra.mxu0 %v979
      %1225 = vmatpush.bf16.msra.mxu0 %v978
      %1226 = vmatpush.bf16.msra.mxu0 %v977
      %1227 = vmatpush.bf16.msra.mxu0 %v976
      %1228 = vmatmul.bf16.gmra.mxu0 %v470
      %v1229 = vpop.f32.mrf.mxu0
      %v1230 = vadd.f32 %v1217, %v1229
      %v1231 = vpop.f32.mrf.mxu0
      %1232 = vdwg.mxu0
      %1233 = vmatpush.bf16.msra.mxu0 %v991
      %1234 = vmatpush.bf16.msra.mxu0 %v990
      %1235 = vmatpush.bf16.msra.mxu0 %v989
      %1236 = vmatpush.bf16.msra.mxu0 %v988
      %1237 = vmatpush.bf16.msra.mxu0 %v987
      %1238 = vmatpush.bf16.msra.mxu0 %v986
      %1239 = vmatpush.bf16.msra.mxu0 %v985
      %1240 = vmatpush.bf16.msra.mxu0 %v984
      %1241 = vmatmul.bf16.gmra.mxu0 %v471
      %v1242 = vpop.f32.mrf.mxu0
      %v1243 = vadd.f32 %v1230, %v1242
      %v1244 = vpop.f32.mrf.mxu0
      %1245 = vdwg.mxu0
      %1246 = vmatpush.bf16.msra.mxu0 %v999
      %1247 = vmatpush.bf16.msra.mxu0 %v998
      %1248 = vmatpush.bf16.msra.mxu0 %v997
      %1249 = vmatpush.bf16.msra.mxu0 %v996
      %1250 = vmatpush.bf16.msra.mxu0 %v995
      %1251 = vmatpush.bf16.msra.mxu0 %v994
      %1252 = vmatpush.bf16.msra.mxu0 %v993
      %1253 = vmatpush.bf16.msra.mxu0 %v992
      %1254 = vmatmul.bf16.gmra.mxu0 %v472
      %v1255 = vpop.f32.mrf.mxu0
      %v1256 = vadd.f32 %v1243, %v1255
      %v1257 = vpop.f32.mrf.mxu0
      %1258 = vdwg.mxu0
      %1259 = vmatpush.bf16.msra.mxu0 %v1007
      %1260 = vmatpush.bf16.msra.mxu0 %v1006
      %1261 = vmatpush.bf16.msra.mxu0 %v1005
      %1262 = vmatpush.bf16.msra.mxu0 %v1004
      %1263 = vmatpush.bf16.msra.mxu0 %v1003
      %1264 = vmatpush.bf16.msra.mxu0 %v1002
      %1265 = vmatpush.bf16.msra.mxu0 %v1001
      %1266 = vmatpush.bf16.msra.mxu0 %v1000
      %1267 = vmatmul.bf16.gmra.mxu0 %v473
      %v1268 = vpop.f32.mrf.mxu0
      %v1269 = vadd.f32 %v1256, %v1268
      %v1270 = vpop.f32.mrf.mxu0
      %1271 = vdwg.mxu0
      %1272 = vmatpush.bf16.msra.mxu0 %v1015
      %1273 = vmatpush.bf16.msra.mxu0 %v1014
      %1274 = vmatpush.bf16.msra.mxu0 %v1013
      %1275 = vmatpush.bf16.msra.mxu0 %v1012
      %1276 = vmatpush.bf16.msra.mxu0 %v1011
      %1277 = vmatpush.bf16.msra.mxu0 %v1010
      %1278 = vmatpush.bf16.msra.mxu0 %v1009
      %1279 = vmatpush.bf16.msra.mxu0 %v1008
      %1280 = vmatmul.bf16.gmra.mxu0 %v476
      %v1281 = vpop.f32.mrf.mxu0
      %v1282 = vadd.f32 %v1269, %v1281
      %v1283 = vpop.f32.mrf.mxu0
      %1284 = vdwg.mxu0
      %1285 = vmatpush.bf16.msra.mxu0 %v1023
      %1286 = vmatpush.bf16.msra.mxu0 %v1022
      %1287 = vmatpush.bf16.msra.mxu0 %v1021
      %1288 = vmatpush.bf16.msra.mxu0 %v1020
      %1289 = vmatpush.bf16.msra.mxu0 %v1019
      %1290 = vmatpush.bf16.msra.mxu0 %v1018
      %1291 = vmatpush.bf16.msra.mxu0 %v1017
      %1292 = vmatpush.bf16.msra.mxu0 %v1016
      %1293 = vmatmul.bf16.gmra.mxu0 %v477
      %v1294 = vpop.f32.mrf.mxu0
      %v1295 = vadd.f32 %v1282, %v1294
      %v1296 = vpop.f32.mrf.mxu0
      %1297 = vdwg.mxu0
      %1298 = vmatpush.bf16.msra.mxu0 %v1031
      %1299 = vmatpush.bf16.msra.mxu0 %v1030
      %1300 = vmatpush.bf16.msra.mxu0 %v1029
      %1301 = vmatpush.bf16.msra.mxu0 %v1028
      %1302 = vmatpush.bf16.msra.mxu0 %v1027
      %1303 = vmatpush.bf16.msra.mxu0 %v1026
      %1304 = vmatpush.bf16.msra.mxu0 %v1025
      %1305 = vmatpush.bf16.msra.mxu0 %v1024
      %1306 = vmatmul.bf16.gmra.mxu0 %v478
      %v1307 = vpop.f32.mrf.mxu0
      %v1308 = vadd.f32 %v1295, %v1307
      %v1309 = vpop.f32.mrf.mxu0
      %1310 = vdwg.mxu0
      %1311 = vmatpush.bf16.msra.mxu0 %v1039
      %1312 = vmatpush.bf16.msra.mxu0 %v1038
      %1313 = vmatpush.bf16.msra.mxu0 %v1037
      %1314 = vmatpush.bf16.msra.mxu0 %v1036
      %1315 = vmatpush.bf16.msra.mxu0 %v1035
      %1316 = vmatpush.bf16.msra.mxu0 %v1034
      %1317 = vmatpush.bf16.msra.mxu0 %v1033
      %1318 = vmatpush.bf16.msra.mxu0 %v1032
      %1319 = vmatmul.bf16.gmra.mxu0 %v479
      %v1320 = vpop.f32.mrf.mxu0
      %v1321 = vadd.f32 %v1308, %v1320
      %v1322 = vpop.f32.mrf.mxu0
      %1323 = vdwg.mxu0
      %1324 = vmatpush.bf16.msra.mxu0 %v1047
      %1325 = vmatpush.bf16.msra.mxu0 %v1046
      %1326 = vmatpush.bf16.msra.mxu0 %v1045
      %1327 = vmatpush.bf16.msra.mxu0 %v1044
      %1328 = vmatpush.bf16.msra.mxu0 %v1043
      %1329 = vmatpush.bf16.msra.mxu0 %v1042
      %1330 = vmatpush.bf16.msra.mxu0 %v1041
      %1331 = vmatpush.bf16.msra.mxu0 %v1040
      %1332 = vmatmul.bf16.gmra.mxu0 %v480
      %v1333 = vpop.f32.mrf.mxu0
      %v1334 = vadd.f32 %v1321, %v1333
      %v1335 = vpop.f32.mrf.mxu0
      %1336 = vdwg.mxu0
      %1337 = vmatpush.bf16.msra.mxu0 %v1055
      %1338 = vmatpush.bf16.msra.mxu0 %v1054
      %1339 = vmatpush.bf16.msra.mxu0 %v1053
      %1340 = vmatpush.bf16.msra.mxu0 %v1052
      %1341 = vmatpush.bf16.msra.mxu0 %v1051
      %1342 = vmatpush.bf16.msra.mxu0 %v1050
      %1343 = vmatpush.bf16.msra.mxu0 %v1049
      %1344 = vmatpush.bf16.msra.mxu0 %v1048
      %1345 = vmatmul.bf16.gmra.mxu0 %v481
      %v1346 = vpop.f32.mrf.mxu0
      %v1347 = vadd.f32 %v1334, %v1346
      %v1348 = vpop.f32.mrf.mxu0
      %1349 = vdwg.mxu0
      %v1350 = vadd.f32 %v237, %v1347
      %vm1351 = vcmask 254976
      %1352 = vst.msk [vmem:[#allocation2] sm:$0x3] %vm1351, %v1350
      %p1353 = scmp.eq.s32.totalorder %s16, 6
      // Predicated region
      $region45: #{discriminator_forward.5} parent=39 // pred_check
        %p1354 = pneg %p1353
      $region46: #{discriminator_forward.5} parent=39 // pred_check_branch
        %1356 = sbr.rel (%p1354) target = $region48
      $region47: #{discriminator_forward.5} parent=39 // pred_region
        %v1357 = vld [vmem:[#allocation2] sm:$0x3]
        %v1358 = vld [vmem:[%s2] sm:$0x1]
        %v1360 = vperm.slane %v1358, 0
        %v1362 = vadd.f32 %v1357, %v1360
        %v1363 = vsel %vm1351, %v1362, 0.0
        %v1364 = vrot.slane %v1363, 4
        %v1365 = vadd.f32 %v1363, %v1364
        %v1366 = vrot.slane %v1365, 2
        %v1367 = vadd.f32 %v1365, %v1366
        %v1368 = vrot.slane %v1367, 1
        %v1369 = vadd.f32 %v1367, %v1368
        %v1370 = vrcp.pop 2.0
        %v1371 = vmul.f32 2.0, %v1370
        %v1372 = vsub.f32 1.0, %v1371
        %v1373 = vmul.f32 %v1370, %v1372
        %v1374 = vadd.f32 %v1370, %v1373
        %vm1375 = vweird.f32 %v1370
        %v1376 = vsel %vm1375, %v1370, %v1374
        %v1377 = vmul.f32 %v1369, %v1376
        %v1378 = vsub.f32 %v1362, %v1377
        %v1379 = vmul.f32 %v1378, %v1378
        %v1380 = vsel %vm1351, %v1379, 0.0
        %v1381 = vrot.slane %v1380, 4
        %v1382 = vadd.f32 %v1380, %v1381
        %v1383 = vrot.slane %v1382, 2
        %v1384 = vadd.f32 %v1382, %v1383
        %v1385 = vrot.slane %v1384, 1
        %v1386 = vadd.f32 %v1384, %v1385
        %v1387 = vmul.f32 %v1386, %v1376
        %v1388 = vadd.f32 %v1387, 1e-05
        %v1389 = vrsqrt.pop %v1388
        %v1390 = vmul.f32 %v1389, %v1388
        %v1391 = vmul.f32 %v1390, %v1389
        %v1392 = vmul.f32 0.5, %v1391
        %v1393 = vsub.f32 1.5, %v1392
        %v1394 = vmul.f32 %v1389, %v1393
        %vm1395 = vweird.f32 %v1388
        %vm1396 = vweird.f32 %v1389
        %vm1397 = vmor %vm1395, %vm1396
        %v1398 = vsel %vm1397, %v1389, %v1394
        %v1399 = vmul.f32 %v1378, %v1398
        %v1400 = vld [vmem:[%s3] sm:$0x1]
        %v1402 = vperm.slane %v1400, 0
        %v1404 = vmul.f32 %v1399, %v1402
        %v1405 = vld [vmem:[%s4] sm:$0x1]
        %v1407 = vperm.slane %v1405, 0
        %v1409 = vadd.f32 %v1404, %v1407
        %v1410 = vmax.f32 %v1409, 0.0
        %1411 = vst.msk [vmem:[%s5] sm:$0x3] %vm1351, %v1410
      $region48: #{discriminator_forward.5} parent=39 // pred_fallthru
        _
      // Predicated region
      $region49: #{discriminator_forward.5} parent=39 // pred_check
        %p1412 = pneg %p144
      $region50: #{discriminator_forward.5} parent=39 // pred_check_branch
        %1414 = sbr.rel (%p1412) target = $region52
      $region51: #{discriminator_forward.5} parent=39 // pred_region
        _
      $region52: #{discriminator_forward.5} parent=39 // pred_fallthru
        _
      // Predicated region
      $region53: #{discriminator_forward.5} parent=39 // pred_check
        %p1415 = pneg %p144
      $region54: #{discriminator_forward.5} parent=39 // pred_check_branch
        %1417 = sbr.rel (%p1415) target = $region56
      $region55: #{discriminator_forward.5} parent=39 // pred_region
        _
      $region56: #{discriminator_forward.5} parent=39 // pred_fallthru
        _
    $region40: #{discriminator_forward.5} parent=5 // pred_fallthru
      _
    %p1418 = scmp.le.s32.totalorder 2, %s11
    // Predicated region
    $region57: #{discriminator_forward.5} parent=5 // pred_check
      %p1419 = pneg %p1418
    $region58: #{discriminator_forward.5} parent=5 // pred_check_branch
      %1421 = sbr.rel (%p1419) target = $region60
    $region59: #{discriminator_forward.5} parent=5 // pred_region
      %s1422 = ssub.s32 %s11, 2
    $region60: #{discriminator_forward.5} parent=5 // pred_fallthru
      _
  $region6: #{discriminator_forward.5} parent=0 // loop_footer
    %s15 = sadd.s32 1, %s11
  $region7: #{discriminator_forward.5} parent=0 // loop_footer_branch
    %10 = sbr.rel target = $region3
  $region8: #{discriminator_forward.5} parent=0 // loop_exit
    _

// kernel: discriminator_forward.7
$region0: #{discriminator_forward.7}
  #allocation0 [shape = 'u32[]', space=smem, size = 0x4, offset = 0x4, fixed_abs, tag = 'smem constant byte address 0x4 - core index']
  #allocation1 [shape = 'u32[72,128]{1,0:T(1,128)}', space=vmem, size = 0x9000, scoped, tag = 'internal scratch']
  %s0 = inlined_call_operand.vmem [shape: bf16[4,256], index: 0, kind: input, shape index: {}]
  %s1 = inlined_call_operand.vmem [shape: bf16[256,450], index: 1, kind: input, shape index: {}]
  %s2 = inlined_call_operand.vmem [shape: f32[4,1], index: 2, kind: input, shape index: {}]
  %s3 = inlined_call_operand.vmem [shape: f32[4,450], index: 3, kind: output, shape index: {}]
  %s4 = sld [smem:[#allocation0]]
  $region22: #{discriminator_forward.7} parent=0
    _
  %s6 = ssub.s32 1, %s4
  %s7 = scalar_select 0, %s6, %s4
  // Predicated region
  $region2: #{discriminator_forward.7} parent=0 // pred_check
    _
  $region3: #{discriminator_forward.7} parent=0 // pred_check_branch
    %9 = sbr.rel (0) target = $region5
  $region4: #{discriminator_forward.7} parent=0 // pred_region
    _
  $region5: #{discriminator_forward.7} parent=0 // pred_fallthru
    _
  // Predicated region
  $region6: #{discriminator_forward.7} parent=0 // pred_check
    _
  $region7: #{discriminator_forward.7} parent=0 // pred_check_branch
    %11 = sbr.rel (0) target = $region9
  $region8: #{discriminator_forward.7} parent=0 // pred_region
    _
  $region9: #{discriminator_forward.7} parent=0 // pred_fallthru
    _
  // Predicated region
  $region10: #{discriminator_forward.7} parent=0 // pred_check
    _
  $region11: #{discriminator_forward.7} parent=0 // pred_check_branch
    %13 = sbr.rel (0) target = $region13
  $region12: #{discriminator_forward.7} parent=0 // pred_region
    _
  $region13: #{discriminator_forward.7} parent=0 // pred_fallthru
    _
  %v14 = vld [vmem:[%s0] sm:$0xf]
  %v15 = vld [vmem:[%s1] sm:$0xff]
  %v16 = vld [vmem:[%s1 + $0x8] sm:$0xff]
  %v17 = vld [vmem:[%s1 + $0x10] sm:$0xff]
  %v18 = vld [vmem:[%s1 + $0x18] sm:$0xff]
  %v19 = vld [vmem:[%s1 + $0x20] sm:$0xff]
  %v20 = vld [vmem:[%s1 + $0x28] sm:$0xff]
  %v21 = vld [vmem:[%s1 + $0x30] sm:$0xff]
  %v22 = vld [vmem:[%s1 + $0x38] sm:$0xff]
  %v23 = vld [vmem:[%s1 + $0x40] sm:$0xff]
  %v24 = vld [vmem:[%s1 + $0x48] sm:$0xff]
  %v25 = vld [vmem:[%s1 + $0x50] sm:$0xff]
  %v26 = vld [vmem:[%s1 + $0x58] sm:$0xff]
  %v27 = vld [vmem:[%s1 + $0x60] sm:$0xff]
  %v28 = vld [vmem:[%s1 + $0x68] sm:$0xff]
  %v29 = vld [vmem:[%s1 + $0x70] sm:$0xff]
  %v30 = vld [vmem:[%s1 + $0x78] sm:$0xff]
  %v31 = vld [vmem:[%s1 + $0x80] sm:$0xff]
  %v32 = vld [vmem:[%s1 + $0x88] sm:$0xff]
  %v33 = vld [vmem:[%s1 + $0x90] sm:$0xff]
  %v34 = vld [vmem:[%s1 + $0x98] sm:$0xff]
  %v35 = vld [vmem:[%s1 + $0xa0] sm:$0xff]
  %v36 = vld [vmem:[%s1 + $0xa8] sm:$0xff]
  %v37 = vld [vmem:[%s1 + $0xb0] sm:$0xff]
  %v38 = vld [vmem:[%s1 + $0xb8] sm:$0xff]
  %v39 = vld [vmem:[%s1 + $0xc0] sm:$0xff]
  %v40 = vld [vmem:[%s1 + $0xc8] sm:$0xff]
  %v41 = vld [vmem:[%s1 + $0xd0] sm:$0xff]
  %v42 = vld [vmem:[%s1 + $0xd8] sm:$0xff]
  %v43 = vld [vmem:[%s1 + $0xe0] sm:$0xff]
  %v44 = vld [vmem:[%s1 + $0xe8] sm:$0xff]
  %v45 = vld [vmem:[%s1 + $0xf0] sm:$0xff]
  %v46 = vld [vmem:[%s1 + $0xf8] sm:$0xff]
  %v47 = vld [vmem:[%s1 + $0x100] sm:$0xff]
  %v48 = vld [vmem:[%s1 + $0x108] sm:$0xff]
  %v49 = vld [vmem:[%s1 + $0x110] sm:$0xff]
  %v50 = vld [vmem:[%s1 + $0x118] sm:$0xff]
  %v51 = vld [vmem:[%s1 + $0x120] sm:$0xff]
  %v52 = vld [vmem:[%s1 + $0x128] sm:$0xff]
  %v53 = vld [vmem:[%s1 + $0x130] sm:$0xff]
  %v54 = vld [vmem:[%s1 + $0x138] sm:$0xff]
  %v55 = vld [vmem:[%s1 + $0x140] sm:$0xff]
  %v56 = vld [vmem:[%s1 + $0x148] sm:$0xff]
  %v57 = vld [vmem:[%s1 + $0x150] sm:$0xff]
  %v58 = vld [vmem:[%s1 + $0x158] sm:$0xff]
  %v59 = vld [vmem:[%s1 + $0x160] sm:$0xff]
  %v60 = vld [vmem:[%s1 + $0x168] sm:$0xff]
  %v61 = vld [vmem:[%s1 + $0x170] sm:$0xff]
  %v62 = vld [vmem:[%s1 + $0x178] sm:$0xff]
  %v63 = vld [vmem:[%s1 + $0x180] sm:$0xff]
  %v64 = vld [vmem:[%s1 + $0x188] sm:$0xff]
  %v65 = vld [vmem:[%s1 + $0x190] sm:$0xff]
  %v66 = vld [vmem:[%s1 + $0x198] sm:$0xff]
  %v67 = vld [vmem:[%s1 + $0x1a0] sm:$0xff]
  %v68 = vld [vmem:[%s1 + $0x1a8] sm:$0xff]
  %v69 = vld [vmem:[%s1 + $0x1b0] sm:$0xff]
  %v70 = vld [vmem:[%s1 + $0x1b8] sm:$0xff]
  %v71 = vld [vmem:[%s1 + $0x1c0] sm:$0xff]
  %v72 = vld [vmem:[%s1 + $0x1c8] sm:$0xff]
  %v73 = vld [vmem:[%s1 + $0x1d0] sm:$0xff]
  %v74 = vld [vmem:[%s1 + $0x1d8] sm:$0xff]
  %v75 = vld [vmem:[%s1 + $0x1e0] sm:$0xff]
  %v76 = vld [vmem:[%s1 + $0x1e8] sm:$0xff]
  %v77 = vld [vmem:[%s1 + $0x1f0] sm:$0xff]
  %v78 = vld [vmem:[%s1 + $0x1f8] sm:$0xff]
  %v79 = vld [vmem:[%s2] sm:$0xf]
  %81 = vset.pattern.permute.xlu0 0
  %82 = vperm.xlu0 %81, %v79
  %v83 = vpop.permute.xlu0 %82
  %86 = vst [vmem:[#allocation1] ss:$4 sm:$0xff] %v14
  %v87 = vld.sshfl [vmem:[#allocation1] sm:$0xff pattern:$0x73625140]
  %v88 = vld.sshfl [vmem:[#allocation1 + $0x8] sm:$0xff pattern:$0x73625140]
  %v155 = vunpack.c.l.b16 %v15
  %v156 = vunpack.c.h.b16 %v15
  %v157 = vunpack.c.l.b16 %v16
  %v158 = vunpack.c.h.b16 %v16
  %v159 = vunpack.c.l.b16 %v17
  %v160 = vunpack.c.h.b16 %v17
  %v161 = vunpack.c.l.b16 %v18
  %v162 = vunpack.c.h.b16 %v18
  %v163 = vunpack.c.l.b16 %v19
  %v164 = vunpack.c.h.b16 %v19
  %v165 = vunpack.c.l.b16 %v20
  %v166 = vunpack.c.h.b16 %v20
  %v167 = vunpack.c.l.b16 %v21
  %v168 = vunpack.c.h.b16 %v21
  %v169 = vunpack.c.l.b16 %v22
  %v170 = vunpack.c.h.b16 %v22
  %v171 = vunpack.c.l.b16 %v23
  %v172 = vunpack.c.h.b16 %v23
  %v173 = vunpack.c.l.b16 %v24
  %v174 = vunpack.c.h.b16 %v24
  %v175 = vunpack.c.l.b16 %v25
  %v176 = vunpack.c.h.b16 %v25
  %v177 = vunpack.c.l.b16 %v26
  %v178 = vunpack.c.h.b16 %v26
  %v179 = vunpack.c.l.b16 %v27
  %v180 = vunpack.c.h.b16 %v27
  %v181 = vunpack.c.l.b16 %v28
  %v182 = vunpack.c.h.b16 %v28
  %v183 = vunpack.c.l.b16 %v29
  %v184 = vunpack.c.h.b16 %v29
  %v185 = vunpack.c.l.b16 %v30
  %v186 = vunpack.c.h.b16 %v30
  %v187 = vunpack.c.l.b16 %v31
  %v188 = vunpack.c.h.b16 %v31
  %v189 = vunpack.c.l.b16 %v32
  %v190 = vunpack.c.h.b16 %v32
  %v191 = vunpack.c.l.b16 %v33
  %v192 = vunpack.c.h.b16 %v33
  %v193 = vunpack.c.l.b16 %v34
  %v194 = vunpack.c.h.b16 %v34
  %v195 = vunpack.c.l.b16 %v35
  %v196 = vunpack.c.h.b16 %v35
  %v197 = vunpack.c.l.b16 %v36
  %v198 = vunpack.c.h.b16 %v36
  %v199 = vunpack.c.l.b16 %v37
  %v200 = vunpack.c.h.b16 %v37
  %v201 = vunpack.c.l.b16 %v38
  %v202 = vunpack.c.h.b16 %v38
  %v203 = vunpack.c.l.b16 %v39
  %v204 = vunpack.c.h.b16 %v39
  %v205 = vunpack.c.l.b16 %v40
  %v206 = vunpack.c.h.b16 %v40
  %v207 = vunpack.c.l.b16 %v41
  %v208 = vunpack.c.h.b16 %v41
  %v209 = vunpack.c.l.b16 %v42
  %v210 = vunpack.c.h.b16 %v42
  %v211 = vunpack.c.l.b16 %v43
  %v212 = vunpack.c.h.b16 %v43
  %v213 = vunpack.c.l.b16 %v44
  %v214 = vunpack.c.h.b16 %v44
  %v215 = vunpack.c.l.b16 %v45
  %v216 = vunpack.c.h.b16 %v45
  %v217 = vunpack.c.l.b16 %v46
  %v218 = vunpack.c.h.b16 %v46
  %v219 = vunpack.c.l.b16 %v47
  %v220 = vunpack.c.h.b16 %v47
  %v221 = vunpack.c.l.b16 %v48
  %v222 = vunpack.c.h.b16 %v48
  %v223 = vunpack.c.l.b16 %v49
  %v224 = vunpack.c.h.b16 %v49
  %v225 = vunpack.c.l.b16 %v50
  %v226 = vunpack.c.h.b16 %v50
  %v227 = vunpack.c.l.b16 %v51
  %v228 = vunpack.c.h.b16 %v51
  %v229 = vunpack.c.l.b16 %v52
  %v230 = vunpack.c.h.b16 %v52
  %v231 = vunpack.c.l.b16 %v53
  %v232 = vunpack.c.h.b16 %v53
  %v233 = vunpack.c.l.b16 %v54
  %v234 = vunpack.c.h.b16 %v54
  %v235 = vunpack.c.l.b16 %v55
  %v236 = vunpack.c.h.b16 %v55
  %v237 = vunpack.c.l.b16 %v56
  %v238 = vunpack.c.h.b16 %v56
  %v239 = vunpack.c.l.b16 %v57
  %v240 = vunpack.c.h.b16 %v57
  %v241 = vunpack.c.l.b16 %v58
  %v242 = vunpack.c.h.b16 %v58
  %v243 = vunpack.c.l.b16 %v59
  %v244 = vunpack.c.h.b16 %v59
  %v245 = vunpack.c.l.b16 %v60
  %v246 = vunpack.c.h.b16 %v60
  %v247 = vunpack.c.l.b16 %v61
  %v248 = vunpack.c.h.b16 %v61
  %v249 = vunpack.c.l.b16 %v62
  %v250 = vunpack.c.h.b16 %v62
  %v251 = vunpack.c.l.b16 %v63
  %v252 = vunpack.c.h.b16 %v63
  %v253 = vunpack.c.l.b16 %v64
  %v254 = vunpack.c.h.b16 %v64
  %v255 = vunpack.c.l.b16 %v65
  %v256 = vunpack.c.h.b16 %v65
  %v257 = vunpack.c.l.b16 %v66
  %v258 = vunpack.c.h.b16 %v66
  %v259 = vunpack.c.l.b16 %v67
  %v260 = vunpack.c.h.b16 %v67
  %v261 = vunpack.c.l.b16 %v68
  %v262 = vunpack.c.h.b16 %v68
  %v263 = vunpack.c.l.b16 %v69
  %v264 = vunpack.c.h.b16 %v69
  %v265 = vunpack.c.l.b16 %v70
  %v266 = vunpack.c.h.b16 %v70
  %v267 = vunpack.c.l.b16 %v71
  %v268 = vunpack.c.h.b16 %v71
  %v269 = vunpack.c.l.b16 %v72
  %v270 = vunpack.c.h.b16 %v72
  %v271 = vunpack.c.l.b16 %v73
  %v272 = vunpack.c.h.b16 %v73
  %v273 = vunpack.c.l.b16 %v74
  %v274 = vunpack.c.h.b16 %v74
  %v275 = vunpack.c.l.b16 %v75
  %v276 = vunpack.c.h.b16 %v75
  %v277 = vunpack.c.l.b16 %v76
  %v278 = vunpack.c.h.b16 %v76
  %v279 = vunpack.c.l.b16 %v77
  %v280 = vunpack.c.h.b16 %v77
  %v281 = vunpack.c.l.b16 %v78
  %v282 = vunpack.c.h.b16 %v78
  %v283 = vpack.c.b16 %v159, %v155
  %v284 = vpack.c.b16 %v160, %v156
  %v285 = vpack.c.b16 %v161, %v157
  %v286 = vpack.c.b16 %v162, %v158
  %v287 = vpack.c.b16 %v167, %v163
  %v288 = vpack.c.b16 %v168, %v164
  %v289 = vpack.c.b16 %v169, %v165
  %v290 = vpack.c.b16 %v170, %v166
  %v291 = vpack.c.b16 %v175, %v171
  %v292 = vpack.c.b16 %v176, %v172
  %v293 = vpack.c.b16 %v177, %v173
  %v294 = vpack.c.b16 %v178, %v174
  %v295 = vpack.c.b16 %v183, %v179
  %v296 = vpack.c.b16 %v184, %v180
  %v297 = vpack.c.b16 %v185, %v181
  %v298 = vpack.c.b16 %v186, %v182
  %v299 = vpack.c.b16 %v191, %v187
  %v300 = vpack.c.b16 %v192, %v188
  %v301 = vpack.c.b16 %v193, %v189
  %v302 = vpack.c.b16 %v194, %v190
  %v303 = vpack.c.b16 %v199, %v195
  %v304 = vpack.c.b16 %v200, %v196
  %v305 = vpack.c.b16 %v201, %v197
  %v306 = vpack.c.b16 %v202, %v198
  %v307 = vpack.c.b16 %v207, %v203
  %v308 = vpack.c.b16 %v208, %v204
  %v309 = vpack.c.b16 %v209, %v205
  %v310 = vpack.c.b16 %v210, %v206
  %v311 = vpack.c.b16 %v215, %v211
  %v312 = vpack.c.b16 %v216, %v212
  %v313 = vpack.c.b16 %v217, %v213
  %v314 = vpack.c.b16 %v218, %v214
  %v315 = vpack.c.b16 %v223, %v219
  %v316 = vpack.c.b16 %v224, %v220
  %v317 = vpack.c.b16 %v225, %v221
  %v318 = vpack.c.b16 %v226, %v222
  %v319 = vpack.c.b16 %v231, %v227
  %v320 = vpack.c.b16 %v232, %v228
  %v321 = vpack.c.b16 %v233, %v229
  %v322 = vpack.c.b16 %v234, %v230
  %v323 = vpack.c.b16 %v239, %v235
  %v324 = vpack.c.b16 %v240, %v236
  %v325 = vpack.c.b16 %v241, %v237
  %v326 = vpack.c.b16 %v242, %v238
  %v327 = vpack.c.b16 %v247, %v243
  %v328 = vpack.c.b16 %v248, %v244
  %v329 = vpack.c.b16 %v249, %v245
  %v330 = vpack.c.b16 %v250, %v246
  %v331 = vpack.c.b16 %v255, %v251
  %v332 = vpack.c.b16 %v256, %v252
  %v333 = vpack.c.b16 %v257, %v253
  %v334 = vpack.c.b16 %v258, %v254
  %v335 = vpack.c.b16 %v263, %v259
  %v336 = vpack.c.b16 %v264, %v260
  %v337 = vpack.c.b16 %v265, %v261
  %v338 = vpack.c.b16 %v266, %v262
  %v339 = vpack.c.b16 %v271, %v267
  %v340 = vpack.c.b16 %v272, %v268
  %v341 = vpack.c.b16 %v273, %v269
  %v342 = vpack.c.b16 %v274, %v270
  %v343 = vpack.c.b16 %v279, %v275
  %v344 = vpack.c.b16 %v280, %v276
  %v345 = vpack.c.b16 %v281, %v277
  %v346 = vpack.c.b16 %v282, %v278
  %411 = vmatpush.bf16.msra.mxu0 %v311
  %412 = vmatpush.bf16.msra.mxu0 %v307
  %413 = vmatpush.bf16.msra.mxu0 %v303
  %414 = vmatpush.bf16.msra.mxu0 %v299
  %415 = vmatpush.bf16.msra.mxu0 %v295
  %416 = vmatpush.bf16.msra.mxu0 %v291
  %417 = vmatpush.bf16.msra.mxu0 %v287
  %418 = vmatpush.bf16.msra.mxu0 %v283
  %419 = vmatmul.bf16.gmra.mxu0 %v87
  %v420 = vpop.f32.mrf.mxu0
  %v421 = vadd.f32 %v83, %v420
  %v422 = vpop.f32.mrf.mxu0
  %423 = vdwg.mxu0
  %424 = vmatpush.bf16.msra.mxu0 %v343
  %425 = vmatpush.bf16.msra.mxu0 %v339
  %426 = vmatpush.bf16.msra.mxu0 %v335
  %427 = vmatpush.bf16.msra.mxu0 %v331
  %428 = vmatpush.bf16.msra.mxu0 %v327
  %429 = vmatpush.bf16.msra.mxu0 %v323
  %430 = vmatpush.bf16.msra.mxu0 %v319
  %431 = vmatpush.bf16.msra.mxu0 %v315
  %432 = vmatmul.bf16.gmra.mxu0 %v88
  %v433 = vpop.f32.mrf.mxu0
  %v434 = vadd.f32 %v421, %v433
  %v435 = vpop.f32.mrf.mxu0
  %436 = vdwg.mxu0
  %437 = vmatpush.bf16.msra.mxu0 %v312
  %438 = vmatpush.bf16.msra.mxu0 %v308
  %439 = vmatpush.bf16.msra.mxu0 %v304
  %440 = vmatpush.bf16.msra.mxu0 %v300
  %441 = vmatpush.bf16.msra.mxu0 %v296
  %442 = vmatpush.bf16.msra.mxu0 %v292
  %443 = vmatpush.bf16.msra.mxu0 %v288
  %444 = vmatpush.bf16.msra.mxu0 %v284
  %445 = vmatmul.bf16.gmra.mxu0 %v87
  %v446 = vpop.f32.mrf.mxu0
  %v447 = vadd.f32 %v83, %v446
  %v448 = vpop.f32.mrf.mxu0
  %449 = vdwg.mxu0
  %450 = vmatpush.bf16.msra.mxu0 %v344
  %451 = vmatpush.bf16.msra.mxu0 %v340
  %452 = vmatpush.bf16.msra.mxu0 %v336
  %453 = vmatpush.bf16.msra.mxu0 %v332
  %454 = vmatpush.bf16.msra.mxu0 %v328
  %455 = vmatpush.bf16.msra.mxu0 %v324
  %456 = vmatpush.bf16.msra.mxu0 %v320
  %457 = vmatpush.bf16.msra.mxu0 %v316
  %458 = vmatmul.bf16.gmra.mxu0 %v88
  %v459 = vpop.f32.mrf.mxu0
  %v460 = vadd.f32 %v447, %v459
  %v461 = vpop.f32.mrf.mxu0
  %462 = vdwg.mxu0
  %463 = vmatpush.bf16.msra.mxu0 %v313
  %464 = vmatpush.bf16.msra.mxu0 %v309
  %465 = vmatpush.bf16.msra.mxu0 %v305
  %466 = vmatpush.bf16.msra.mxu0 %v301
  %467 = vmatpush.bf16.msra.mxu0 %v297
  %468 = vmatpush.bf16.msra.mxu0 %v293
  %469 = vmatpush.bf16.msra.mxu0 %v289
  %470 = vmatpush.bf16.msra.mxu0 %v285
  %471 = vmatmul.bf16.gmra.mxu0 %v87
  %v472 = vpop.f32.mrf.mxu0
  %v473 = vadd.f32 %v83, %v472
  %v474 = vpop.f32.mrf.mxu0
  %475 = vdwg.mxu0
  %476 = vmatpush.bf16.msra.mxu0 %v345
  %477 = vmatpush.bf16.msra.mxu0 %v341
  %478 = vmatpush.bf16.msra.mxu0 %v337
  %479 = vmatpush.bf16.msra.mxu0 %v333
  %480 = vmatpush.bf16.msra.mxu0 %v329
  %481 = vmatpush.bf16.msra.mxu0 %v325
  %482 = vmatpush.bf16.msra.mxu0 %v321
  %483 = vmatpush.bf16.msra.mxu0 %v317
  %484 = vmatmul.bf16.gmra.mxu0 %v88
  %v485 = vpop.f32.mrf.mxu0
  %v486 = vadd.f32 %v473, %v485
  %v487 = vpop.f32.mrf.mxu0
  %488 = vdwg.mxu0
  %489 = vmatpush.bf16.msra.mxu0 %v314
  %490 = vmatpush.bf16.msra.mxu0 %v310
  %491 = vmatpush.bf16.msra.mxu0 %v306
  %492 = vmatpush.bf16.msra.mxu0 %v302
  %493 = vmatpush.bf16.msra.mxu0 %v298
  %494 = vmatpush.bf16.msra.mxu0 %v294
  %495 = vmatpush.bf16.msra.mxu0 %v290
  %496 = vmatpush.bf16.msra.mxu0 %v286
  %497 = vmatmul.bf16.gmra.mxu0 %v87
  %v498 = vpop.f32.mrf.mxu0
  %v499 = vadd.f32 %v83, %v498
  %v500 = vpop.f32.mrf.mxu0
  %501 = vdwg.mxu0
  %502 = vmatpush.bf16.msra.mxu0 %v346
  %503 = vmatpush.bf16.msra.mxu0 %v342
  %504 = vmatpush.bf16.msra.mxu0 %v338
  %505 = vmatpush.bf16.msra.mxu0 %v334
  %506 = vmatpush.bf16.msra.mxu0 %v330
  %507 = vmatpush.bf16.msra.mxu0 %v326
  %508 = vmatpush.bf16.msra.mxu0 %v322
  %509 = vmatpush.bf16.msra.mxu0 %v318
  %510 = vmatmul.bf16.gmra.mxu0 %v88
  %v511 = vpop.f32.mrf.mxu0
  %v512 = vadd.f32 %v499, %v511
  %v513 = vpop.f32.mrf.mxu0
  %514 = vdwg.mxu0
  %v515 = vxor.u32 %v434, 2147483648
  %v516 = vxor.u32 %v460, 2147483648
  %v517 = vxor.u32 %v486, 2147483648
  %v518 = vxor.u32 %v512, 2147483648
  %v519 = vmul.f32 %v515, 1.442695
  %v520 = vpow.pop %v519
  %v521 = vmul.f32 %v516, 1.442695
  %v522 = vpow.pop %v521
  %v523 = vmul.f32 %v517, 1.442695
  %v524 = vpow.pop %v523
  %v525 = vmul.f32 %v518, 1.442695
  %v526 = vpow.pop %v525
  %v527 = vadd.f32 %v520, 1.0
  %v528 = vadd.f32 %v522, 1.0
  %v529 = vadd.f32 %v524, 1.0
  %v530 = vadd.f32 %v526, 1.0
  %v531 = vrcp.pop %v527
  %v532 = vmul.f32 %v527, %v531
  %v533 = vsub.f32 1.0, %v532
  %v534 = vmul.f32 %v531, %v533
  %v535 = vadd.f32 %v531, %v534
  %vm536 = vweird.f32 %v527
  %vm537 = vweird.f32 %v531
  %vm538 = vmor %vm536, %vm537
  %v539 = vsel %vm538, %v531, %v535
  %v540 = vand.u32 2147483647, %v527
  %vm541 = vcmp.eq.f32.partialorder %v540, 8.507059e+37
  %v542 = vand.u32 %v527, 2147483648
  %v543 = vor.u32 1.1754944e-38, %v542
  %v544 = vsel %vm541, %v543, %v539
  %v545 = vmul.f32 1.0, %v544
  %v546 = vrcp.pop %v528
  %v547 = vmul.f32 %v528, %v546
  %v548 = vsub.f32 1.0, %v547
  %v549 = vmul.f32 %v546, %v548
  %v550 = vadd.f32 %v546, %v549
  %vm551 = vweird.f32 %v528
  %vm552 = vweird.f32 %v546
  %vm553 = vmor %vm551, %vm552
  %v554 = vsel %vm553, %v546, %v550
  %v555 = vand.u32 2147483647, %v528
  %vm556 = vcmp.eq.f32.partialorder %v555, 8.507059e+37
  %v557 = vand.u32 %v528, 2147483648
  %v558 = vor.u32 1.1754944e-38, %v557
  %v559 = vsel %vm556, %v558, %v554
  %v560 = vmul.f32 1.0, %v559
  %v561 = vrcp.pop %v529
  %v562 = vmul.f32 %v529, %v561
  %v563 = vsub.f32 1.0, %v562
  %v564 = vmul.f32 %v561, %v563
  %v565 = vadd.f32 %v561, %v564
  %vm566 = vweird.f32 %v529
  %vm567 = vweird.f32 %v561
  %vm568 = vmor %vm566, %vm567
  %v569 = vsel %vm568, %v561, %v565
  %v570 = vand.u32 2147483647, %v529
  %vm571 = vcmp.eq.f32.partialorder %v570, 8.507059e+37
  %v572 = vand.u32 %v529, 2147483648
  %v573 = vor.u32 1.1754944e-38, %v572
  %v574 = vsel %vm571, %v573, %v569
  %v575 = vmul.f32 1.0, %v574
  %v576 = vrcp.pop %v530
  %v577 = vmul.f32 %v530, %v576
  %v578 = vsub.f32 1.0, %v577
  %v579 = vmul.f32 %v576, %v578
  %v580 = vadd.f32 %v576, %v579
  %vm581 = vweird.f32 %v530
  %vm582 = vweird.f32 %v576
  %vm583 = vmor %vm581, %vm582
  %v584 = vsel %vm583, %v576, %v580
  %v585 = vand.u32 2147483647, %v530
  %vm586 = vcmp.eq.f32.partialorder %v585, 8.507059e+37
  %v587 = vand.u32 %v530, 2147483648
  %v588 = vor.u32 1.1754944e-38, %v587
  %v589 = vsel %vm586, %v588, %v584
  %v590 = vmul.f32 1.0, %v589
  %v595 = vrot.slane %v560, 4
  %v596 = vrot.slane %v590, 4
  %vm597 = vcmask 1043456
  %v598 = vsel %vm597, %v545, %v595
  %v599 = vsel %vm597, %v575, %v596
  %602 = vst [vmem:[%s3] sm:$0xff] %v598
  %vm603 = vcmask 539652
  %vm604 = vmor %vm603, %vm597
  %605 = vst.msk [vmem:[%s3 + $0x8] sm:$0xff] %vm604, %v599
  // Predicated region
  $region14: #{discriminator_forward.7} parent=0 // pred_check
    _
  $region15: #{discriminator_forward.7} parent=0 // pred_check_branch
    %607 = sbr.rel (0) target = $region17
  $region16: #{discriminator_forward.7} parent=0 // pred_region
    _
  $region17: #{discriminator_forward.7} parent=0 // pred_fallthru
    _
  // Predicated region
  $region18: #{discriminator_forward.7} parent=0 // pred_check
    _
  $region19: #{discriminator_forward.7} parent=0 // pred_check_branch
    %609 = sbr.rel (0) target = $region21
  $region20: #{discriminator_forward.7} parent=0 // pred_region
    _
  $region21: #{discriminator_forward.7} parent=0 // pred_fallthru
    _

</llo_original>
